<compile_context>
chip_gen: v6e
topology: v6e:2x2x1
jax: 0.10.0
libtpu: 0.0.40
codegen_flags: <defaults>
</compile_context>

<pallas_src>
from functools import partial
from typing import Optional, Tuple, Union

import jax
import jax.numpy as jnp
from jax import lax
from jax.experimental import pallas as pl
from jax.experimental.pallas import tpu as pltpu

IntOrPair = Union[int, Tuple[int, int]]
_PAD_VALUE = -99999999999.0  # same sentinel the PyTorch module pads with


def force_pair(v: IntOrPair) -> Tuple[int, int]:
    """Convert v to a pair of int, if it isn't already."""
    if isinstance(v, tuple):
        if len(v) != 2:
            raise ValueError(v)
        return (int(v[0]), int(v[1]))
    if isinstance(v, int):
        return (v, v)
    raise ValueError(v)


# ----------------------------- Pallas kernel --------------------------------

def _maxpool_kernel(x_ref, o_ref, xp_ref, *, kh, kw, sh, sw, ph, pw,
                    H, W, Ho, Wo):
    """One block of nt = B*C-tile images, full spatial extent.

    x_ref : (nt, H, W)        unpadded input block (NCHW, B*C flattened)
    o_ref : (nt, Ho, Wo)      pooled output block
    xp_ref: (nt, Hp, Wp)      VMEM scratch for the sentinel-padded image
    """
    nt = x_ref.shape[0]
    Hv = sh * (Ho - 1) + 1          # rows of the stride-1 pooled map we need
    Wv = sw * (Wo - 1) + 1          # cols of the stride-1 pooled map we need

    # ---- pad in VMEM (no padded array ever touches HBM) ----
    if ph > 0 or pw > 0:
        xp_ref[...] = jnp.full(xp_ref.shape, _PAD_VALUE, xp_ref.dtype)
        xp_ref[:, ph:ph + H, pw:pw + W] = x_ref[...]
        xpv = xp_ref[...]
    else:
        xpv = x_ref[...]

    # ---- separable stride-1 window max: kw lane-shifted slices, then kh
    #      sublane-shifted slices (VPU maxima on contiguous static slices) ----
    r = xpv[:, :, 0:Wv]
    for dj in range(1, kw):
        r = jnp.maximum(r, xpv[:, :, dj:dj + Wv])
    p = r[:, 0:Hv, :]
    for di in range(1, kh):
        p = jnp.maximum(p, r[:, di:di + Hv, :])

    # ---- stride subsample via exact 0/1 selection matmuls (MXU).  HIGHEST
    #      precision keeps the f32 values bit-exact (multiply by 1.0, add 0) ----
    if sw > 1:
        sel_w = (lax.broadcasted_iota(jnp.int32, (nt, Wv, Wo), 1)
                 == sw * lax.broadcasted_iota(jnp.int32, (nt, Wv, Wo), 2)
                 ).astype(p.dtype)
        p = jnp.einsum('nhw,nwv->nhv', p, sel_w,
                       precision=lax.Precision.HIGHEST,
                       preferred_element_type=jnp.float32)
    if sh > 1:
        sel_h = (sh * lax.broadcasted_iota(jnp.int32, (nt, Ho, Hv), 1)
                 == lax.broadcasted_iota(jnp.int32, (nt, Ho, Hv), 2)
                 ).astype(p.dtype)
        p = jnp.einsum('nuh,nhv->nuv', sel_h, p,
                       precision=lax.Precision.HIGHEST,
                       preferred_element_type=jnp.float32)

    o_ref[...] = p.astype(o_ref.dtype)


# ------------------------------- wrapper -------------------------------------

def _pick_block(N: int, per_item_bytes: int) -> int:
    """Largest divisor of N whose input block stays ~<=1 MiB and grid >= 2."""
    if N <= 1:
        return 1
    target = max(1, (1 << 20) // max(per_item_bytes, 1))   # ~1 MiB blocks
    cap = min(target, max(1, N // 2))                       # keep >=2 grid steps
    best, d = 1, 1
    while d * d <= N:
        if N % d == 0:
            for cand in (d, N // d):
                if cand <= cap and cand > best:
                    best = cand
        d += 1
    return best


@partial(jax.jit, static_argnames=("kernel_size", "stride", "padding"))
def _max_pool2d(x, *, kernel_size, stride, padding):
    kh, kw = kernel_size
    sh, sw = stride
    ph, pw = padding
    B, C, H, W = x.shape
    Hp, Wp = H + 2 * ph, W + 2 * pw
    Ho = 1 + (Hp - kh) // sh
    Wo = 1 + (Wp - kw) // sw

    N = B * C
    itemsize = jnp.dtype(x.dtype).itemsize
    nt = _pick_block(N, Hp * Wp * itemsize)
    grid = (N // nt,)

    # Contiguous-dim reshapes only: no transposes, no HBM copies.
    xr = x.reshape(N, H, W)

    kernel = partial(_maxpool_kernel, kh=kh, kw=kw, sh=sh, sw=sw,
                     ph=ph, pw=pw, H=H, W=W, Ho=Ho, Wo=Wo)

    pad_scratch = pltpu.VMEM((nt, Hp, Wp), x.dtype) if (ph or pw) \
        else pltpu.VMEM((1, 8, 128), x.dtype)   # unused when padding == 0

    out = pl.pallas_call(
        kernel,
        out_shape=jax.ShapeDtypeStruct((N, Ho, Wo), x.dtype),
        grid=grid,
        in_specs=[pl.BlockSpec((nt, H, W), lambda i: (i, 0, 0))],
        out_specs=pl.BlockSpec((nt, Ho, Wo), lambda i: (i, 0, 0)),
        scratch_shapes=[pad_scratch],
        compiler_params=pltpu.CompilerParams(
            dimension_semantics=("parallel",),
            vmem_limit_bytes=32 * 1024 * 1024),
    )(xr)

    return out.reshape(B, C, Ho, Wo)


class MaxPool2d:
    """Pallas-backed equivalent of the PyTorch MaxPool2d module."""

    def __init__(self, kernel_size: IntOrPair,
                 stride: Optional[IntOrPair] = None,
                 padding: IntOrPair = 1):
        if stride is None:
            stride = kernel_size
        self.kernel_size = force_pair(kernel_size)
        self.stride = force_pair(stride)
        self.padding = force_pair(padding)

    def __call__(self, x: jax.Array) -> jax.Array:
        return _max_pool2d(x, kernel_size=self.kernel_size,
                           stride=self.stride, padding=self.padding)

    def extra_repr(self) -> str:
        return (f"kernel_size = {self.kernel_size} "
                f"stride = {self.stride} padding = {self.padding}")


# ----------------------------- plain-JAX reference ---------------------------

def _ref_max_pool2d(x, kernel_size, stride, padding):
    kh, kw = kernel_size
    sh, sw = stride
    ph, pw = padding
    B, C, H, W = x.shape
    Ho = 1 + (H + 2 * ph - kh) // sh
    Wo = 1 + (W + 2 * pw - kw) // sw
    xp = jnp.full((B, C, H + 2 * ph, W + 2 * pw), _PAD_VALUE, x.dtype)
    xp = xp.at[:, :, ph:ph + H, pw:pw + W].set(x)
    out = None
    for di in range(kh):
        for dj in range(kw):
            win = xp[:, :,
                     di:di + sh * (Ho - 1) + 1:sh,
                     dj:dj + sw * (Wo - 1) + 1:sw]
            out = win if out is None else jnp.maximum(out, win)
    return out


# ---------------------------------- main --------------------------------------

if __name__ == "__main__":
    key = jax.random.PRNGKey(0)
    x = jax.random.normal(key, (2, 4, 16, 16), dtype=jnp.float32)

    # ResNet-style overlapping pool: kernel 3, stride 2, padding 1.
    pool = MaxPool2d(kernel_size=3, stride=2, padding=1)
    y = pool(x)
    jax.block_until_ready(y)
    assert y.shape == (2, 4, 8, 8), y.shape
    y_ref = _ref_max_pool2d(x, pool.kernel_size, pool.stride, pool.padding)
    assert jnp.allclose(y, y_ref), "mismatch vs reference (3,2,1)"

    # Module-default path: stride=None -> stride=kernel_size, padding=1.
    pool2 = MaxPool2d(kernel_size=2)
    y2 = pool2(x)
    jax.block_until_ready(y2)
    assert y2.shape == (2, 4, 9, 9), y2.shape
    y2_ref = _ref_max_pool2d(x, pool2.kernel_size, pool2.stride, pool2.padding)
    assert jnp.allclose(y2, y2_ref), "mismatch vs reference (2,2,1)"

    # Asymmetric kernel/stride/padding exercises sh=1 / pw-only padding paths.
    pool3 = MaxPool2d(kernel_size=(3, 2), stride=(1, 2), padding=(0, 1))
    y3 = pool3(x)
    jax.block_until_ready(y3)
    assert y3.shape == (2, 4, 14, 9), y3.shape
    y3_ref = _ref_max_pool2d(x, pool3.kernel_size, pool3.stride, pool3.padding)
    assert jnp.allclose(y3, y3_ref), "mismatch vs reference ((3,2),(1,2),(0,1))"

    print("KERNEL_OK")
</pallas_src>

<mosaic_0001>
module attributes {stable_mosaic.version = 11 : i64} {
  func.func @_maxpool_kernel(%arg0: i32, %arg1: memref<4x16x16xf32, #tpu.memory_space<vmem>>, %arg2: memref<4x8x8xf32, #tpu.memory_space<vmem>>, %arg3: memref<4x18x18xf32, #tpu.memory_space<vmem>>) attributes {dimension_semantics = [#tpu.dimension_semantics<parallel>], iteration_bounds = array<i64: 2>, scalar_prefetch = 0 : i64, scratch_operands = 1 : i64, tpu.core_type = #tpu.core_type<tc>, window_params = [{transform_indices = @transform_0, window_bounds = array<i64: 4, 16, 16>}, {transform_indices = @transform_1, window_bounds = array<i64: 4, 8, 8>}]} {
    %cst = arith.constant -9.99999979E+10 : f32
    %0 = vector.broadcast %cst : f32 to vector<4x18x18xf32>
    %c0 = arith.constant 0 : index
    %c0_0 = arith.constant 0 : index
    %c0_1 = arith.constant 0 : index
    %1 = vector.load %arg3[%c0, %c0_0, %c0_1] : memref<4x18x18xf32, #tpu.memory_space<vmem>>, vector<4x18x18xf32>
    tpu.vector_store %arg3[%c0, %c0_0, %c0_1], %0 {strides = array<i32>} : memref<4x18x18xf32, #tpu.memory_space<vmem>>, vector<4x18x18xf32>,
    %c0_2 = arith.constant 0 : index
    %c0_3 = arith.constant 0 : index
    %c0_4 = arith.constant 0 : index
    %2 = vector.load %arg1[%c0_2, %c0_3, %c0_4] : memref<4x16x16xf32, #tpu.memory_space<vmem>>, vector<4x16x16xf32>
    %c0_5 = arith.constant 0 : index
    %c1 = arith.constant 1 : index
    %c1_6 = arith.constant 1 : index
    %3 = vector.load %arg3[%c0_5, %c1, %c1_6] : memref<4x18x18xf32, #tpu.memory_space<vmem>>, vector<4x16x16xf32>
    tpu.vector_store %arg3[%c0_5, %c1, %c1_6], %2 {strides = array<i32>} : memref<4x18x18xf32, #tpu.memory_space<vmem>>, vector<4x16x16xf32>,
    %c0_7 = arith.constant 0 : index
    %c0_8 = arith.constant 0 : index
    %c0_9 = arith.constant 0 : index
    %4 = vector.load %arg3[%c0_7, %c0_8, %c0_9] : memref<4x18x18xf32, #tpu.memory_space<vmem>>, vector<4x18x18xf32>
    %5 = vector.extract_strided_slice %4 {offsets = [0, 0, 0], sizes = [4, 18, 15], strides = [1, 1, 1]} : vector<4x18x18xf32> to vector<4x18x15xf32>
    %6 = vector.extract_strided_slice %4 {offsets = [0, 0, 1], sizes = [4, 18, 15], strides = [1, 1, 1]} : vector<4x18x18xf32> to vector<4x18x15xf32>
    %7 = arith.maximumf %5, %6 : vector<4x18x15xf32>
    %8 = vector.extract_strided_slice %4 {offsets = [0, 0, 2], sizes = [4, 18, 15], strides = [1, 1, 1]} : vector<4x18x18xf32> to vector<4x18x15xf32>
    %9 = arith.maximumf %7, %8 : vector<4x18x15xf32>
    %10 = vector.extract_strided_slice %9 {offsets = [0, 0, 0], sizes = [4, 15, 15], strides = [1, 1, 1]} : vector<4x18x15xf32> to vector<4x15x15xf32>
    %11 = vector.extract_strided_slice %9 {offsets = [0, 1, 0], sizes = [4, 15, 15], strides = [1, 1, 1]} : vector<4x18x15xf32> to vector<4x15x15xf32>
    %12 = arith.maximumf %10, %11 : vector<4x15x15xf32>
    %13 = vector.extract_strided_slice %9 {offsets = [0, 2, 0], sizes = [4, 15, 15], strides = [1, 1, 1]} : vector<4x18x15xf32> to vector<4x15x15xf32>
    %14 = arith.maximumf %12, %13 : vector<4x15x15xf32>
    %15 = tpu.iota {dimensions = array<i32: 1>} : vector<4x15x8xi32>
    %16 = tpu.iota {dimensions = array<i32: 2>} : vector<4x15x8xi32>
    %c2_i32 = arith.constant 2 : i32
    %17 = vector.broadcast %c2_i32 : i32 to vector<4x15x8xi32>
    %18 = arith.muli %17, %16 : vector<4x15x8xi32>
    %19 = arith.cmpi eq, %15, %18 : vector<4x15x8xi32>
    %20 = arith.extui %19 : vector<4x15x8xi1> to vector<4x15x8xi32>
    %21 = arith.sitofp %20 : vector<4x15x8xi32> to vector<4x15x8xf32>
    "tpu.trace_start"() <{level = 10 : i32, message = "nhw,nwv->nhv"}> : () -> ()
    %cst_10 = arith.constant dense<0.000000e+00> : vector<4x15x8xf32>
    %22 = tpu.matmul %14, %21, %cst_10 {dimension_numbers = #tpu.dot_dimension_numbers<[2], [1], [1], [2], [0, 0, 0, 1, 1, 2], [0], [0]>, precision = #tpu.contract_precision<fp32>} : vector<4x15x15xf32>, vector<4x15x8xf32>, vector<4x15x8xf32> -> vector<4x15x8xf32>
    "tpu.trace_stop"() : () -> ()
    %23 = tpu.iota {dimensions = array<i32: 1>} : vector<4x8x15xi32>
    %c2_i32_11 = arith.constant 2 : i32
    %24 = vector.broadcast %c2_i32_11 : i32 to vector<4x8x15xi32>
    %25 = arith.muli %24, %23 : vector<4x8x15xi32>
    %26 = tpu.iota {dimensions = array<i32: 2>} : vector<4x8x15xi32>
    %27 = arith.cmpi eq, %25, %26 : vector<4x8x15xi32>
    %28 = arith.extui %27 : vector<4x8x15xi1> to vector<4x8x15xi32>
    %29 = arith.sitofp %28 : vector<4x8x15xi32> to vector<4x8x15xf32>
    "tpu.trace_start"() <{level = 10 : i32, message = "nuh,nhv->nuv"}> : () -> ()
    %cst_12 = arith.constant dense<0.000000e+00> : vector<4x8x8xf32>
    %30 = tpu.matmul %29, %22, %cst_12 {dimension_numbers = #tpu.dot_dimension_numbers<[2], [1], [1], [2], [0, 0, 0, 1, 1, 2], [0], [0]>, precision = #tpu.contract_precision<fp32>} : vector<4x8x15xf32>, vector<4x15x8xf32>, vector<4x8x8xf32> -> vector<4x8x8xf32>
    "tpu.trace_stop"() : () -> ()
    %c0_13 = arith.constant 0 : index
    %c0_14 = arith.constant 0 : index
    %c0_15 = arith.constant 0 : index
    %31 = vector.load %arg2[%c0_13, %c0_14, %c0_15] : memref<4x8x8xf32, #tpu.memory_space<vmem>>, vector<4x8x8xf32>
    tpu.vector_store %arg2[%c0_13, %c0_14, %c0_15], %30 {strides = array<i32>} : memref<4x8x8xf32, #tpu.memory_space<vmem>>, vector<4x8x8xf32>,
    return
  }
  func.func @transform_0(%arg0: i32) -> (i32, i32, i32) {
    %c0_i32 = arith.constant 0 : i32
    %c0_i32_0 = arith.constant 0 : i32
    %c0_i32_1 = arith.constant 0 : i32
    return %arg0, %c0_i32, %c0_i32_0 : i32, i32, i32
  }
  func.func @transform_1(%arg0: i32) -> (i32, i32, i32) {
    %c0_i32 = arith.constant 0 : i32
    %c0_i32_0 = arith.constant 0 : i32
    %c0_i32_1 = arith.constant 0 : i32
    return %arg0, %c0_i32, %c0_i32_0 : i32, i32, i32
  }
}

</mosaic_0001>

<llo_original>
// kernel: _max_pool2d.1
$region0: #{_max_pool2d.1}
  #allocation0 [shape = 'u32[]', space=smem, size = 0x4, offset = 0x4, fixed_abs, tag = 'smem constant byte address 0x4 - core index']
  #allocation1 [shape = 'u32[144,128]{1,0:T(1,128)}', space=vmem, size = 0x12000, scoped, tag = 'internal scratch']
  #allocation2 [shape = 'f32[4,18,18]{2,1,0:T(8,128)}', space=vmem, size = 0xc000, scoped, tag = 'scratch operand']
  %s0 = inlined_call_operand.hbm [shape: f32[8,16,16], index: 0, kind: input, shape index: {}]
  %s1 = inlined_call_operand.hbm [shape: f32[8,8,8], index: 1, kind: output, shape index: {}]
  %s2 = sld [smem:[#allocation0]]
  $region41: #{_max_pool2d.1} parent=0
    _
  %s4 = ssub.s32 1, %s2
  %s5 = scalar_select 0, %s4, %s2
  $region1: #{_max_pool2d.1} parent=0
    #allocation3 [shape = 'u8[65536]{0}', space=vmem, size = 0x10000, scoped, tag = 'input window, operand 0']
    #allocation4 [shape = 's32[2]{0}', space=sflag, size = 0x8, scoped, tag = 'scoped memory for _max_pool2d.1']
    #allocation5 [shape = 's32[2]{0}', space=sflag, size = 0x8, scoped, tag = 'scoped memory for _max_pool2d.1']
    #allocation6 [shape = 'u8[32768]{0}', space=vmem, size = 0x8000, scoped, tag = 'output window, operand 0']
    %6 = vsyncpa [#allocation4], 0
    %s7 = scalar_lea.sflag [#allocation4], 1
    %8 = vsyncpa %s7, 0
    %9 = vsyncpa [#allocation5], 0
    %s10 = scalar_lea.sflag [#allocation5], 1
    %11 = vsyncpa %s10, 0
    loop: start=0, step=1, limit=4
    $region2: #{_max_pool2d.1} parent=1 // loop_pre_header
      _
    $region3: #{_max_pool2d.1} parent=1 // loop_header
      %s13 = sphi 0, %s17
      %p14 = scmp.ge.s32.totalorder %s13, 4
      %s23 = sphi 0, %s25
      %s26 = sphi 0, %s23
      %s27 = sphi 0, %s26
      %s43 = sphi 0, %s27
      %s49 = sphi 0, %s51
      %s52 = sphi 0, %s49
      %s53 = sphi 0, %s52
      %s69 = sphi 0, %s53
    $region4: #{_max_pool2d.1} parent=1 // loop_header_branch
      %16 = sbr.rel (%p14) target = $region8
    $region5: #{_max_pool2d.1} parent=1 // loop_body
      %s18 = ssub.s32 %s13, 1
      %s19 = ssub.s32 %s13, 2
      %s20 = sadd.s32 %s13, 1
      %s21 = ssub.s32 %s13, %s20
      %p22 = scmp.eq.s32.totalorder %s21, 0
      %s24 = sadd.s32 %s23, 1
      %s25 = scalar_select %p22, %s23, %s24
      %p28 = pneg %p22
      %p29 = scmp.eq.s32.totalorder %s13, 1
      %p30 = por %p28, %p29
      %p31 = scmp.ne.s32.totalorder %s23, %s26
      %p32 = scmp.eq.s32.totalorder %s13, 0
      %p33 = por %p31, %p32
      %p34 = scmp.ne.s32.totalorder %s23, %s26
      %p35 = scmp.eq.s32.totalorder %s18, 1
      %p36 = por %p34, %p35
      %p37 = scmp.ne.s32.totalorder %s26, %s27
      %p38 = scmp.eq.s32.totalorder %s18, 0
      %p39 = por %p37, %p38
      %p40 = scmp.ne.s32.totalorder %s26, %s27
      %p41 = scmp.eq.s32.totalorder %s19, 1
      %p42 = por %p40, %p41
      %p44 = scmp.ne.s32.totalorder %s27, %s43
      %p45 = scmp.eq.s32.totalorder %s19, 0
      %p46 = por %p44, %p45
      %s47 = ssub.s32 %s13, %s20
      %p48 = scmp.eq.s32.totalorder %s47, 0
      %s50 = sadd.s32 %s49, 1
      %s51 = scalar_select %p48, %s49, %s50
      %p54 = pneg %p48
      %p55 = scmp.eq.s32.totalorder %s13, 1
      %p56 = por %p54, %p55
      %p57 = scmp.ne.s32.totalorder %s49, %s52
      %p58 = scmp.eq.s32.totalorder %s13, 0
      %p59 = por %p57, %p58
      %p60 = scmp.ne.s32.totalorder %s49, %s52
      %p61 = scmp.eq.s32.totalorder %s18, 1
      %p62 = por %p60, %p61
      %p63 = scmp.ne.s32.totalorder %s52, %s53
      %p64 = scmp.eq.s32.totalorder %s18, 0
      %p65 = por %p63, %p64
      %p66 = scmp.ne.s32.totalorder %s52, %s53
      %p67 = scmp.eq.s32.totalorder %s19, 1
      %p68 = por %p66, %p67
      %p70 = scmp.ne.s32.totalorder %s53, %s69
      %p71 = scmp.eq.s32.totalorder %s19, 0
      %p72 = por %p70, %p71
      %p73 = scmp.le.s32.totalorder 1, %s13
      %p74 = scmp.lt.s32.totalorder %s13, 3
      %p75 = pnand %p73, %p74
      %p76 = pneg %p75
      // Predicated region
      $region9: #{_max_pool2d.1} parent=5 // pred_check
        _
      $region10: #{_max_pool2d.1} parent=5 // pred_check_branch
        %78 = sbr.rel (%p75) target = $region12
      $region11: #{_max_pool2d.1} parent=5 // pred_region
        %s79 = ssub.s32 %s13, 1
      $region12: #{_max_pool2d.1} parent=5 // pred_fallthru
        _
      %p80 = scmp.lt.s32.totalorder %s13, 2
      // Predicated region
      $region13: #{_max_pool2d.1} parent=5 // pred_check
        %p81 = pneg %p80
      $region14: #{_max_pool2d.1} parent=5 // pred_check_branch
        %83 = sbr.rel (%p81) target = $region16
      $region15: #{_max_pool2d.1} parent=5 // pred_region
        // Predicated region
        $region17: #{_max_pool2d.1} parent=15 // pred_check
          %p84 = pneg %p33
        $region18: #{_max_pool2d.1} parent=15 // pred_check_branch
          %86 = sbr.rel (%p84) target = $region20
        $region19: #{_max_pool2d.1} parent=15 // pred_region
          %s87 = sand.u32 %s23, 1
          %s88 = scalar_lea.sflag [#allocation4], %s87
          %s89 = sand.u32 %s23, 1
          %s90 = smul.addr %s89, 64
          %s91 = scalar_lea.vmem [#allocation3], %s90
          %s92 = smul.u32 4, %s13
          %s94 = ssub.s32 1024, 1024
          %95 = vsyncadd %s88, %s94
          %s96 = smul.addr %s92, 2
          %s97 = smul.addr %s96, 128
          %s98 = scalar_lea.hbm %s0, %s97
          %s99 = sshll.u32 %s91, 4
          %s100 = int_to_ptr.vmem [resolvable:$true] %s99
          %105 = dma.hbm_to_vmem [thread:$0]  %s98, 1024, %s100, %s88, 128, 128, 8
        $region20: #{_max_pool2d.1} parent=15 // pred_fallthru
          _
      $region16: #{_max_pool2d.1} parent=5 // pred_fallthru
        _
      %p106 = scmp.le.s32.totalorder 1, %s13
      %p107 = scmp.lt.s32.totalorder %s13, 3
      %p108 = pnand %p106, %p107
      %p109 = pneg %p108
      // Predicated region
      $region21: #{_max_pool2d.1} parent=5 // pred_check
        _
      $region22: #{_max_pool2d.1} parent=5 // pred_check_branch
        %111 = sbr.rel (%p108) target = $region24
      $region23: #{_max_pool2d.1} parent=5 // pred_region
        %s112 = ssub.s32 %s13, 1
        %s113 = sand.u32 %s26, 1
        %s114 = scalar_lea.sflag [#allocation4], %s113
        %s115 = sand.u32 %s26, 1
        %s116 = smul.addr %s115, 64
        %s117 = scalar_lea.vmem [#allocation3], %s116
        // Predicated region
        $region25: #{_max_pool2d.1} parent=23 // pred_check
          %p118 = pneg %p39
        $region26: #{_max_pool2d.1} parent=23 // pred_check_branch
          %120 = sbr.rel (%p118) target = $region28
        $region27: #{_max_pool2d.1} parent=23 // pred_region
          %121 = dma.done %s114, 1024
        $region28: #{_max_pool2d.1} parent=23 // pred_fallthru
          _
        %s122 = sand.u32 %s26, 1
        %s123 = scalar_lea.sflag [#allocation4], %s122
        %s124 = sand.u32 %s26, 1
        %s125 = smul.addr %s124, 64
        %s126 = scalar_lea.vmem [#allocation3], %s125
        %p127 = pneg %p39
        %p128 = pneg %p36
        %p129 = pneg %p65
        %p130 = pneg %p62
        %s131 = sand.u32 %s52, 1
        %s132 = scalar_lea.sflag [#allocation5], %s131
        %s133 = sand.u32 %s52, 1
        %s134 = smul.addr %s133, 32
        %s135 = scalar_lea.vmem [#allocation6], %s134
        %s136 = smul.u32 4, %s18
        %s137 = smul.u32 4, %s18
        %vm138 = vcmask 146432
        %139 = vst.msk [vmem:[#allocation2] sm:$0xff] %vm138, -1e+11
        %140 = vst.msk [vmem:[#allocation2 + $0x8] sm:$0xff] %vm138, -1e+11
        %vm141 = vcmask 140288
        %142 = vst.msk [vmem:[#allocation2 + $0x10] sm:$0x3] %vm141, -1e+11
        %143 = vst.msk [vmem:[#allocation2 + $0x18] sm:$0xff] %vm138, -1e+11
        %144 = vst.msk [vmem:[#allocation2 + $0x20] sm:$0xff] %vm138, -1e+11
        %145 = vst.msk [vmem:[#allocation2 + $0x28] sm:$0x3] %vm141, -1e+11
        %146 = vst.msk [vmem:[#allocation2 + $0x30] sm:$0xff] %vm138, -1e+11
        %147 = vst.msk [vmem:[#allocation2 + $0x38] sm:$0xff] %vm138, -1e+11
        %148 = vst.msk [vmem:[#allocation2 + $0x40] sm:$0x3] %vm141, -1e+11
        %149 = vst.msk [vmem:[#allocation2 + $0x48] sm:$0xff] %vm138, -1e+11
        %150 = vst.msk [vmem:[#allocation2 + $0x50] sm:$0xff] %vm138, -1e+11
        %151 = vst.msk [vmem:[#allocation2 + $0x58] sm:$0x3] %vm141, -1e+11
        %v152 = vld [vmem:[%s117] sm:$0xff]
        %v153 = vld [vmem:[%s117 + $0x8] sm:$0xff]
        %v154 = vld [vmem:[%s117 + $0x10] sm:$0xff]
        %v155 = vld [vmem:[%s117 + $0x18] sm:$0xff]
        %v156 = vld [vmem:[%s117 + $0x20] sm:$0xff]
        %v157 = vld [vmem:[%s117 + $0x28] sm:$0xff]
        %v158 = vld [vmem:[%s117 + $0x30] sm:$0xff]
        %v159 = vld [vmem:[%s117 + $0x38] sm:$0xff]
        %168 = vrot.lane.b32.xlu0 %v152, 1
        %v169 = vpop.permute.xlu0 %168
        %170 = vrot.lane.b32.xlu0 %v153, 1
        %v171 = vpop.permute.xlu0 %170
        %172 = vrot.lane.b32.xlu0 %v154, 1
        %v173 = vpop.permute.xlu0 %172
        %174 = vrot.lane.b32.xlu0 %v155, 1
        %v175 = vpop.permute.xlu0 %174
        %176 = vrot.lane.b32.xlu0 %v156, 1
        %v177 = vpop.permute.xlu0 %176
        %178 = vrot.lane.b32.xlu0 %v157, 1
        %v179 = vpop.permute.xlu0 %178
        %180 = vrot.lane.b32.xlu0 %v158, 1
        %v181 = vpop.permute.xlu0 %180
        %182 = vrot.lane.b32.xlu0 %v159, 1
        %v183 = vpop.permute.xlu0 %182
        %vm192 = vcmask 138248
        %193 = vst.msk [vmem:[#allocation2 + $0x1] sm:$0xff] %vm192, %v169
        %194 = vst.msk [vmem:[#allocation2 + $0x9] sm:$0xff] %vm192, %v171
        %195 = vst.msk [vmem:[#allocation2 + $0x19] sm:$0xff] %vm192, %v173
        %196 = vst.msk [vmem:[#allocation2 + $0x21] sm:$0xff] %vm192, %v175
        %197 = vst.msk [vmem:[#allocation2 + $0x31] sm:$0xff] %vm192, %v177
        %198 = vst.msk [vmem:[#allocation2 + $0x39] sm:$0xff] %vm192, %v179
        %199 = vst.msk [vmem:[#allocation2 + $0x49] sm:$0xff] %vm192, %v181
        %200 = vst.msk [vmem:[#allocation2 + $0x51] sm:$0xff] %vm192, %v183
        %v201 = vld [vmem:[#allocation2] sm:$0xff]
        %v202 = vld [vmem:[#allocation2 + $0x8] sm:$0xff]
        %v203 = vld [vmem:[#allocation2 + $0x10] sm:$0x3]
        %v204 = vld [vmem:[#allocation2 + $0x18] sm:$0xff]
        %v205 = vld [vmem:[#allocation2 + $0x20] sm:$0xff]
        %v206 = vld [vmem:[#allocation2 + $0x28] sm:$0x3]
        %v207 = vld [vmem:[#allocation2 + $0x30] sm:$0xff]
        %v208 = vld [vmem:[#allocation2 + $0x38] sm:$0xff]
        %v209 = vld [vmem:[#allocation2 + $0x40] sm:$0x3]
        %v210 = vld [vmem:[#allocation2 + $0x48] sm:$0xff]
        %v211 = vld [vmem:[#allocation2 + $0x50] sm:$0xff]
        %v212 = vld [vmem:[#allocation2 + $0x58] sm:$0x3]
        %225 = vrot.lane.b32.xlu0 %v201, 127
        %v226 = vpop.permute.xlu0 %225
        %227 = vrot.lane.b32.xlu0 %v202, 127
        %v228 = vpop.permute.xlu0 %227
        %229 = vrot.lane.b32.xlu0 %v203, 127
        %v230 = vpop.permute.xlu0 %229
        %231 = vrot.lane.b32.xlu0 %v204, 127
        %v232 = vpop.permute.xlu0 %231
        %233 = vrot.lane.b32.xlu0 %v205, 127
        %v234 = vpop.permute.xlu0 %233
        %235 = vrot.lane.b32.xlu0 %v206, 127
        %v236 = vpop.permute.xlu0 %235
        %237 = vrot.lane.b32.xlu0 %v207, 127
        %v238 = vpop.permute.xlu0 %237
        %239 = vrot.lane.b32.xlu0 %v208, 127
        %v240 = vpop.permute.xlu0 %239
        %241 = vrot.lane.b32.xlu0 %v209, 127
        %v242 = vpop.permute.xlu0 %241
        %243 = vrot.lane.b32.xlu0 %v210, 127
        %v244 = vpop.permute.xlu0 %243
        %245 = vrot.lane.b32.xlu0 %v211, 127
        %v246 = vpop.permute.xlu0 %245
        %247 = vrot.lane.b32.xlu0 %v212, 127
        %v248 = vpop.permute.xlu0 %247
        %v261 = vmax.f32 %v201, %v226
        %v262 = vmax.f32 %v202, %v228
        %v263 = vmax.f32 %v203, %v230
        %v264 = vmax.f32 %v204, %v232
        %v265 = vmax.f32 %v205, %v234
        %v266 = vmax.f32 %v206, %v236
        %v267 = vmax.f32 %v207, %v238
        %v268 = vmax.f32 %v208, %v240
        %v269 = vmax.f32 %v209, %v242
        %v270 = vmax.f32 %v210, %v244
        %v271 = vmax.f32 %v211, %v246
        %v272 = vmax.f32 %v212, %v248
        %273 = vrot.lane.b32.xlu0 %v201, 126
        %v274 = vpop.permute.xlu0 %273
        %275 = vrot.lane.b32.xlu0 %v202, 126
        %v276 = vpop.permute.xlu0 %275
        %277 = vrot.lane.b32.xlu0 %v203, 126
        %v278 = vpop.permute.xlu0 %277
        %279 = vrot.lane.b32.xlu0 %v204, 126
        %v280 = vpop.permute.xlu0 %279
        %281 = vrot.lane.b32.xlu0 %v205, 126
        %v282 = vpop.permute.xlu0 %281
        %283 = vrot.lane.b32.xlu0 %v206, 126
        %v284 = vpop.permute.xlu0 %283
        %285 = vrot.lane.b32.xlu0 %v207, 126
        %v286 = vpop.permute.xlu0 %285
        %287 = vrot.lane.b32.xlu0 %v208, 126
        %v288 = vpop.permute.xlu0 %287
        %289 = vrot.lane.b32.xlu0 %v209, 126
        %v290 = vpop.permute.xlu0 %289
        %291 = vrot.lane.b32.xlu0 %v210, 126
        %v292 = vpop.permute.xlu0 %291
        %293 = vrot.lane.b32.xlu0 %v211, 126
        %v294 = vpop.permute.xlu0 %293
        %295 = vrot.lane.b32.xlu0 %v212, 126
        %v296 = vpop.permute.xlu0 %295
        %v309 = vmax.f32 %v261, %v274
        %v310 = vmax.f32 %v262, %v276
        %v311 = vmax.f32 %v263, %v278
        %v312 = vmax.f32 %v264, %v280
        %v313 = vmax.f32 %v265, %v282
        %v314 = vmax.f32 %v266, %v284
        %v315 = vmax.f32 %v267, %v286
        %v316 = vmax.f32 %v268, %v288
        %v317 = vmax.f32 %v269, %v290
        %v318 = vmax.f32 %v270, %v292
        %v319 = vmax.f32 %v271, %v294
        %v320 = vmax.f32 %v272, %v296
        %vm329 = vcmask 1046528
        %v330 = vrot.slane %v309, 1
        %v331 = vrot.slane %v310, 1
        %v332 = vsel %vm329, %v330, %v331
        %v333 = vrot.slane %v312, 1
        %v334 = vrot.slane %v313, 1
        %v335 = vsel %vm329, %v333, %v334
        %v336 = vrot.slane %v315, 1
        %v337 = vrot.slane %v316, 1
        %v338 = vsel %vm329, %v336, %v337
        %v339 = vrot.slane %v318, 1
        %v340 = vrot.slane %v319, 1
        %v341 = vsel %vm329, %v339, %v340
        %v350 = vmax.f32 %v309, %v332
        %v351 = vmax.f32 %v310, %v331
        %v352 = vmax.f32 %v312, %v335
        %v353 = vmax.f32 %v313, %v334
        %v354 = vmax.f32 %v315, %v338
        %v355 = vmax.f32 %v316, %v337
        %v356 = vmax.f32 %v318, %v341
        %v357 = vmax.f32 %v319, %v340
        %vm362 = vcmask 1045504
        %v363 = vrot.slane %v309, 2
        %v364 = vrot.slane %v310, 2
        %v365 = vsel %vm362, %v363, %v364
        %v366 = vrot.slane %v311, 2
        %v367 = vsel %vm362, %v364, %v366
        %v368 = vrot.slane %v312, 2
        %v369 = vrot.slane %v313, 2
        %v370 = vsel %vm362, %v368, %v369
        %v371 = vrot.slane %v314, 2
        %v372 = vsel %vm362, %v369, %v371
        %v373 = vrot.slane %v315, 2
        %v374 = vrot.slane %v316, 2
        %v375 = vsel %vm362, %v373, %v374
        %v376 = vrot.slane %v317, 2
        %v377 = vsel %vm362, %v374, %v376
        %v378 = vrot.slane %v318, 2
        %v379 = vrot.slane %v319, 2
        %v380 = vsel %vm362, %v378, %v379
        %v381 = vrot.slane %v320, 2
        %v382 = vsel %vm362, %v379, %v381
        %v391 = vmax.f32 %v350, %v365
        %v392 = vmax.f32 %v351, %v367
        %v393 = vmax.f32 %v352, %v370
        %v394 = vmax.f32 %v353, %v372
        %v395 = vmax.f32 %v354, %v375
        %v396 = vmax.f32 %v355, %v377
        %v397 = vmax.f32 %v356, %v380
        %v398 = vmax.f32 %v357, %v382
        %v399 = vlaneseq
        %v400 = vshrl.u32 %v399, 7
        %v401 = vadd.s32 %v400, 8
        %v402 = vlaneseq
        %v403 = vand.u32 %v402, 127
        %v404 = vmul.u32 %v403, 2
        %vm405 = vcmp.eq.s32.totalorder %v400, %v404
        %vm406 = vcmp.eq.s32.totalorder %v401, %v404
        %v407 = vsel %vm405, 1, 0
        %v408 = vsel %vm406, 1, 0
        %v409 = vcvt.s32.f32 %v407
        %v410 = vcvt.s32.f32 %v408
        %vm411 = vcmask 121856
        %v413 = vsel %vm411, %v391, 0
        %v416 = vsel %vm411, %v392, 0
        %v419 = vsel %vm329, %v410, 0
        %421 = vmatprep.subr.mxu0 0.0
        %422 = vmatpush1.msra.mxu0 0.0
        %423 = vmatprep.subr.mxu0 0.0
        %424 = vmatpush1.msra.mxu0 0.0
        %425 = vmatprep.subr.mxu0 0.0
        %426 = vmatpush1.msra.mxu0 0.0
        %427 = vmatprep.subr.mxu0 0.0
        %428 = vmatpush1.msra.mxu0 0.0
        %429 = vmatprep.subr.mxu0 0.0
        %430 = vmatpush1.msra.mxu0 0.0
        %431 = vmatprep.subr.mxu0 0.0
        %432 = vmatpush1.msra.mxu0 0.0
        %433 = vmatprep.subr.mxu0 0.0
        %434 = vmatpush1.msra.mxu0 0.0
        %435 = vmatprep.subr.mxu0 0.0
        %436 = vmatpush1.msra.mxu0 0.0
        %437 = vmatprep.subr.mxu0 0.0
        %438 = vmatpush1.msra.mxu0 0.0
        %439 = vmatprep.subr.mxu0 0.0
        %440 = vmatpush1.msra.mxu0 0.0
        %441 = vmatprep.subr.mxu0 0.0
        %442 = vmatpush1.msra.mxu0 0.0
        %443 = vmatprep.subr.mxu0 0.0
        %444 = vmatpush1.msra.mxu0 0.0
        %445 = vmatprep.subr.mxu0 0.0
        %446 = vmatpush1.msra.mxu0 0.0
        %447 = vmatprep.subr.mxu0 0.0
        %448 = vmatpush1.msra.mxu0 0.0
        %449 = vmatprep.subr.mxu0 0.0
        %v450 = vand.u32 %v419, 4294901760
        %451 = vmatpush1.msra.mxu0 %v450
        %452 = vmatprep.subr.mxu0 0.0
        %v453 = vand.u32 %v409, 4294901760
        %454 = vmatpush1.msra.mxu0 %v453
        %455 = vmatprep.subr.mxu0 0.0
        %456 = vmatpush2.msra.mxu0 0.0
        %457 = vmatprep.subr.mxu0 0.0
        %458 = vmatpush2.msra.mxu0 0.0
        %459 = vmatprep.subr.mxu0 0.0
        %460 = vmatpush2.msra.mxu0 0.0
        %461 = vmatprep.subr.mxu0 0.0
        %462 = vmatpush2.msra.mxu0 0.0
        %463 = vmatprep.subr.mxu0 0.0
        %464 = vmatpush2.msra.mxu0 0.0
        %465 = vmatprep.subr.mxu0 0.0
        %466 = vmatpush2.msra.mxu0 0.0
        %467 = vmatprep.subr.mxu0 0.0
        %468 = vmatpush2.msra.mxu0 0.0
        %469 = vmatprep.subr.mxu0 0.0
        %470 = vmatpush2.msra.mxu0 0.0
        %471 = vmatprep.subr.mxu0 0.0
        %472 = vmatpush2.msra.mxu0 0.0
        %473 = vmatprep.subr.mxu0 0.0
        %474 = vmatpush2.msra.mxu0 0.0
        %475 = vmatprep.subr.mxu0 0.0
        %476 = vmatpush2.msra.mxu0 0.0
        %477 = vmatprep.subr.mxu0 0.0
        %478 = vmatpush2.msra.mxu0 0.0
        %479 = vmatprep.subr.mxu0 0.0
        %480 = vmatpush2.msra.mxu0 0.0
        %481 = vmatprep.subr.mxu0 0.0
        %482 = vmatpush2.msra.mxu0 0.0
        %483 = vmatprep.subr.mxu0 0.0
        %484 = vmatpush2.msra.mxu0 0.0
        %485 = vmatprep.subr.mxu0 0.0
        %486 = vmatpush2.msra.mxu0 0.0
        %487 = vmatprep.mubr.f32.mxu0 0.0
        %v488 = vand.u32 %v413, 4294901760
        %v489 = vsub.f32 %v413, %v488
        %v490 = vand.u32 %v489, 4294901760
        %v491 = vsub.f32 %v489, %v490
        %v492 = vand.u32 %v491, 4294901760
        %493 = vmatmul.mubr.f32.gmra.mxu0 %v492
        %v494 = vpop.f32.mrf.mxu0
        %v495 = vadd.f32 0.0, %v494
        %v496 = vpop.f32.mrf.mxu0
        %497 = vmatprep.mubr.f32.mxu0 0.0
        %v498 = vand.u32 %v416, 4294901760
        %v499 = vsub.f32 %v416, %v498
        %v500 = vand.u32 %v499, 4294901760
        %v501 = vsub.f32 %v499, %v500
        %v502 = vand.u32 %v501, 4294901760
        %503 = vmatmul.mubr.f32.gmra.mxu0 %v502
        %v504 = vpop.f32.mrf.mxu0
        %v505 = vadd.f32 0.0, %v504
        %v506 = vpop.f32.mrf.mxu0
        %507 = vdwg.mxu0
        %508 = vmatprep.subr.mxu0 0.0
        %509 = vmatpush1.msra.mxu0 0.0
        %510 = vmatprep.subr.mxu0 0.0
        %511 = vmatpush1.msra.mxu0 0.0
        %512 = vmatprep.subr.mxu0 0.0
        %513 = vmatpush1.msra.mxu0 0.0
        %514 = vmatprep.subr.mxu0 0.0
        %515 = vmatpush1.msra.mxu0 0.0
        %516 = vmatprep.subr.mxu0 0.0
        %517 = vmatpush1.msra.mxu0 0.0
        %518 = vmatprep.subr.mxu0 0.0
        %519 = vmatpush1.msra.mxu0 0.0
        %520 = vmatprep.subr.mxu0 0.0
        %521 = vmatpush1.msra.mxu0 0.0
        %522 = vmatprep.subr.mxu0 0.0
        %523 = vmatpush1.msra.mxu0 0.0
        %524 = vmatprep.subr.mxu0 0.0
        %525 = vmatpush1.msra.mxu0 0.0
        %526 = vmatprep.subr.mxu0 0.0
        %527 = vmatpush1.msra.mxu0 0.0
        %528 = vmatprep.subr.mxu0 0.0
        %529 = vmatpush1.msra.mxu0 0.0
        %530 = vmatprep.subr.mxu0 0.0
        %531 = vmatpush1.msra.mxu0 0.0
        %532 = vmatprep.subr.mxu0 0.0
        %533 = vmatpush1.msra.mxu0 0.0
        %534 = vmatprep.subr.mxu0 0.0
        %535 = vmatpush1.msra.mxu0 0.0
        %536 = vmatprep.subr.mxu0 0.0
        %v537 = vand.u32 %v419, 4294901760
        %v538 = vsub.f32 %v419, %v537
        %v539 = vand.u32 %v538, 4294901760
        %v540 = vsub.f32 %v538, %v539
        %v541 = vand.u32 %v540, 4294901760
        %542 = vmatpush1.msra.mxu0 %v541
        %543 = vmatprep.subr.mxu0 0.0
        %v544 = vand.u32 %v409, 4294901760
        %v545 = vsub.f32 %v409, %v544
        %v546 = vand.u32 %v545, 4294901760
        %v547 = vsub.f32 %v545, %v546
        %v548 = vand.u32 %v547, 4294901760
        %549 = vmatpush1.msra.mxu0 %v548
        %550 = vmatprep.subr.mxu0 0.0
        %551 = vmatpush2.msra.mxu0 0.0
        %552 = vmatprep.subr.mxu0 0.0
        %553 = vmatpush2.msra.mxu0 0.0
        %554 = vmatprep.subr.mxu0 0.0
        %555 = vmatpush2.msra.mxu0 0.0
        %556 = vmatprep.subr.mxu0 0.0
        %557 = vmatpush2.msra.mxu0 0.0
        %558 = vmatprep.subr.mxu0 0.0
        %559 = vmatpush2.msra.mxu0 0.0
        %560 = vmatprep.subr.mxu0 0.0
        %561 = vmatpush2.msra.mxu0 0.0
        %562 = vmatprep.subr.mxu0 0.0
        %563 = vmatpush2.msra.mxu0 0.0
        %564 = vmatprep.subr.mxu0 0.0
        %565 = vmatpush2.msra.mxu0 0.0
        %566 = vmatprep.subr.mxu0 0.0
        %567 = vmatpush2.msra.mxu0 0.0
        %568 = vmatprep.subr.mxu0 0.0
        %569 = vmatpush2.msra.mxu0 0.0
        %570 = vmatprep.subr.mxu0 0.0
        %571 = vmatpush2.msra.mxu0 0.0
        %572 = vmatprep.subr.mxu0 0.0
        %573 = vmatpush2.msra.mxu0 0.0
        %574 = vmatprep.subr.mxu0 0.0
        %575 = vmatpush2.msra.mxu0 0.0
        %576 = vmatprep.subr.mxu0 0.0
        %577 = vmatpush2.msra.mxu0 0.0
        %578 = vmatprep.subr.mxu0 0.0
        %579 = vmatpush2.msra.mxu0 0.0
        %580 = vmatprep.subr.mxu0 0.0
        %581 = vmatpush2.msra.mxu0 0.0
        %582 = vmatprep.mubr.f32.mxu0 0.0
        %v583 = vand.u32 %v413, 4294901760
        %584 = vmatmul.mubr.f32.gmra.mxu0 %v583
        %v585 = vpop.f32.mrf.mxu0
        %v586 = vadd.f32 %v495, %v585
        %v587 = vpop.f32.mrf.mxu0
        %588 = vmatprep.mubr.f32.mxu0 0.0
        %v589 = vand.u32 %v416, 4294901760
        %590 = vmatmul.mubr.f32.gmra.mxu0 %v589
        %v591 = vpop.f32.mrf.mxu0
        %v592 = vadd.f32 %v505, %v591
        %v593 = vpop.f32.mrf.mxu0
        %594 = vdwg.mxu0
        %595 = vmatprep.subr.mxu0 0.0
        %596 = vmatpush1.msra.mxu0 0.0
        %597 = vmatprep.subr.mxu0 0.0
        %598 = vmatpush1.msra.mxu0 0.0
        %599 = vmatprep.subr.mxu0 0.0
        %600 = vmatpush1.msra.mxu0 0.0
        %601 = vmatprep.subr.mxu0 0.0
        %602 = vmatpush1.msra.mxu0 0.0
        %603 = vmatprep.subr.mxu0 0.0
        %604 = vmatpush1.msra.mxu0 0.0
        %605 = vmatprep.subr.mxu0 0.0
        %606 = vmatpush1.msra.mxu0 0.0
        %607 = vmatprep.subr.mxu0 0.0
        %608 = vmatpush1.msra.mxu0 0.0
        %609 = vmatprep.subr.mxu0 0.0
        %610 = vmatpush1.msra.mxu0 0.0
        %611 = vmatprep.subr.mxu0 0.0
        %612 = vmatpush1.msra.mxu0 0.0
        %613 = vmatprep.subr.mxu0 0.0
        %614 = vmatpush1.msra.mxu0 0.0
        %615 = vmatprep.subr.mxu0 0.0
        %616 = vmatpush1.msra.mxu0 0.0
        %617 = vmatprep.subr.mxu0 0.0
        %618 = vmatpush1.msra.mxu0 0.0
        %619 = vmatprep.subr.mxu0 0.0
        %620 = vmatpush1.msra.mxu0 0.0
        %621 = vmatprep.subr.mxu0 0.0
        %622 = vmatpush1.msra.mxu0 0.0
        %623 = vmatprep.subr.mxu0 0.0
        %v624 = vand.u32 %v419, 4294901760
        %v625 = vsub.f32 %v419, %v624
        %626 = vmatpush1.msra.mxu0 %v625
        %627 = vmatprep.subr.mxu0 0.0
        %v628 = vand.u32 %v409, 4294901760
        %v629 = vsub.f32 %v409, %v628
        %630 = vmatpush1.msra.mxu0 %v629
        %631 = vmatprep.subr.mxu0 0.0
        %632 = vmatpush2.msra.mxu0 0.0
        %633 = vmatprep.subr.mxu0 0.0
        %634 = vmatpush2.msra.mxu0 0.0
        %635 = vmatprep.subr.mxu0 0.0
        %636 = vmatpush2.msra.mxu0 0.0
        %637 = vmatprep.subr.mxu0 0.0
        %638 = vmatpush2.msra.mxu0 0.0
        %639 = vmatprep.subr.mxu0 0.0
        %640 = vmatpush2.msra.mxu0 0.0
        %641 = vmatprep.subr.mxu0 0.0
        %642 = vmatpush2.msra.mxu0 0.0
        %643 = vmatprep.subr.mxu0 0.0
        %644 = vmatpush2.msra.mxu0 0.0
        %645 = vmatprep.subr.mxu0 0.0
        %646 = vmatpush2.msra.mxu0 0.0
        %647 = vmatprep.subr.mxu0 0.0
        %648 = vmatpush2.msra.mxu0 0.0
        %649 = vmatprep.subr.mxu0 0.0
        %650 = vmatpush2.msra.mxu0 0.0
        %651 = vmatprep.subr.mxu0 0.0
        %652 = vmatpush2.msra.mxu0 0.0
        %653 = vmatprep.subr.mxu0 0.0
        %654 = vmatpush2.msra.mxu0 0.0
        %655 = vmatprep.subr.mxu0 0.0
        %656 = vmatpush2.msra.mxu0 0.0
        %657 = vmatprep.subr.mxu0 0.0
        %658 = vmatpush2.msra.mxu0 0.0
        %659 = vmatprep.subr.mxu0 0.0
        %660 = vmatpush2.msra.mxu0 0.0
        %661 = vmatprep.subr.mxu0 0.0
        %662 = vmatpush2.msra.mxu0 0.0
        %663 = vmatprep.mubr.f32.mxu0 0.0
        %v664 = vand.u32 %v413, 4294901760
        %v665 = vsub.f32 %v413, %v664
        %666 = vmatmul.mubr.f32.gmra.mxu0 %v665
        %v667 = vpop.f32.mrf.mxu0
        %v668 = vadd.f32 %v586, %v667
        %v669 = vpop.f32.mrf.mxu0
        %670 = vmatprep.mubr.f32.mxu0 0.0
        %v671 = vand.u32 %v416, 4294901760
        %v672 = vsub.f32 %v416, %v671
        %673 = vmatmul.mubr.f32.gmra.mxu0 %v672
        %v674 = vpop.f32.mrf.mxu0
        %v675 = vadd.f32 %v592, %v674
        %v676 = vpop.f32.mrf.mxu0
        %677 = vdwg.mxu0
        %678 = vmatprep.subr.mxu0 0.0
        %679 = vmatpush1.msra.mxu0 0.0
        %680 = vmatprep.subr.mxu0 0.0
        %681 = vmatpush1.msra.mxu0 0.0
        %682 = vmatprep.subr.mxu0 0.0
        %683 = vmatpush1.msra.mxu0 0.0
        %684 = vmatprep.subr.mxu0 0.0
        %685 = vmatpush1.msra.mxu0 0.0
        %686 = vmatprep.subr.mxu0 0.0
        %687 = vmatpush1.msra.mxu0 0.0
        %688 = vmatprep.subr.mxu0 0.0
        %689 = vmatpush1.msra.mxu0 0.0
        %690 = vmatprep.subr.mxu0 0.0
        %691 = vmatpush1.msra.mxu0 0.0
        %692 = vmatprep.subr.mxu0 0.0
        %693 = vmatpush1.msra.mxu0 0.0
        %694 = vmatprep.subr.mxu0 0.0
        %695 = vmatpush1.msra.mxu0 0.0
        %696 = vmatprep.subr.mxu0 0.0
        %697 = vmatpush1.msra.mxu0 0.0
        %698 = vmatprep.subr.mxu0 0.0
        %699 = vmatpush1.msra.mxu0 0.0
        %700 = vmatprep.subr.mxu0 0.0
        %701 = vmatpush1.msra.mxu0 0.0
        %702 = vmatprep.subr.mxu0 0.0
        %703 = vmatpush1.msra.mxu0 0.0
        %704 = vmatprep.subr.mxu0 0.0
        %705 = vmatpush1.msra.mxu0 0.0
        %706 = vmatprep.subr.mxu0 0.0
        %v707 = vand.u32 %v419, 4294901760
        %708 = vmatpush1.msra.mxu0 %v707
        %709 = vmatprep.subr.mxu0 0.0
        %v710 = vand.u32 %v409, 4294901760
        %711 = vmatpush1.msra.mxu0 %v710
        %712 = vmatprep.subr.mxu0 0.0
        %713 = vmatpush2.msra.mxu0 0.0
        %714 = vmatprep.subr.mxu0 0.0
        %715 = vmatpush2.msra.mxu0 0.0
        %716 = vmatprep.subr.mxu0 0.0
        %717 = vmatpush2.msra.mxu0 0.0
        %718 = vmatprep.subr.mxu0 0.0
        %719 = vmatpush2.msra.mxu0 0.0
        %720 = vmatprep.subr.mxu0 0.0
        %721 = vmatpush2.msra.mxu0 0.0
        %722 = vmatprep.subr.mxu0 0.0
        %723 = vmatpush2.msra.mxu0 0.0
        %724 = vmatprep.subr.mxu0 0.0
        %725 = vmatpush2.msra.mxu0 0.0
        %726 = vmatprep.subr.mxu0 0.0
        %727 = vmatpush2.msra.mxu0 0.0
        %728 = vmatprep.subr.mxu0 0.0
        %729 = vmatpush2.msra.mxu0 0.0
        %730 = vmatprep.subr.mxu0 0.0
        %731 = vmatpush2.msra.mxu0 0.0
        %732 = vmatprep.subr.mxu0 0.0
        %733 = vmatpush2.msra.mxu0 0.0
        %734 = vmatprep.subr.mxu0 0.0
        %735 = vmatpush2.msra.mxu0 0.0
        %736 = vmatprep.subr.mxu0 0.0
        %737 = vmatpush2.msra.mxu0 0.0
        %738 = vmatprep.subr.mxu0 0.0
        %739 = vmatpush2.msra.mxu0 0.0
        %740 = vmatprep.subr.mxu0 0.0
        %741 = vmatpush2.msra.mxu0 0.0
        %742 = vmatprep.subr.mxu0 0.0
        %743 = vmatpush2.msra.mxu0 0.0
        %744 = vmatprep.mubr.f32.mxu0 0.0
        %v745 = vand.u32 %v413, 4294901760
        %v746 = vsub.f32 %v413, %v745
        %v747 = vand.u32 %v746, 4294901760
        %748 = vmatmul.mubr.f32.gmra.mxu0 %v747
        %v749 = vpop.f32.mrf.mxu0
        %v750 = vadd.f32 %v668, %v749
        %v751 = vpop.f32.mrf.mxu0
        %752 = vmatprep.mubr.f32.mxu0 0.0
        %v753 = vand.u32 %v416, 4294901760
        %v754 = vsub.f32 %v416, %v753
        %v755 = vand.u32 %v754, 4294901760
        %756 = vmatmul.mubr.f32.gmra.mxu0 %v755
        %v757 = vpop.f32.mrf.mxu0
        %v758 = vadd.f32 %v675, %v757
        %v759 = vpop.f32.mrf.mxu0
        %760 = vdwg.mxu0
        %761 = vmatprep.subr.mxu0 0.0
        %762 = vmatpush1.msra.mxu0 0.0
        %763 = vmatprep.subr.mxu0 0.0
        %764 = vmatpush1.msra.mxu0 0.0
        %765 = vmatprep.subr.mxu0 0.0
        %766 = vmatpush1.msra.mxu0 0.0
        %767 = vmatprep.subr.mxu0 0.0
        %768 = vmatpush1.msra.mxu0 0.0
        %769 = vmatprep.subr.mxu0 0.0
        %770 = vmatpush1.msra.mxu0 0.0
        %771 = vmatprep.subr.mxu0 0.0
        %772 = vmatpush1.msra.mxu0 0.0
        %773 = vmatprep.subr.mxu0 0.0
        %774 = vmatpush1.msra.mxu0 0.0
        %775 = vmatprep.subr.mxu0 0.0
        %776 = vmatpush1.msra.mxu0 0.0
        %777 = vmatprep.subr.mxu0 0.0
        %778 = vmatpush1.msra.mxu0 0.0
        %779 = vmatprep.subr.mxu0 0.0
        %780 = vmatpush1.msra.mxu0 0.0
        %781 = vmatprep.subr.mxu0 0.0
        %782 = vmatpush1.msra.mxu0 0.0
        %783 = vmatprep.subr.mxu0 0.0
        %784 = vmatpush1.msra.mxu0 0.0
        %785 = vmatprep.subr.mxu0 0.0
        %786 = vmatpush1.msra.mxu0 0.0
        %787 = vmatprep.subr.mxu0 0.0
        %788 = vmatpush1.msra.mxu0 0.0
        %789 = vmatprep.subr.mxu0 0.0
        %v790 = vand.u32 %v419, 4294901760
        %v791 = vsub.f32 %v419, %v790
        %v792 = vand.u32 %v791, 4294901760
        %793 = vmatpush1.msra.mxu0 %v792
        %794 = vmatprep.subr.mxu0 0.0
        %v795 = vand.u32 %v409, 4294901760
        %v796 = vsub.f32 %v409, %v795
        %v797 = vand.u32 %v796, 4294901760
        %798 = vmatpush1.msra.mxu0 %v797
        %799 = vmatprep.subr.mxu0 0.0
        %800 = vmatpush2.msra.mxu0 0.0
        %801 = vmatprep.subr.mxu0 0.0
        %802 = vmatpush2.msra.mxu0 0.0
        %803 = vmatprep.subr.mxu0 0.0
        %804 = vmatpush2.msra.mxu0 0.0
        %805 = vmatprep.subr.mxu0 0.0
        %806 = vmatpush2.msra.mxu0 0.0
        %807 = vmatprep.subr.mxu0 0.0
        %808 = vmatpush2.msra.mxu0 0.0
        %809 = vmatprep.subr.mxu0 0.0
        %810 = vmatpush2.msra.mxu0 0.0
        %811 = vmatprep.subr.mxu0 0.0
        %812 = vmatpush2.msra.mxu0 0.0
        %813 = vmatprep.subr.mxu0 0.0
        %814 = vmatpush2.msra.mxu0 0.0
        %815 = vmatprep.subr.mxu0 0.0
        %816 = vmatpush2.msra.mxu0 0.0
        %817 = vmatprep.subr.mxu0 0.0
        %818 = vmatpush2.msra.mxu0 0.0
        %819 = vmatprep.subr.mxu0 0.0
        %820 = vmatpush2.msra.mxu0 0.0
        %821 = vmatprep.subr.mxu0 0.0
        %822 = vmatpush2.msra.mxu0 0.0
        %823 = vmatprep.subr.mxu0 0.0
        %824 = vmatpush2.msra.mxu0 0.0
        %825 = vmatprep.subr.mxu0 0.0
        %826 = vmatpush2.msra.mxu0 0.0
        %827 = vmatprep.subr.mxu0 0.0
        %828 = vmatpush2.msra.mxu0 0.0
        %829 = vmatprep.subr.mxu0 0.0
        %830 = vmatpush2.msra.mxu0 0.0
        %831 = vmatprep.mubr.f32.mxu0 0.0
        %v832 = vand.u32 %v413, 4294901760
        %833 = vmatmul.mubr.f32.gmra.mxu0 %v832
        %v834 = vpop.f32.mrf.mxu0
        %v835 = vadd.f32 %v750, %v834
        %v836 = vpop.f32.mrf.mxu0
        %837 = vmatprep.mubr.f32.mxu0 0.0
        %v838 = vand.u32 %v416, 4294901760
        %839 = vmatmul.mubr.f32.gmra.mxu0 %v838
        %v840 = vpop.f32.mrf.mxu0
        %v841 = vadd.f32 %v758, %v840
        %v842 = vpop.f32.mrf.mxu0
        %843 = vdwg.mxu0
        %844 = vmatprep.subr.mxu0 0.0
        %845 = vmatpush1.msra.mxu0 0.0
        %846 = vmatprep.subr.mxu0 0.0
        %847 = vmatpush1.msra.mxu0 0.0
        %848 = vmatprep.subr.mxu0 0.0
        %849 = vmatpush1.msra.mxu0 0.0
        %850 = vmatprep.subr.mxu0 0.0
        %851 = vmatpush1.msra.mxu0 0.0
        %852 = vmatprep.subr.mxu0 0.0
        %853 = vmatpush1.msra.mxu0 0.0
        %854 = vmatprep.subr.mxu0 0.0
        %855 = vmatpush1.msra.mxu0 0.0
        %856 = vmatprep.subr.mxu0 0.0
        %857 = vmatpush1.msra.mxu0 0.0
        %858 = vmatprep.subr.mxu0 0.0
        %859 = vmatpush1.msra.mxu0 0.0
        %860 = vmatprep.subr.mxu0 0.0
        %861 = vmatpush1.msra.mxu0 0.0
        %862 = vmatprep.subr.mxu0 0.0
        %863 = vmatpush1.msra.mxu0 0.0
        %864 = vmatprep.subr.mxu0 0.0
        %865 = vmatpush1.msra.mxu0 0.0
        %866 = vmatprep.subr.mxu0 0.0
        %867 = vmatpush1.msra.mxu0 0.0
        %868 = vmatprep.subr.mxu0 0.0
        %869 = vmatpush1.msra.mxu0 0.0
        %870 = vmatprep.subr.mxu0 0.0
        %871 = vmatpush1.msra.mxu0 0.0
        %872 = vmatprep.subr.mxu0 0.0
        %v873 = vand.u32 %v419, 4294901760
        %874 = vmatpush1.msra.mxu0 %v873
        %875 = vmatprep.subr.mxu0 0.0
        %v876 = vand.u32 %v409, 4294901760
        %877 = vmatpush1.msra.mxu0 %v876
        %878 = vmatprep.subr.mxu0 0.0
        %879 = vmatpush2.msra.mxu0 0.0
        %880 = vmatprep.subr.mxu0 0.0
        %881 = vmatpush2.msra.mxu0 0.0
        %882 = vmatprep.subr.mxu0 0.0
        %883 = vmatpush2.msra.mxu0 0.0
        %884 = vmatprep.subr.mxu0 0.0
        %885 = vmatpush2.msra.mxu0 0.0
        %886 = vmatprep.subr.mxu0 0.0
        %887 = vmatpush2.msra.mxu0 0.0
        %888 = vmatprep.subr.mxu0 0.0
        %889 = vmatpush2.msra.mxu0 0.0
        %890 = vmatprep.subr.mxu0 0.0
        %891 = vmatpush2.msra.mxu0 0.0
        %892 = vmatprep.subr.mxu0 0.0
        %893 = vmatpush2.msra.mxu0 0.0
        %894 = vmatprep.subr.mxu0 0.0
        %895 = vmatpush2.msra.mxu0 0.0
        %896 = vmatprep.subr.mxu0 0.0
        %897 = vmatpush2.msra.mxu0 0.0
        %898 = vmatprep.subr.mxu0 0.0
        %899 = vmatpush2.msra.mxu0 0.0
        %900 = vmatprep.subr.mxu0 0.0
        %901 = vmatpush2.msra.mxu0 0.0
        %902 = vmatprep.subr.mxu0 0.0
        %903 = vmatpush2.msra.mxu0 0.0
        %904 = vmatprep.subr.mxu0 0.0
        %905 = vmatpush2.msra.mxu0 0.0
        %906 = vmatprep.subr.mxu0 0.0
        %907 = vmatpush2.msra.mxu0 0.0
        %908 = vmatprep.subr.mxu0 0.0
        %909 = vmatpush2.msra.mxu0 0.0
        %910 = vmatprep.mubr.f32.mxu0 0.0
        %v911 = vand.u32 %v413, 4294901760
        %912 = vmatmul.mubr.f32.gmra.mxu0 %v911
        %v913 = vpop.f32.mrf.mxu0
        %v914 = vadd.f32 %v835, %v913
        %v915 = vpop.f32.mrf.mxu0
        %916 = vmatprep.mubr.f32.mxu0 0.0
        %v917 = vand.u32 %v416, 4294901760
        %918 = vmatmul.mubr.f32.gmra.mxu0 %v917
        %v919 = vpop.f32.mrf.mxu0
        %v920 = vadd.f32 %v841, %v919
        %v921 = vpop.f32.mrf.mxu0
        %922 = vdwg.mxu0
        %v924 = vsel %vm411, %v393, 0
        %v927 = vsel %vm411, %v394, 0
        %929 = vmatprep.subr.mxu0 0.0
        %930 = vmatpush1.msra.mxu0 0.0
        %931 = vmatprep.subr.mxu0 0.0
        %932 = vmatpush1.msra.mxu0 0.0
        %933 = vmatprep.subr.mxu0 0.0
        %934 = vmatpush1.msra.mxu0 0.0
        %935 = vmatprep.subr.mxu0 0.0
        %936 = vmatpush1.msra.mxu0 0.0
        %937 = vmatprep.subr.mxu0 0.0
        %938 = vmatpush1.msra.mxu0 0.0
        %939 = vmatprep.subr.mxu0 0.0
        %940 = vmatpush1.msra.mxu0 0.0
        %941 = vmatprep.subr.mxu0 0.0
        %942 = vmatpush1.msra.mxu0 0.0
        %943 = vmatprep.subr.mxu0 0.0
        %944 = vmatpush1.msra.mxu0 0.0
        %945 = vmatprep.subr.mxu0 0.0
        %946 = vmatpush1.msra.mxu0 0.0
        %947 = vmatprep.subr.mxu0 0.0
        %948 = vmatpush1.msra.mxu0 0.0
        %949 = vmatprep.subr.mxu0 0.0
        %950 = vmatpush1.msra.mxu0 0.0
        %951 = vmatprep.subr.mxu0 0.0
        %952 = vmatpush1.msra.mxu0 0.0
        %953 = vmatprep.subr.mxu0 0.0
        %954 = vmatpush1.msra.mxu0 0.0
        %955 = vmatprep.subr.mxu0 0.0
        %956 = vmatpush1.msra.mxu0 0.0
        %957 = vmatprep.subr.mxu0 0.0
        %v958 = vand.u32 %v419, 4294901760
        %959 = vmatpush1.msra.mxu0 %v958
        %960 = vmatprep.subr.mxu0 0.0
        %v961 = vand.u32 %v409, 4294901760
        %962 = vmatpush1.msra.mxu0 %v961
        %963 = vmatprep.subr.mxu0 0.0
        %964 = vmatpush2.msra.mxu0 0.0
        %965 = vmatprep.subr.mxu0 0.0
        %966 = vmatpush2.msra.mxu0 0.0
        %967 = vmatprep.subr.mxu0 0.0
        %968 = vmatpush2.msra.mxu0 0.0
        %969 = vmatprep.subr.mxu0 0.0
        %970 = vmatpush2.msra.mxu0 0.0
        %971 = vmatprep.subr.mxu0 0.0
        %972 = vmatpush2.msra.mxu0 0.0
        %973 = vmatprep.subr.mxu0 0.0
        %974 = vmatpush2.msra.mxu0 0.0
        %975 = vmatprep.subr.mxu0 0.0
        %976 = vmatpush2.msra.mxu0 0.0
        %977 = vmatprep.subr.mxu0 0.0
        %978 = vmatpush2.msra.mxu0 0.0
        %979 = vmatprep.subr.mxu0 0.0
        %980 = vmatpush2.msra.mxu0 0.0
        %981 = vmatprep.subr.mxu0 0.0
        %982 = vmatpush2.msra.mxu0 0.0
        %983 = vmatprep.subr.mxu0 0.0
        %984 = vmatpush2.msra.mxu0 0.0
        %985 = vmatprep.subr.mxu0 0.0
        %986 = vmatpush2.msra.mxu0 0.0
        %987 = vmatprep.subr.mxu0 0.0
        %988 = vmatpush2.msra.mxu0 0.0
        %989 = vmatprep.subr.mxu0 0.0
        %990 = vmatpush2.msra.mxu0 0.0
        %991 = vmatprep.subr.mxu0 0.0
        %992 = vmatpush2.msra.mxu0 0.0
        %993 = vmatprep.subr.mxu0 0.0
        %994 = vmatpush2.msra.mxu0 0.0
        %995 = vmatprep.mubr.f32.mxu0 0.0
        %v996 = vand.u32 %v924, 4294901760
        %v997 = vsub.f32 %v924, %v996
        %v998 = vand.u32 %v997, 4294901760
        %v999 = vsub.f32 %v997, %v998
        %v1000 = vand.u32 %v999, 4294901760
        %1001 = vmatmul.mubr.f32.gmra.mxu0 %v1000
        %v1002 = vpop.f32.mrf.mxu0
        %v1003 = vadd.f32 0.0, %v1002
        %v1004 = vpop.f32.mrf.mxu0
        %1005 = vmatprep.mubr.f32.mxu0 0.0
        %v1006 = vand.u32 %v927, 4294901760
        %v1007 = vsub.f32 %v927, %v1006
        %v1008 = vand.u32 %v1007, 4294901760
        %v1009 = vsub.f32 %v1007, %v1008
        %v1010 = vand.u32 %v1009, 4294901760
        %1011 = vmatmul.mubr.f32.gmra.mxu0 %v1010
        %v1012 = vpop.f32.mrf.mxu0
        %v1013 = vadd.f32 0.0, %v1012
        %v1014 = vpop.f32.mrf.mxu0
        %1015 = vdwg.mxu0
        %1016 = vmatprep.subr.mxu0 0.0
        %1017 = vmatpush1.msra.mxu0 0.0
        %1018 = vmatprep.subr.mxu0 0.0
        %1019 = vmatpush1.msra.mxu0 0.0
        %1020 = vmatprep.subr.mxu0 0.0
        %1021 = vmatpush1.msra.mxu0 0.0
        %1022 = vmatprep.subr.mxu0 0.0
        %1023 = vmatpush1.msra.mxu0 0.0
        %1024 = vmatprep.subr.mxu0 0.0
        %1025 = vmatpush1.msra.mxu0 0.0
        %1026 = vmatprep.subr.mxu0 0.0
        %1027 = vmatpush1.msra.mxu0 0.0
        %1028 = vmatprep.subr.mxu0 0.0
        %1029 = vmatpush1.msra.mxu0 0.0
        %1030 = vmatprep.subr.mxu0 0.0
        %1031 = vmatpush1.msra.mxu0 0.0
        %1032 = vmatprep.subr.mxu0 0.0
        %1033 = vmatpush1.msra.mxu0 0.0
        %1034 = vmatprep.subr.mxu0 0.0
        %1035 = vmatpush1.msra.mxu0 0.0
        %1036 = vmatprep.subr.mxu0 0.0
        %1037 = vmatpush1.msra.mxu0 0.0
        %1038 = vmatprep.subr.mxu0 0.0
        %1039 = vmatpush1.msra.mxu0 0.0
        %1040 = vmatprep.subr.mxu0 0.0
        %1041 = vmatpush1.msra.mxu0 0.0
        %1042 = vmatprep.subr.mxu0 0.0
        %1043 = vmatpush1.msra.mxu0 0.0
        %1044 = vmatprep.subr.mxu0 0.0
        %v1045 = vand.u32 %v419, 4294901760
        %v1046 = vsub.f32 %v419, %v1045
        %v1047 = vand.u32 %v1046, 4294901760
        %v1048 = vsub.f32 %v1046, %v1047
        %v1049 = vand.u32 %v1048, 4294901760
        %1050 = vmatpush1.msra.mxu0 %v1049
        %1051 = vmatprep.subr.mxu0 0.0
        %v1052 = vand.u32 %v409, 4294901760
        %v1053 = vsub.f32 %v409, %v1052
        %v1054 = vand.u32 %v1053, 4294901760
        %v1055 = vsub.f32 %v1053, %v1054
        %v1056 = vand.u32 %v1055, 4294901760
        %1057 = vmatpush1.msra.mxu0 %v1056
        %1058 = vmatprep.subr.mxu0 0.0
        %1059 = vmatpush2.msra.mxu0 0.0
        %1060 = vmatprep.subr.mxu0 0.0
        %1061 = vmatpush2.msra.mxu0 0.0
        %1062 = vmatprep.subr.mxu0 0.0
        %1063 = vmatpush2.msra.mxu0 0.0
        %1064 = vmatprep.subr.mxu0 0.0
        %1065 = vmatpush2.msra.mxu0 0.0
        %1066 = vmatprep.subr.mxu0 0.0
        %1067 = vmatpush2.msra.mxu0 0.0
        %1068 = vmatprep.subr.mxu0 0.0
        %1069 = vmatpush2.msra.mxu0 0.0
        %1070 = vmatprep.subr.mxu0 0.0
        %1071 = vmatpush2.msra.mxu0 0.0
        %1072 = vmatprep.subr.mxu0 0.0
        %1073 = vmatpush2.msra.mxu0 0.0
        %1074 = vmatprep.subr.mxu0 0.0
        %1075 = vmatpush2.msra.mxu0 0.0
        %1076 = vmatprep.subr.mxu0 0.0
        %1077 = vmatpush2.msra.mxu0 0.0
        %1078 = vmatprep.subr.mxu0 0.0
        %1079 = vmatpush2.msra.mxu0 0.0
        %1080 = vmatprep.subr.mxu0 0.0
        %1081 = vmatpush2.msra.mxu0 0.0
        %1082 = vmatprep.subr.mxu0 0.0
        %1083 = vmatpush2.msra.mxu0 0.0
        %1084 = vmatprep.subr.mxu0 0.0
        %1085 = vmatpush2.msra.mxu0 0.0
        %1086 = vmatprep.subr.mxu0 0.0
        %1087 = vmatpush2.msra.mxu0 0.0
        %1088 = vmatprep.subr.mxu0 0.0
        %1089 = vmatpush2.msra.mxu0 0.0
        %1090 = vmatprep.mubr.f32.mxu0 0.0
        %v1091 = vand.u32 %v924, 4294901760
        %1092 = vmatmul.mubr.f32.gmra.mxu0 %v1091
        %v1093 = vpop.f32.mrf.mxu0
        %v1094 = vadd.f32 %v1003, %v1093
        %v1095 = vpop.f32.mrf.mxu0
        %1096 = vmatprep.mubr.f32.mxu0 0.0
        %v1097 = vand.u32 %v927, 4294901760
        %1098 = vmatmul.mubr.f32.gmra.mxu0 %v1097
        %v1099 = vpop.f32.mrf.mxu0
        %v1100 = vadd.f32 %v1013, %v1099
        %v1101 = vpop.f32.mrf.mxu0
        %1102 = vdwg.mxu0
        %1103 = vmatprep.subr.mxu0 0.0
        %1104 = vmatpush1.msra.mxu0 0.0
        %1105 = vmatprep.subr.mxu0 0.0
        %1106 = vmatpush1.msra.mxu0 0.0
        %1107 = vmatprep.subr.mxu0 0.0
        %1108 = vmatpush1.msra.mxu0 0.0
        %1109 = vmatprep.subr.mxu0 0.0
        %1110 = vmatpush1.msra.mxu0 0.0
        %1111 = vmatprep.subr.mxu0 0.0
        %1112 = vmatpush1.msra.mxu0 0.0
        %1113 = vmatprep.subr.mxu0 0.0
        %1114 = vmatpush1.msra.mxu0 0.0
        %1115 = vmatprep.subr.mxu0 0.0
        %1116 = vmatpush1.msra.mxu0 0.0
        %1117 = vmatprep.subr.mxu0 0.0
        %1118 = vmatpush1.msra.mxu0 0.0
        %1119 = vmatprep.subr.mxu0 0.0
        %1120 = vmatpush1.msra.mxu0 0.0
        %1121 = vmatprep.subr.mxu0 0.0
        %1122 = vmatpush1.msra.mxu0 0.0
        %1123 = vmatprep.subr.mxu0 0.0
        %1124 = vmatpush1.msra.mxu0 0.0
        %1125 = vmatprep.subr.mxu0 0.0
        %1126 = vmatpush1.msra.mxu0 0.0
        %1127 = vmatprep.subr.mxu0 0.0
        %1128 = vmatpush1.msra.mxu0 0.0
        %1129 = vmatprep.subr.mxu0 0.0
        %1130 = vmatpush1.msra.mxu0 0.0
        %1131 = vmatprep.subr.mxu0 0.0
        %v1132 = vand.u32 %v419, 4294901760
        %v1133 = vsub.f32 %v419, %v1132
        %1134 = vmatpush1.msra.mxu0 %v1133
        %1135 = vmatprep.subr.mxu0 0.0
        %v1136 = vand.u32 %v409, 4294901760
        %v1137 = vsub.f32 %v409, %v1136
        %1138 = vmatpush1.msra.mxu0 %v1137
        %1139 = vmatprep.subr.mxu0 0.0
        %1140 = vmatpush2.msra.mxu0 0.0
        %1141 = vmatprep.subr.mxu0 0.0
        %1142 = vmatpush2.msra.mxu0 0.0
        %1143 = vmatprep.subr.mxu0 0.0
        %1144 = vmatpush2.msra.mxu0 0.0
        %1145 = vmatprep.subr.mxu0 0.0
        %1146 = vmatpush2.msra.mxu0 0.0
        %1147 = vmatprep.subr.mxu0 0.0
        %1148 = vmatpush2.msra.mxu0 0.0
        %1149 = vmatprep.subr.mxu0 0.0
        %1150 = vmatpush2.msra.mxu0 0.0
        %1151 = vmatprep.subr.mxu0 0.0
        %1152 = vmatpush2.msra.mxu0 0.0
        %1153 = vmatprep.subr.mxu0 0.0
        %1154 = vmatpush2.msra.mxu0 0.0
        %1155 = vmatprep.subr.mxu0 0.0
        %1156 = vmatpush2.msra.mxu0 0.0
        %1157 = vmatprep.subr.mxu0 0.0
        %1158 = vmatpush2.msra.mxu0 0.0
        %1159 = vmatprep.subr.mxu0 0.0
        %1160 = vmatpush2.msra.mxu0 0.0
        %1161 = vmatprep.subr.mxu0 0.0
        %1162 = vmatpush2.msra.mxu0 0.0
        %1163 = vmatprep.subr.mxu0 0.0
        %1164 = vmatpush2.msra.mxu0 0.0
        %1165 = vmatprep.subr.mxu0 0.0
        %1166 = vmatpush2.msra.mxu0 0.0
        %1167 = vmatprep.subr.mxu0 0.0
        %1168 = vmatpush2.msra.mxu0 0.0
        %1169 = vmatprep.subr.mxu0 0.0
        %1170 = vmatpush2.msra.mxu0 0.0
        %1171 = vmatprep.mubr.f32.mxu0 0.0
        %v1172 = vand.u32 %v924, 4294901760
        %v1173 = vsub.f32 %v924, %v1172
        %1174 = vmatmul.mubr.f32.gmra.mxu0 %v1173
        %v1175 = vpop.f32.mrf.mxu0
        %v1176 = vadd.f32 %v1094, %v1175
        %v1177 = vpop.f32.mrf.mxu0
        %1178 = vmatprep.mubr.f32.mxu0 0.0
        %v1179 = vand.u32 %v927, 4294901760
        %v1180 = vsub.f32 %v927, %v1179
        %1181 = vmatmul.mubr.f32.gmra.mxu0 %v1180
        %v1182 = vpop.f32.mrf.mxu0
        %v1183 = vadd.f32 %v1100, %v1182
        %v1184 = vpop.f32.mrf.mxu0
        %1185 = vdwg.mxu0
        %1186 = vmatprep.subr.mxu0 0.0
        %1187 = vmatpush1.msra.mxu0 0.0
        %1188 = vmatprep.subr.mxu0 0.0
        %1189 = vmatpush1.msra.mxu0 0.0
        %1190 = vmatprep.subr.mxu0 0.0
        %1191 = vmatpush1.msra.mxu0 0.0
        %1192 = vmatprep.subr.mxu0 0.0
        %1193 = vmatpush1.msra.mxu0 0.0
        %1194 = vmatprep.subr.mxu0 0.0
        %1195 = vmatpush1.msra.mxu0 0.0
        %1196 = vmatprep.subr.mxu0 0.0
        %1197 = vmatpush1.msra.mxu0 0.0
        %1198 = vmatprep.subr.mxu0 0.0
        %1199 = vmatpush1.msra.mxu0 0.0
        %1200 = vmatprep.subr.mxu0 0.0
        %1201 = vmatpush1.msra.mxu0 0.0
        %1202 = vmatprep.subr.mxu0 0.0
        %1203 = vmatpush1.msra.mxu0 0.0
        %1204 = vmatprep.subr.mxu0 0.0
        %1205 = vmatpush1.msra.mxu0 0.0
        %1206 = vmatprep.subr.mxu0 0.0
        %1207 = vmatpush1.msra.mxu0 0.0
        %1208 = vmatprep.subr.mxu0 0.0
        %1209 = vmatpush1.msra.mxu0 0.0
        %1210 = vmatprep.subr.mxu0 0.0
        %1211 = vmatpush1.msra.mxu0 0.0
        %1212 = vmatprep.subr.mxu0 0.0
        %1213 = vmatpush1.msra.mxu0 0.0
        %1214 = vmatprep.subr.mxu0 0.0
        %v1215 = vand.u32 %v419, 4294901760
        %1216 = vmatpush1.msra.mxu0 %v1215
        %1217 = vmatprep.subr.mxu0 0.0
        %v1218 = vand.u32 %v409, 4294901760
        %1219 = vmatpush1.msra.mxu0 %v1218
        %1220 = vmatprep.subr.mxu0 0.0
        %1221 = vmatpush2.msra.mxu0 0.0
        %1222 = vmatprep.subr.mxu0 0.0
        %1223 = vmatpush2.msra.mxu0 0.0
        %1224 = vmatprep.subr.mxu0 0.0
        %1225 = vmatpush2.msra.mxu0 0.0
        %1226 = vmatprep.subr.mxu0 0.0
        %1227 = vmatpush2.msra.mxu0 0.0
        %1228 = vmatprep.subr.mxu0 0.0
        %1229 = vmatpush2.msra.mxu0 0.0
        %1230 = vmatprep.subr.mxu0 0.0
        %1231 = vmatpush2.msra.mxu0 0.0
        %1232 = vmatprep.subr.mxu0 0.0
        %1233 = vmatpush2.msra.mxu0 0.0
        %1234 = vmatprep.subr.mxu0 0.0
        %1235 = vmatpush2.msra.mxu0 0.0
        %1236 = vmatprep.subr.mxu0 0.0
        %1237 = vmatpush2.msra.mxu0 0.0
        %1238 = vmatprep.subr.mxu0 0.0
        %1239 = vmatpush2.msra.mxu0 0.0
        %1240 = vmatprep.subr.mxu0 0.0
        %1241 = vmatpush2.msra.mxu0 0.0
        %1242 = vmatprep.subr.mxu0 0.0
        %1243 = vmatpush2.msra.mxu0 0.0
        %1244 = vmatprep.subr.mxu0 0.0
        %1245 = vmatpush2.msra.mxu0 0.0
        %1246 = vmatprep.subr.mxu0 0.0
        %1247 = vmatpush2.msra.mxu0 0.0
        %1248 = vmatprep.subr.mxu0 0.0
        %1249 = vmatpush2.msra.mxu0 0.0
        %1250 = vmatprep.subr.mxu0 0.0
        %1251 = vmatpush2.msra.mxu0 0.0
        %1252 = vmatprep.mubr.f32.mxu0 0.0
        %v1253 = vand.u32 %v924, 4294901760
        %v1254 = vsub.f32 %v924, %v1253
        %v1255 = vand.u32 %v1254, 4294901760
        %1256 = vmatmul.mubr.f32.gmra.mxu0 %v1255
        %v1257 = vpop.f32.mrf.mxu0
        %v1258 = vadd.f32 %v1176, %v1257
        %v1259 = vpop.f32.mrf.mxu0
        %1260 = vmatprep.mubr.f32.mxu0 0.0
        %v1261 = vand.u32 %v927, 4294901760
        %v1262 = vsub.f32 %v927, %v1261
        %v1263 = vand.u32 %v1262, 4294901760
        %1264 = vmatmul.mubr.f32.gmra.mxu0 %v1263
        %v1265 = vpop.f32.mrf.mxu0
        %v1266 = vadd.f32 %v1183, %v1265
        %v1267 = vpop.f32.mrf.mxu0
        %1268 = vdwg.mxu0
        %1269 = vmatprep.subr.mxu0 0.0
        %1270 = vmatpush1.msra.mxu0 0.0
        %1271 = vmatprep.subr.mxu0 0.0
        %1272 = vmatpush1.msra.mxu0 0.0
        %1273 = vmatprep.subr.mxu0 0.0
        %1274 = vmatpush1.msra.mxu0 0.0
        %1275 = vmatprep.subr.mxu0 0.0
        %1276 = vmatpush1.msra.mxu0 0.0
        %1277 = vmatprep.subr.mxu0 0.0
        %1278 = vmatpush1.msra.mxu0 0.0
        %1279 = vmatprep.subr.mxu0 0.0
        %1280 = vmatpush1.msra.mxu0 0.0
        %1281 = vmatprep.subr.mxu0 0.0
        %1282 = vmatpush1.msra.mxu0 0.0
        %1283 = vmatprep.subr.mxu0 0.0
        %1284 = vmatpush1.msra.mxu0 0.0
        %1285 = vmatprep.subr.mxu0 0.0
        %1286 = vmatpush1.msra.mxu0 0.0
        %1287 = vmatprep.subr.mxu0 0.0
        %1288 = vmatpush1.msra.mxu0 0.0
        %1289 = vmatprep.subr.mxu0 0.0
        %1290 = vmatpush1.msra.mxu0 0.0
        %1291 = vmatprep.subr.mxu0 0.0
        %1292 = vmatpush1.msra.mxu0 0.0
        %1293 = vmatprep.subr.mxu0 0.0
        %1294 = vmatpush1.msra.mxu0 0.0
        %1295 = vmatprep.subr.mxu0 0.0
        %1296 = vmatpush1.msra.mxu0 0.0
        %1297 = vmatprep.subr.mxu0 0.0
        %v1298 = vand.u32 %v419, 4294901760
        %v1299 = vsub.f32 %v419, %v1298
        %v1300 = vand.u32 %v1299, 4294901760
        %1301 = vmatpush1.msra.mxu0 %v1300
        %1302 = vmatprep.subr.mxu0 0.0
        %v1303 = vand.u32 %v409, 4294901760
        %v1304 = vsub.f32 %v409, %v1303
        %v1305 = vand.u32 %v1304, 4294901760
        %1306 = vmatpush1.msra.mxu0 %v1305
        %1307 = vmatprep.subr.mxu0 0.0
        %1308 = vmatpush2.msra.mxu0 0.0
        %1309 = vmatprep.subr.mxu0 0.0
        %1310 = vmatpush2.msra.mxu0 0.0
        %1311 = vmatprep.subr.mxu0 0.0
        %1312 = vmatpush2.msra.mxu0 0.0
        %1313 = vmatprep.subr.mxu0 0.0
        %1314 = vmatpush2.msra.mxu0 0.0
        %1315 = vmatprep.subr.mxu0 0.0
        %1316 = vmatpush2.msra.mxu0 0.0
        %1317 = vmatprep.subr.mxu0 0.0
        %1318 = vmatpush2.msra.mxu0 0.0
        %1319 = vmatprep.subr.mxu0 0.0
        %1320 = vmatpush2.msra.mxu0 0.0
        %1321 = vmatprep.subr.mxu0 0.0
        %1322 = vmatpush2.msra.mxu0 0.0
        %1323 = vmatprep.subr.mxu0 0.0
        %1324 = vmatpush2.msra.mxu0 0.0
        %1325 = vmatprep.subr.mxu0 0.0
        %1326 = vmatpush2.msra.mxu0 0.0
        %1327 = vmatprep.subr.mxu0 0.0
        %1328 = vmatpush2.msra.mxu0 0.0
        %1329 = vmatprep.subr.mxu0 0.0
        %1330 = vmatpush2.msra.mxu0 0.0
        %1331 = vmatprep.subr.mxu0 0.0
        %1332 = vmatpush2.msra.mxu0 0.0
        %1333 = vmatprep.subr.mxu0 0.0
        %1334 = vmatpush2.msra.mxu0 0.0
        %1335 = vmatprep.subr.mxu0 0.0
        %1336 = vmatpush2.msra.mxu0 0.0
        %1337 = vmatprep.subr.mxu0 0.0
        %1338 = vmatpush2.msra.mxu0 0.0
        %1339 = vmatprep.mubr.f32.mxu0 0.0
        %v1340 = vand.u32 %v924, 4294901760
        %1341 = vmatmul.mubr.f32.gmra.mxu0 %v1340
        %v1342 = vpop.f32.mrf.mxu0
        %v1343 = vadd.f32 %v1258, %v1342
        %v1344 = vpop.f32.mrf.mxu0
        %1345 = vmatprep.mubr.f32.mxu0 0.0
        %v1346 = vand.u32 %v927, 4294901760
        %1347 = vmatmul.mubr.f32.gmra.mxu0 %v1346
        %v1348 = vpop.f32.mrf.mxu0
        %v1349 = vadd.f32 %v1266, %v1348
        %v1350 = vpop.f32.mrf.mxu0
        %1351 = vdwg.mxu0
        %1352 = vmatprep.subr.mxu0 0.0
        %1353 = vmatpush1.msra.mxu0 0.0
        %1354 = vmatprep.subr.mxu0 0.0
        %1355 = vmatpush1.msra.mxu0 0.0
        %1356 = vmatprep.subr.mxu0 0.0
        %1357 = vmatpush1.msra.mxu0 0.0
        %1358 = vmatprep.subr.mxu0 0.0
        %1359 = vmatpush1.msra.mxu0 0.0
        %1360 = vmatprep.subr.mxu0 0.0
        %1361 = vmatpush1.msra.mxu0 0.0
        %1362 = vmatprep.subr.mxu0 0.0
        %1363 = vmatpush1.msra.mxu0 0.0
        %1364 = vmatprep.subr.mxu0 0.0
        %1365 = vmatpush1.msra.mxu0 0.0
        %1366 = vmatprep.subr.mxu0 0.0
        %1367 = vmatpush1.msra.mxu0 0.0
        %1368 = vmatprep.subr.mxu0 0.0
        %1369 = vmatpush1.msra.mxu0 0.0
        %1370 = vmatprep.subr.mxu0 0.0
        %1371 = vmatpush1.msra.mxu0 0.0
        %1372 = vmatprep.subr.mxu0 0.0
        %1373 = vmatpush1.msra.mxu0 0.0
        %1374 = vmatprep.subr.mxu0 0.0
        %1375 = vmatpush1.msra.mxu0 0.0
        %1376 = vmatprep.subr.mxu0 0.0
        %1377 = vmatpush1.msra.mxu0 0.0
        %1378 = vmatprep.subr.mxu0 0.0
        %1379 = vmatpush1.msra.mxu0 0.0
        %1380 = vmatprep.subr.mxu0 0.0
        %v1381 = vand.u32 %v419, 4294901760
        %1382 = vmatpush1.msra.mxu0 %v1381
        %1383 = vmatprep.subr.mxu0 0.0
        %v1384 = vand.u32 %v409, 4294901760
        %1385 = vmatpush1.msra.mxu0 %v1384
        %1386 = vmatprep.subr.mxu0 0.0
        %1387 = vmatpush2.msra.mxu0 0.0
        %1388 = vmatprep.subr.mxu0 0.0
        %1389 = vmatpush2.msra.mxu0 0.0
        %1390 = vmatprep.subr.mxu0 0.0
        %1391 = vmatpush2.msra.mxu0 0.0
        %1392 = vmatprep.subr.mxu0 0.0
        %1393 = vmatpush2.msra.mxu0 0.0
        %1394 = vmatprep.subr.mxu0 0.0
        %1395 = vmatpush2.msra.mxu0 0.0
        %1396 = vmatprep.subr.mxu0 0.0
        %1397 = vmatpush2.msra.mxu0 0.0
        %1398 = vmatprep.subr.mxu0 0.0
        %1399 = vmatpush2.msra.mxu0 0.0
        %1400 = vmatprep.subr.mxu0 0.0
        %1401 = vmatpush2.msra.mxu0 0.0
        %1402 = vmatprep.subr.mxu0 0.0
        %1403 = vmatpush2.msra.mxu0 0.0
        %1404 = vmatprep.subr.mxu0 0.0
        %1405 = vmatpush2.msra.mxu0 0.0
        %1406 = vmatprep.subr.mxu0 0.0
        %1407 = vmatpush2.msra.mxu0 0.0
        %1408 = vmatprep.subr.mxu0 0.0
        %1409 = vmatpush2.msra.mxu0 0.0
        %1410 = vmatprep.subr.mxu0 0.0
        %1411 = vmatpush2.msra.mxu0 0.0
        %1412 = vmatprep.subr.mxu0 0.0
        %1413 = vmatpush2.msra.mxu0 0.0
        %1414 = vmatprep.subr.mxu0 0.0
        %1415 = vmatpush2.msra.mxu0 0.0
        %1416 = vmatprep.subr.mxu0 0.0
        %1417 = vmatpush2.msra.mxu0 0.0
        %1418 = vmatprep.mubr.f32.mxu0 0.0
        %v1419 = vand.u32 %v924, 4294901760
        %1420 = vmatmul.mubr.f32.gmra.mxu0 %v1419
        %v1421 = vpop.f32.mrf.mxu0
        %v1422 = vadd.f32 %v1343, %v1421
        %v1423 = vpop.f32.mrf.mxu0
        %1424 = vmatprep.mubr.f32.mxu0 0.0
        %v1425 = vand.u32 %v927, 4294901760
        %1426 = vmatmul.mubr.f32.gmra.mxu0 %v1425
        %v1427 = vpop.f32.mrf.mxu0
        %v1428 = vadd.f32 %v1349, %v1427
        %v1429 = vpop.f32.mrf.mxu0
        %1430 = vdwg.mxu0
        %v1432 = vsel %vm411, %v395, 0
        %v1435 = vsel %vm411, %v396, 0
        %1437 = vmatprep.subr.mxu0 0.0
        %1438 = vmatpush1.msra.mxu0 0.0
        %1439 = vmatprep.subr.mxu0 0.0
        %1440 = vmatpush1.msra.mxu0 0.0
        %1441 = vmatprep.subr.mxu0 0.0
        %1442 = vmatpush1.msra.mxu0 0.0
        %1443 = vmatprep.subr.mxu0 0.0
        %1444 = vmatpush1.msra.mxu0 0.0
        %1445 = vmatprep.subr.mxu0 0.0
        %1446 = vmatpush1.msra.mxu0 0.0
        %1447 = vmatprep.subr.mxu0 0.0
        %1448 = vmatpush1.msra.mxu0 0.0
        %1449 = vmatprep.subr.mxu0 0.0
        %1450 = vmatpush1.msra.mxu0 0.0
        %1451 = vmatprep.subr.mxu0 0.0
        %1452 = vmatpush1.msra.mxu0 0.0
        %1453 = vmatprep.subr.mxu0 0.0
        %1454 = vmatpush1.msra.mxu0 0.0
        %1455 = vmatprep.subr.mxu0 0.0
        %1456 = vmatpush1.msra.mxu0 0.0
        %1457 = vmatprep.subr.mxu0 0.0
        %1458 = vmatpush1.msra.mxu0 0.0
        %1459 = vmatprep.subr.mxu0 0.0
        %1460 = vmatpush1.msra.mxu0 0.0
        %1461 = vmatprep.subr.mxu0 0.0
        %1462 = vmatpush1.msra.mxu0 0.0
        %1463 = vmatprep.subr.mxu0 0.0
        %1464 = vmatpush1.msra.mxu0 0.0
        %1465 = vmatprep.subr.mxu0 0.0
        %v1466 = vand.u32 %v419, 4294901760
        %1467 = vmatpush1.msra.mxu0 %v1466
        %1468 = vmatprep.subr.mxu0 0.0
        %v1469 = vand.u32 %v409, 4294901760
        %1470 = vmatpush1.msra.mxu0 %v1469
        %1471 = vmatprep.subr.mxu0 0.0
        %1472 = vmatpush2.msra.mxu0 0.0
        %1473 = vmatprep.subr.mxu0 0.0
        %1474 = vmatpush2.msra.mxu0 0.0
        %1475 = vmatprep.subr.mxu0 0.0
        %1476 = vmatpush2.msra.mxu0 0.0
        %1477 = vmatprep.subr.mxu0 0.0
        %1478 = vmatpush2.msra.mxu0 0.0
        %1479 = vmatprep.subr.mxu0 0.0
        %1480 = vmatpush2.msra.mxu0 0.0
        %1481 = vmatprep.subr.mxu0 0.0
        %1482 = vmatpush2.msra.mxu0 0.0
        %1483 = vmatprep.subr.mxu0 0.0
        %1484 = vmatpush2.msra.mxu0 0.0
        %1485 = vmatprep.subr.mxu0 0.0
        %1486 = vmatpush2.msra.mxu0 0.0
        %1487 = vmatprep.subr.mxu0 0.0
        %1488 = vmatpush2.msra.mxu0 0.0
        %1489 = vmatprep.subr.mxu0 0.0
        %1490 = vmatpush2.msra.mxu0 0.0
        %1491 = vmatprep.subr.mxu0 0.0
        %1492 = vmatpush2.msra.mxu0 0.0
        %1493 = vmatprep.subr.mxu0 0.0
        %1494 = vmatpush2.msra.mxu0 0.0
        %1495 = vmatprep.subr.mxu0 0.0
        %1496 = vmatpush2.msra.mxu0 0.0
        %1497 = vmatprep.subr.mxu0 0.0
        %1498 = vmatpush2.msra.mxu0 0.0
        %1499 = vmatprep.subr.mxu0 0.0
        %1500 = vmatpush2.msra.mxu0 0.0
        %1501 = vmatprep.subr.mxu0 0.0
        %1502 = vmatpush2.msra.mxu0 0.0
        %1503 = vmatprep.mubr.f32.mxu0 0.0
        %v1504 = vand.u32 %v1432, 4294901760
        %v1505 = vsub.f32 %v1432, %v1504
        %v1506 = vand.u32 %v1505, 4294901760
        %v1507 = vsub.f32 %v1505, %v1506
        %v1508 = vand.u32 %v1507, 4294901760
        %1509 = vmatmul.mubr.f32.gmra.mxu0 %v1508
        %v1510 = vpop.f32.mrf.mxu0
        %v1511 = vadd.f32 0.0, %v1510
        %v1512 = vpop.f32.mrf.mxu0
        %1513 = vmatprep.mubr.f32.mxu0 0.0
        %v1514 = vand.u32 %v1435, 4294901760
        %v1515 = vsub.f32 %v1435, %v1514
        %v1516 = vand.u32 %v1515, 4294901760
        %v1517 = vsub.f32 %v1515, %v1516
        %v1518 = vand.u32 %v1517, 4294901760
        %1519 = vmatmul.mubr.f32.gmra.mxu0 %v1518
        %v1520 = vpop.f32.mrf.mxu0
        %v1521 = vadd.f32 0.0, %v1520
        %v1522 = vpop.f32.mrf.mxu0
        %1523 = vdwg.mxu0
        %1524 = vmatprep.subr.mxu0 0.0
        %1525 = vmatpush1.msra.mxu0 0.0
        %1526 = vmatprep.subr.mxu0 0.0
        %1527 = vmatpush1.msra.mxu0 0.0
        %1528 = vmatprep.subr.mxu0 0.0
        %1529 = vmatpush1.msra.mxu0 0.0
        %1530 = vmatprep.subr.mxu0 0.0
        %1531 = vmatpush1.msra.mxu0 0.0
        %1532 = vmatprep.subr.mxu0 0.0
        %1533 = vmatpush1.msra.mxu0 0.0
        %1534 = vmatprep.subr.mxu0 0.0
        %1535 = vmatpush1.msra.mxu0 0.0
        %1536 = vmatprep.subr.mxu0 0.0
        %1537 = vmatpush1.msra.mxu0 0.0
        %1538 = vmatprep.subr.mxu0 0.0
        %1539 = vmatpush1.msra.mxu0 0.0
        %1540 = vmatprep.subr.mxu0 0.0
        %1541 = vmatpush1.msra.mxu0 0.0
        %1542 = vmatprep.subr.mxu0 0.0
        %1543 = vmatpush1.msra.mxu0 0.0
        %1544 = vmatprep.subr.mxu0 0.0
        %1545 = vmatpush1.msra.mxu0 0.0
        %1546 = vmatprep.subr.mxu0 0.0
        %1547 = vmatpush1.msra.mxu0 0.0
        %1548 = vmatprep.subr.mxu0 0.0
        %1549 = vmatpush1.msra.mxu0 0.0
        %1550 = vmatprep.subr.mxu0 0.0
        %1551 = vmatpush1.msra.mxu0 0.0
        %1552 = vmatprep.subr.mxu0 0.0
        %v1553 = vand.u32 %v419, 4294901760
        %v1554 = vsub.f32 %v419, %v1553
        %v1555 = vand.u32 %v1554, 4294901760
        %v1556 = vsub.f32 %v1554, %v1555
        %v1557 = vand.u32 %v1556, 4294901760
        %1558 = vmatpush1.msra.mxu0 %v1557
        %1559 = vmatprep.subr.mxu0 0.0
        %v1560 = vand.u32 %v409, 4294901760
        %v1561 = vsub.f32 %v409, %v1560
        %v1562 = vand.u32 %v1561, 4294901760
        %v1563 = vsub.f32 %v1561, %v1562
        %v1564 = vand.u32 %v1563, 4294901760
        %1565 = vmatpush1.msra.mxu0 %v1564
        %1566 = vmatprep.subr.mxu0 0.0
        %1567 = vmatpush2.msra.mxu0 0.0
        %1568 = vmatprep.subr.mxu0 0.0
        %1569 = vmatpush2.msra.mxu0 0.0
        %1570 = vmatprep.subr.mxu0 0.0
        %1571 = vmatpush2.msra.mxu0 0.0
        %1572 = vmatprep.subr.mxu0 0.0
        %1573 = vmatpush2.msra.mxu0 0.0
        %1574 = vmatprep.subr.mxu0 0.0
        %1575 = vmatpush2.msra.mxu0 0.0
        %1576 = vmatprep.subr.mxu0 0.0
        %1577 = vmatpush2.msra.mxu0 0.0
        %1578 = vmatprep.subr.mxu0 0.0
        %1579 = vmatpush2.msra.mxu0 0.0
        %1580 = vmatprep.subr.mxu0 0.0
        %1581 = vmatpush2.msra.mxu0 0.0
        %1582 = vmatprep.subr.mxu0 0.0
        %1583 = vmatpush2.msra.mxu0 0.0
        %1584 = vmatprep.subr.mxu0 0.0
        %1585 = vmatpush2.msra.mxu0 0.0
        %1586 = vmatprep.subr.mxu0 0.0
        %1587 = vmatpush2.msra.mxu0 0.0
        %1588 = vmatprep.subr.mxu0 0.0
        %1589 = vmatpush2.msra.mxu0 0.0
        %1590 = vmatprep.subr.mxu0 0.0
        %1591 = vmatpush2.msra.mxu0 0.0
        %1592 = vmatprep.subr.mxu0 0.0
        %1593 = vmatpush2.msra.mxu0 0.0
        %1594 = vmatprep.subr.mxu0 0.0
        %1595 = vmatpush2.msra.mxu0 0.0
        %1596 = vmatprep.subr.mxu0 0.0
        %1597 = vmatpush2.msra.mxu0 0.0
        %1598 = vmatprep.mubr.f32.mxu0 0.0
        %v1599 = vand.u32 %v1432, 4294901760
        %1600 = vmatmul.mubr.f32.gmra.mxu0 %v1599
        %v1601 = vpop.f32.mrf.mxu0
        %v1602 = vadd.f32 %v1511, %v1601
        %v1603 = vpop.f32.mrf.mxu0
        %1604 = vmatprep.mubr.f32.mxu0 0.0
        %v1605 = vand.u32 %v1435, 4294901760
        %1606 = vmatmul.mubr.f32.gmra.mxu0 %v1605
        %v1607 = vpop.f32.mrf.mxu0
        %v1608 = vadd.f32 %v1521, %v1607
        %v1609 = vpop.f32.mrf.mxu0
        %1610 = vdwg.mxu0
        %1611 = vmatprep.subr.mxu0 0.0
        %1612 = vmatpush1.msra.mxu0 0.0
        %1613 = vmatprep.subr.mxu0 0.0
        %1614 = vmatpush1.msra.mxu0 0.0
        %1615 = vmatprep.subr.mxu0 0.0
        %1616 = vmatpush1.msra.mxu0 0.0
        %1617 = vmatprep.subr.mxu0 0.0
        %1618 = vmatpush1.msra.mxu0 0.0
        %1619 = vmatprep.subr.mxu0 0.0
        %1620 = vmatpush1.msra.mxu0 0.0
        %1621 = vmatprep.subr.mxu0 0.0
        %1622 = vmatpush1.msra.mxu0 0.0
        %1623 = vmatprep.subr.mxu0 0.0
        %1624 = vmatpush1.msra.mxu0 0.0
        %1625 = vmatprep.subr.mxu0 0.0
        %1626 = vmatpush1.msra.mxu0 0.0
        %1627 = vmatprep.subr.mxu0 0.0
        %1628 = vmatpush1.msra.mxu0 0.0
        %1629 = vmatprep.subr.mxu0 0.0
        %1630 = vmatpush1.msra.mxu0 0.0
        %1631 = vmatprep.subr.mxu0 0.0
        %1632 = vmatpush1.msra.mxu0 0.0
        %1633 = vmatprep.subr.mxu0 0.0
        %1634 = vmatpush1.msra.mxu0 0.0
        %1635 = vmatprep.subr.mxu0 0.0
        %1636 = vmatpush1.msra.mxu0 0.0
        %1637 = vmatprep.subr.mxu0 0.0
        %1638 = vmatpush1.msra.mxu0 0.0
        %1639 = vmatprep.subr.mxu0 0.0
        %v1640 = vand.u32 %v419, 4294901760
        %v1641 = vsub.f32 %v419, %v1640
        %1642 = vmatpush1.msra.mxu0 %v1641
        %1643 = vmatprep.subr.mxu0 0.0
        %v1644 = vand.u32 %v409, 4294901760
        %v1645 = vsub.f32 %v409, %v1644
        %1646 = vmatpush1.msra.mxu0 %v1645
        %1647 = vmatprep.subr.mxu0 0.0
        %1648 = vmatpush2.msra.mxu0 0.0
        %1649 = vmatprep.subr.mxu0 0.0
        %1650 = vmatpush2.msra.mxu0 0.0
        %1651 = vmatprep.subr.mxu0 0.0
        %1652 = vmatpush2.msra.mxu0 0.0
        %1653 = vmatprep.subr.mxu0 0.0
        %1654 = vmatpush2.msra.mxu0 0.0
        %1655 = vmatprep.subr.mxu0 0.0
        %1656 = vmatpush2.msra.mxu0 0.0
        %1657 = vmatprep.subr.mxu0 0.0
        %1658 = vmatpush2.msra.mxu0 0.0
        %1659 = vmatprep.subr.mxu0 0.0
        %1660 = vmatpush2.msra.mxu0 0.0
        %1661 = vmatprep.subr.mxu0 0.0
        %1662 = vmatpush2.msra.mxu0 0.0
        %1663 = vmatprep.subr.mxu0 0.0
        %1664 = vmatpush2.msra.mxu0 0.0
        %1665 = vmatprep.subr.mxu0 0.0
        %1666 = vmatpush2.msra.mxu0 0.0
        %1667 = vmatprep.subr.mxu0 0.0
        %1668 = vmatpush2.msra.mxu0 0.0
        %1669 = vmatprep.subr.mxu0 0.0
        %1670 = vmatpush2.msra.mxu0 0.0
        %1671 = vmatprep.subr.mxu0 0.0
        %1672 = vmatpush2.msra.mxu0 0.0
        %1673 = vmatprep.subr.mxu0 0.0
        %1674 = vmatpush2.msra.mxu0 0.0
        %1675 = vmatprep.subr.mxu0 0.0
        %1676 = vmatpush2.msra.mxu0 0.0
        %1677 = vmatprep.subr.mxu0 0.0
        %1678 = vmatpush2.msra.mxu0 0.0
        %1679 = vmatprep.mubr.f32.mxu0 0.0
        %v1680 = vand.u32 %v1432, 4294901760
        %v1681 = vsub.f32 %v1432, %v1680
        %1682 = vmatmul.mubr.f32.gmra.mxu0 %v1681
        %v1683 = vpop.f32.mrf.mxu0
        %v1684 = vadd.f32 %v1602, %v1683
        %v1685 = vpop.f32.mrf.mxu0
        %1686 = vmatprep.mubr.f32.mxu0 0.0
        %v1687 = vand.u32 %v1435, 4294901760
        %v1688 = vsub.f32 %v1435, %v1687
        %1689 = vmatmul.mubr.f32.gmra.mxu0 %v1688
        %v1690 = vpop.f32.mrf.mxu0
        %v1691 = vadd.f32 %v1608, %v1690
        %v1692 = vpop.f32.mrf.mxu0
        %1693 = vdwg.mxu0
        %1694 = vmatprep.subr.mxu0 0.0
        %1695 = vmatpush1.msra.mxu0 0.0
        %1696 = vmatprep.subr.mxu0 0.0
        %1697 = vmatpush1.msra.mxu0 0.0
        %1698 = vmatprep.subr.mxu0 0.0
        %1699 = vmatpush1.msra.mxu0 0.0
        %1700 = vmatprep.subr.mxu0 0.0
        %1701 = vmatpush1.msra.mxu0 0.0
        %1702 = vmatprep.subr.mxu0 0.0
        %1703 = vmatpush1.msra.mxu0 0.0
        %1704 = vmatprep.subr.mxu0 0.0
        %1705 = vmatpush1.msra.mxu0 0.0
        %1706 = vmatprep.subr.mxu0 0.0
        %1707 = vmatpush1.msra.mxu0 0.0
        %1708 = vmatprep.subr.mxu0 0.0
        %1709 = vmatpush1.msra.mxu0 0.0
        %1710 = vmatprep.subr.mxu0 0.0
        %1711 = vmatpush1.msra.mxu0 0.0
        %1712 = vmatprep.subr.mxu0 0.0
        %1713 = vmatpush1.msra.mxu0 0.0
        %1714 = vmatprep.subr.mxu0 0.0
        %1715 = vmatpush1.msra.mxu0 0.0
        %1716 = vmatprep.subr.mxu0 0.0
        %1717 = vmatpush1.msra.mxu0 0.0
        %1718 = vmatprep.subr.mxu0 0.0
        %1719 = vmatpush1.msra.mxu0 0.0
        %1720 = vmatprep.subr.mxu0 0.0
        %1721 = vmatpush1.msra.mxu0 0.0
        %1722 = vmatprep.subr.mxu0 0.0
        %v1723 = vand.u32 %v419, 4294901760
        %1724 = vmatpush1.msra.mxu0 %v1723
        %1725 = vmatprep.subr.mxu0 0.0
        %v1726 = vand.u32 %v409, 4294901760
        %1727 = vmatpush1.msra.mxu0 %v1726
        %1728 = vmatprep.subr.mxu0 0.0
        %1729 = vmatpush2.msra.mxu0 0.0
        %1730 = vmatprep.subr.mxu0 0.0
        %1731 = vmatpush2.msra.mxu0 0.0
        %1732 = vmatprep.subr.mxu0 0.0
        %1733 = vmatpush2.msra.mxu0 0.0
        %1734 = vmatprep.subr.mxu0 0.0
        %1735 = vmatpush2.msra.mxu0 0.0
        %1736 = vmatprep.subr.mxu0 0.0
        %1737 = vmatpush2.msra.mxu0 0.0
        %1738 = vmatprep.subr.mxu0 0.0
        %1739 = vmatpush2.msra.mxu0 0.0
        %1740 = vmatprep.subr.mxu0 0.0
        %1741 = vmatpush2.msra.mxu0 0.0
        %1742 = vmatprep.subr.mxu0 0.0
        %1743 = vmatpush2.msra.mxu0 0.0
        %1744 = vmatprep.subr.mxu0 0.0
        %1745 = vmatpush2.msra.mxu0 0.0
        %1746 = vmatprep.subr.mxu0 0.0
        %1747 = vmatpush2.msra.mxu0 0.0
        %1748 = vmatprep.subr.mxu0 0.0
        %1749 = vmatpush2.msra.mxu0 0.0
        %1750 = vmatprep.subr.mxu0 0.0
        %1751 = vmatpush2.msra.mxu0 0.0
        %1752 = vmatprep.subr.mxu0 0.0
        %1753 = vmatpush2.msra.mxu0 0.0
        %1754 = vmatprep.subr.mxu0 0.0
        %1755 = vmatpush2.msra.mxu0 0.0
        %1756 = vmatprep.subr.mxu0 0.0
        %1757 = vmatpush2.msra.mxu0 0.0
        %1758 = vmatprep.subr.mxu0 0.0
        %1759 = vmatpush2.msra.mxu0 0.0
        %1760 = vmatprep.mubr.f32.mxu0 0.0
        %v1761 = vand.u32 %v1432, 4294901760
        %v1762 = vsub.f32 %v1432, %v1761
        %v1763 = vand.u32 %v1762, 4294901760
        %1764 = vmatmul.mubr.f32.gmra.mxu0 %v1763
        %v1765 = vpop.f32.mrf.mxu0
        %v1766 = vadd.f32 %v1684, %v1765
        %v1767 = vpop.f32.mrf.mxu0
        %1768 = vmatprep.mubr.f32.mxu0 0.0
        %v1769 = vand.u32 %v1435, 4294901760
        %v1770 = vsub.f32 %v1435, %v1769
        %v1771 = vand.u32 %v1770, 4294901760
        %1772 = vmatmul.mubr.f32.gmra.mxu0 %v1771
        %v1773 = vpop.f32.mrf.mxu0
        %v1774 = vadd.f32 %v1691, %v1773
        %v1775 = vpop.f32.mrf.mxu0
        %1776 = vdwg.mxu0
        %1777 = vmatprep.subr.mxu0 0.0
        %1778 = vmatpush1.msra.mxu0 0.0
        %1779 = vmatprep.subr.mxu0 0.0
        %1780 = vmatpush1.msra.mxu0 0.0
        %1781 = vmatprep.subr.mxu0 0.0
        %1782 = vmatpush1.msra.mxu0 0.0
        %1783 = vmatprep.subr.mxu0 0.0
        %1784 = vmatpush1.msra.mxu0 0.0
        %1785 = vmatprep.subr.mxu0 0.0
        %1786 = vmatpush1.msra.mxu0 0.0
        %1787 = vmatprep.subr.mxu0 0.0
        %1788 = vmatpush1.msra.mxu0 0.0
        %1789 = vmatprep.subr.mxu0 0.0
        %1790 = vmatpush1.msra.mxu0 0.0
        %1791 = vmatprep.subr.mxu0 0.0
        %1792 = vmatpush1.msra.mxu0 0.0
        %1793 = vmatprep.subr.mxu0 0.0
        %1794 = vmatpush1.msra.mxu0 0.0
        %1795 = vmatprep.subr.mxu0 0.0
        %1796 = vmatpush1.msra.mxu0 0.0
        %1797 = vmatprep.subr.mxu0 0.0
        %1798 = vmatpush1.msra.mxu0 0.0
        %1799 = vmatprep.subr.mxu0 0.0
        %1800 = vmatpush1.msra.mxu0 0.0
        %1801 = vmatprep.subr.mxu0 0.0
        %1802 = vmatpush1.msra.mxu0 0.0
        %1803 = vmatprep.subr.mxu0 0.0
        %1804 = vmatpush1.msra.mxu0 0.0
        %1805 = vmatprep.subr.mxu0 0.0
        %v1806 = vand.u32 %v419, 4294901760
        %v1807 = vsub.f32 %v419, %v1806
        %v1808 = vand.u32 %v1807, 4294901760
        %1809 = vmatpush1.msra.mxu0 %v1808
        %1810 = vmatprep.subr.mxu0 0.0
        %v1811 = vand.u32 %v409, 4294901760
        %v1812 = vsub.f32 %v409, %v1811
        %v1813 = vand.u32 %v1812, 4294901760
        %1814 = vmatpush1.msra.mxu0 %v1813
        %1815 = vmatprep.subr.mxu0 0.0
        %1816 = vmatpush2.msra.mxu0 0.0
        %1817 = vmatprep.subr.mxu0 0.0
        %1818 = vmatpush2.msra.mxu0 0.0
        %1819 = vmatprep.subr.mxu0 0.0
        %1820 = vmatpush2.msra.mxu0 0.0
        %1821 = vmatprep.subr.mxu0 0.0
        %1822 = vmatpush2.msra.mxu0 0.0
        %1823 = vmatprep.subr.mxu0 0.0
        %1824 = vmatpush2.msra.mxu0 0.0
        %1825 = vmatprep.subr.mxu0 0.0
        %1826 = vmatpush2.msra.mxu0 0.0
        %1827 = vmatprep.subr.mxu0 0.0
        %1828 = vmatpush2.msra.mxu0 0.0
        %1829 = vmatprep.subr.mxu0 0.0
        %1830 = vmatpush2.msra.mxu0 0.0
        %1831 = vmatprep.subr.mxu0 0.0
        %1832 = vmatpush2.msra.mxu0 0.0
        %1833 = vmatprep.subr.mxu0 0.0
        %1834 = vmatpush2.msra.mxu0 0.0
        %1835 = vmatprep.subr.mxu0 0.0
        %1836 = vmatpush2.msra.mxu0 0.0
        %1837 = vmatprep.subr.mxu0 0.0
        %1838 = vmatpush2.msra.mxu0 0.0
        %1839 = vmatprep.subr.mxu0 0.0
        %1840 = vmatpush2.msra.mxu0 0.0
        %1841 = vmatprep.subr.mxu0 0.0
        %1842 = vmatpush2.msra.mxu0 0.0
        %1843 = vmatprep.subr.mxu0 0.0
        %1844 = vmatpush2.msra.mxu0 0.0
        %1845 = vmatprep.subr.mxu0 0.0
        %1846 = vmatpush2.msra.mxu0 0.0
        %1847 = vmatprep.mubr.f32.mxu0 0.0
        %v1848 = vand.u32 %v1432, 4294901760
        %1849 = vmatmul.mubr.f32.gmra.mxu0 %v1848
        %v1850 = vpop.f32.mrf.mxu0
        %v1851 = vadd.f32 %v1766, %v1850
        %v1852 = vpop.f32.mrf.mxu0
        %1853 = vmatprep.mubr.f32.mxu0 0.0
        %v1854 = vand.u32 %v1435, 4294901760
        %1855 = vmatmul.mubr.f32.gmra.mxu0 %v1854
        %v1856 = vpop.f32.mrf.mxu0
        %v1857 = vadd.f32 %v1774, %v1856
        %v1858 = vpop.f32.mrf.mxu0
        %1859 = vdwg.mxu0
        %1860 = vmatprep.subr.mxu0 0.0
        %1861 = vmatpush1.msra.mxu0 0.0
        %1862 = vmatprep.subr.mxu0 0.0
        %1863 = vmatpush1.msra.mxu0 0.0
        %1864 = vmatprep.subr.mxu0 0.0
        %1865 = vmatpush1.msra.mxu0 0.0
        %1866 = vmatprep.subr.mxu0 0.0
        %1867 = vmatpush1.msra.mxu0 0.0
        %1868 = vmatprep.subr.mxu0 0.0
        %1869 = vmatpush1.msra.mxu0 0.0
        %1870 = vmatprep.subr.mxu0 0.0
        %1871 = vmatpush1.msra.mxu0 0.0
        %1872 = vmatprep.subr.mxu0 0.0
        %1873 = vmatpush1.msra.mxu0 0.0
        %1874 = vmatprep.subr.mxu0 0.0
        %1875 = vmatpush1.msra.mxu0 0.0
        %1876 = vmatprep.subr.mxu0 0.0
        %1877 = vmatpush1.msra.mxu0 0.0
        %1878 = vmatprep.subr.mxu0 0.0
        %1879 = vmatpush1.msra.mxu0 0.0
        %1880 = vmatprep.subr.mxu0 0.0
        %1881 = vmatpush1.msra.mxu0 0.0
        %1882 = vmatprep.subr.mxu0 0.0
        %1883 = vmatpush1.msra.mxu0 0.0
        %1884 = vmatprep.subr.mxu0 0.0
        %1885 = vmatpush1.msra.mxu0 0.0
        %1886 = vmatprep.subr.mxu0 0.0
        %1887 = vmatpush1.msra.mxu0 0.0
        %1888 = vmatprep.subr.mxu0 0.0
        %v1889 = vand.u32 %v419, 4294901760
        %1890 = vmatpush1.msra.mxu0 %v1889
        %1891 = vmatprep.subr.mxu0 0.0
        %v1892 = vand.u32 %v409, 4294901760
        %1893 = vmatpush1.msra.mxu0 %v1892
        %1894 = vmatprep.subr.mxu0 0.0
        %1895 = vmatpush2.msra.mxu0 0.0
        %1896 = vmatprep.subr.mxu0 0.0
        %1897 = vmatpush2.msra.mxu0 0.0
        %1898 = vmatprep.subr.mxu0 0.0
        %1899 = vmatpush2.msra.mxu0 0.0
        %1900 = vmatprep.subr.mxu0 0.0
        %1901 = vmatpush2.msra.mxu0 0.0
        %1902 = vmatprep.subr.mxu0 0.0
        %1903 = vmatpush2.msra.mxu0 0.0
        %1904 = vmatprep.subr.mxu0 0.0
        %1905 = vmatpush2.msra.mxu0 0.0
        %1906 = vmatprep.subr.mxu0 0.0
        %1907 = vmatpush2.msra.mxu0 0.0
        %1908 = vmatprep.subr.mxu0 0.0
        %1909 = vmatpush2.msra.mxu0 0.0
        %1910 = vmatprep.subr.mxu0 0.0
        %1911 = vmatpush2.msra.mxu0 0.0
        %1912 = vmatprep.subr.mxu0 0.0
        %1913 = vmatpush2.msra.mxu0 0.0
        %1914 = vmatprep.subr.mxu0 0.0
        %1915 = vmatpush2.msra.mxu0 0.0
        %1916 = vmatprep.subr.mxu0 0.0
        %1917 = vmatpush2.msra.mxu0 0.0
        %1918 = vmatprep.subr.mxu0 0.0
        %1919 = vmatpush2.msra.mxu0 0.0
        %1920 = vmatprep.subr.mxu0 0.0
        %1921 = vmatpush2.msra.mxu0 0.0
        %1922 = vmatprep.subr.mxu0 0.0
        %1923 = vmatpush2.msra.mxu0 0.0
        %1924 = vmatprep.subr.mxu0 0.0
        %1925 = vmatpush2.msra.mxu0 0.0
        %1926 = vmatprep.mubr.f32.mxu0 0.0
        %v1927 = vand.u32 %v1432, 4294901760
        %1928 = vmatmul.mubr.f32.gmra.mxu0 %v1927
        %v1929 = vpop.f32.mrf.mxu0
        %v1930 = vadd.f32 %v1851, %v1929
        %v1931 = vpop.f32.mrf.mxu0
        %1932 = vmatprep.mubr.f32.mxu0 0.0
        %v1933 = vand.u32 %v1435, 4294901760
        %1934 = vmatmul.mubr.f32.gmra.mxu0 %v1933
        %v1935 = vpop.f32.mrf.mxu0
        %v1936 = vadd.f32 %v1857, %v1935
        %v1937 = vpop.f32.mrf.mxu0
        %1938 = vdwg.mxu0
        %v1940 = vsel %vm411, %v397, 0
        %v1943 = vsel %vm411, %v398, 0
        %1945 = vmatprep.subr.mxu0 0.0
        %1946 = vmatpush1.msra.mxu0 0.0
        %1947 = vmatprep.subr.mxu0 0.0
        %1948 = vmatpush1.msra.mxu0 0.0
        %1949 = vmatprep.subr.mxu0 0.0
        %1950 = vmatpush1.msra.mxu0 0.0
        %1951 = vmatprep.subr.mxu0 0.0
        %1952 = vmatpush1.msra.mxu0 0.0
        %1953 = vmatprep.subr.mxu0 0.0
        %1954 = vmatpush1.msra.mxu0 0.0
        %1955 = vmatprep.subr.mxu0 0.0
        %1956 = vmatpush1.msra.mxu0 0.0
        %1957 = vmatprep.subr.mxu0 0.0
        %1958 = vmatpush1.msra.mxu0 0.0
        %1959 = vmatprep.subr.mxu0 0.0
        %1960 = vmatpush1.msra.mxu0 0.0
        %1961 = vmatprep.subr.mxu0 0.0
        %1962 = vmatpush1.msra.mxu0 0.0
        %1963 = vmatprep.subr.mxu0 0.0
        %1964 = vmatpush1.msra.mxu0 0.0
        %1965 = vmatprep.subr.mxu0 0.0
        %1966 = vmatpush1.msra.mxu0 0.0
        %1967 = vmatprep.subr.mxu0 0.0
        %1968 = vmatpush1.msra.mxu0 0.0
        %1969 = vmatprep.subr.mxu0 0.0
        %1970 = vmatpush1.msra.mxu0 0.0
        %1971 = vmatprep.subr.mxu0 0.0
        %1972 = vmatpush1.msra.mxu0 0.0
        %1973 = vmatprep.subr.mxu0 0.0
        %v1974 = vand.u32 %v419, 4294901760
        %1975 = vmatpush1.msra.mxu0 %v1974
        %1976 = vmatprep.subr.mxu0 0.0
        %v1977 = vand.u32 %v409, 4294901760
        %1978 = vmatpush1.msra.mxu0 %v1977
        %1979 = vmatprep.subr.mxu0 0.0
        %1980 = vmatpush2.msra.mxu0 0.0
        %1981 = vmatprep.subr.mxu0 0.0
        %1982 = vmatpush2.msra.mxu0 0.0
        %1983 = vmatprep.subr.mxu0 0.0
        %1984 = vmatpush2.msra.mxu0 0.0
        %1985 = vmatprep.subr.mxu0 0.0
        %1986 = vmatpush2.msra.mxu0 0.0
        %1987 = vmatprep.subr.mxu0 0.0
        %1988 = vmatpush2.msra.mxu0 0.0
        %1989 = vmatprep.subr.mxu0 0.0
        %1990 = vmatpush2.msra.mxu0 0.0
        %1991 = vmatprep.subr.mxu0 0.0
        %1992 = vmatpush2.msra.mxu0 0.0
        %1993 = vmatprep.subr.mxu0 0.0
        %1994 = vmatpush2.msra.mxu0 0.0
        %1995 = vmatprep.subr.mxu0 0.0
        %1996 = vmatpush2.msra.mxu0 0.0
        %1997 = vmatprep.subr.mxu0 0.0
        %1998 = vmatpush2.msra.mxu0 0.0
        %1999 = vmatprep.subr.mxu0 0.0
        %2000 = vmatpush2.msra.mxu0 0.0
        %2001 = vmatprep.subr.mxu0 0.0
        %2002 = vmatpush2.msra.mxu0 0.0
        %2003 = vmatprep.subr.mxu0 0.0
        %2004 = vmatpush2.msra.mxu0 0.0
        %2005 = vmatprep.subr.mxu0 0.0
        %2006 = vmatpush2.msra.mxu0 0.0
        %2007 = vmatprep.subr.mxu0 0.0
        %2008 = vmatpush2.msra.mxu0 0.0
        %2009 = vmatprep.subr.mxu0 0.0
        %2010 = vmatpush2.msra.mxu0 0.0
        %2011 = vmatprep.mubr.f32.mxu0 0.0
        %v2012 = vand.u32 %v1940, 4294901760
        %v2013 = vsub.f32 %v1940, %v2012
        %v2014 = vand.u32 %v2013, 4294901760
        %v2015 = vsub.f32 %v2013, %v2014
        %v2016 = vand.u32 %v2015, 4294901760
        %2017 = vmatmul.mubr.f32.gmra.mxu0 %v2016
        %v2018 = vpop.f32.mrf.mxu0
        %v2019 = vadd.f32 0.0, %v2018
        %v2020 = vpop.f32.mrf.mxu0
        %2021 = vmatprep.mubr.f32.mxu0 0.0
        %v2022 = vand.u32 %v1943, 4294901760
        %v2023 = vsub.f32 %v1943, %v2022
        %v2024 = vand.u32 %v2023, 4294901760
        %v2025 = vsub.f32 %v2023, %v2024
        %v2026 = vand.u32 %v2025, 4294901760
        %2027 = vmatmul.mubr.f32.gmra.mxu0 %v2026
        %v2028 = vpop.f32.mrf.mxu0
        %v2029 = vadd.f32 0.0, %v2028
        %v2030 = vpop.f32.mrf.mxu0
        %2031 = vdwg.mxu0
        %2032 = vmatprep.subr.mxu0 0.0
        %2033 = vmatpush1.msra.mxu0 0.0
        %2034 = vmatprep.subr.mxu0 0.0
        %2035 = vmatpush1.msra.mxu0 0.0
        %2036 = vmatprep.subr.mxu0 0.0
        %2037 = vmatpush1.msra.mxu0 0.0
        %2038 = vmatprep.subr.mxu0 0.0
        %2039 = vmatpush1.msra.mxu0 0.0
        %2040 = vmatprep.subr.mxu0 0.0
        %2041 = vmatpush1.msra.mxu0 0.0
        %2042 = vmatprep.subr.mxu0 0.0
        %2043 = vmatpush1.msra.mxu0 0.0
        %2044 = vmatprep.subr.mxu0 0.0
        %2045 = vmatpush1.msra.mxu0 0.0
        %2046 = vmatprep.subr.mxu0 0.0
        %2047 = vmatpush1.msra.mxu0 0.0
        %2048 = vmatprep.subr.mxu0 0.0
        %2049 = vmatpush1.msra.mxu0 0.0
        %2050 = vmatprep.subr.mxu0 0.0
        %2051 = vmatpush1.msra.mxu0 0.0
        %2052 = vmatprep.subr.mxu0 0.0
        %2053 = vmatpush1.msra.mxu0 0.0
        %2054 = vmatprep.subr.mxu0 0.0
        %2055 = vmatpush1.msra.mxu0 0.0
        %2056 = vmatprep.subr.mxu0 0.0
        %2057 = vmatpush1.msra.mxu0 0.0
        %2058 = vmatprep.subr.mxu0 0.0
        %2059 = vmatpush1.msra.mxu0 0.0
        %2060 = vmatprep.subr.mxu0 0.0
        %v2061 = vand.u32 %v419, 4294901760
        %v2062 = vsub.f32 %v419, %v2061
        %v2063 = vand.u32 %v2062, 4294901760
        %v2064 = vsub.f32 %v2062, %v2063
        %v2065 = vand.u32 %v2064, 4294901760
        %2066 = vmatpush1.msra.mxu0 %v2065
        %2067 = vmatprep.subr.mxu0 0.0
        %v2068 = vand.u32 %v409, 4294901760
        %v2069 = vsub.f32 %v409, %v2068
        %v2070 = vand.u32 %v2069, 4294901760
        %v2071 = vsub.f32 %v2069, %v2070
        %v2072 = vand.u32 %v2071, 4294901760
        %2073 = vmatpush1.msra.mxu0 %v2072
        %2074 = vmatprep.subr.mxu0 0.0
        %2075 = vmatpush2.msra.mxu0 0.0
        %2076 = vmatprep.subr.mxu0 0.0
        %2077 = vmatpush2.msra.mxu0 0.0
        %2078 = vmatprep.subr.mxu0 0.0
        %2079 = vmatpush2.msra.mxu0 0.0
        %2080 = vmatprep.subr.mxu0 0.0
        %2081 = vmatpush2.msra.mxu0 0.0
        %2082 = vmatprep.subr.mxu0 0.0
        %2083 = vmatpush2.msra.mxu0 0.0
        %2084 = vmatprep.subr.mxu0 0.0
        %2085 = vmatpush2.msra.mxu0 0.0
        %2086 = vmatprep.subr.mxu0 0.0
        %2087 = vmatpush2.msra.mxu0 0.0
        %2088 = vmatprep.subr.mxu0 0.0
        %2089 = vmatpush2.msra.mxu0 0.0
        %2090 = vmatprep.subr.mxu0 0.0
        %2091 = vmatpush2.msra.mxu0 0.0
        %2092 = vmatprep.subr.mxu0 0.0
        %2093 = vmatpush2.msra.mxu0 0.0
        %2094 = vmatprep.subr.mxu0 0.0
        %2095 = vmatpush2.msra.mxu0 0.0
        %2096 = vmatprep.subr.mxu0 0.0
        %2097 = vmatpush2.msra.mxu0 0.0
        %2098 = vmatprep.subr.mxu0 0.0
        %2099 = vmatpush2.msra.mxu0 0.0
        %2100 = vmatprep.subr.mxu0 0.0
        %2101 = vmatpush2.msra.mxu0 0.0
        %2102 = vmatprep.subr.mxu0 0.0
        %2103 = vmatpush2.msra.mxu0 0.0
        %2104 = vmatprep.subr.mxu0 0.0
        %2105 = vmatpush2.msra.mxu0 0.0
        %2106 = vmatprep.mubr.f32.mxu0 0.0
        %v2107 = vand.u32 %v1940, 4294901760
        %2108 = vmatmul.mubr.f32.gmra.mxu0 %v2107
        %v2109 = vpop.f32.mrf.mxu0
        %v2110 = vadd.f32 %v2019, %v2109
        %v2111 = vpop.f32.mrf.mxu0
        %2112 = vmatprep.mubr.f32.mxu0 0.0
        %v2113 = vand.u32 %v1943, 4294901760
        %2114 = vmatmul.mubr.f32.gmra.mxu0 %v2113
        %v2115 = vpop.f32.mrf.mxu0
        %v2116 = vadd.f32 %v2029, %v2115
        %v2117 = vpop.f32.mrf.mxu0
        %2118 = vdwg.mxu0
        %2119 = vmatprep.subr.mxu0 0.0
        %2120 = vmatpush1.msra.mxu0 0.0
        %2121 = vmatprep.subr.mxu0 0.0
        %2122 = vmatpush1.msra.mxu0 0.0
        %2123 = vmatprep.subr.mxu0 0.0
        %2124 = vmatpush1.msra.mxu0 0.0
        %2125 = vmatprep.subr.mxu0 0.0
        %2126 = vmatpush1.msra.mxu0 0.0
        %2127 = vmatprep.subr.mxu0 0.0
        %2128 = vmatpush1.msra.mxu0 0.0
        %2129 = vmatprep.subr.mxu0 0.0
        %2130 = vmatpush1.msra.mxu0 0.0
        %2131 = vmatprep.subr.mxu0 0.0
        %2132 = vmatpush1.msra.mxu0 0.0
        %2133 = vmatprep.subr.mxu0 0.0
        %2134 = vmatpush1.msra.mxu0 0.0
        %2135 = vmatprep.subr.mxu0 0.0
        %2136 = vmatpush1.msra.mxu0 0.0
        %2137 = vmatprep.subr.mxu0 0.0
        %2138 = vmatpush1.msra.mxu0 0.0
        %2139 = vmatprep.subr.mxu0 0.0
        %2140 = vmatpush1.msra.mxu0 0.0
        %2141 = vmatprep.subr.mxu0 0.0
        %2142 = vmatpush1.msra.mxu0 0.0
        %2143 = vmatprep.subr.mxu0 0.0
        %2144 = vmatpush1.msra.mxu0 0.0
        %2145 = vmatprep.subr.mxu0 0.0
        %2146 = vmatpush1.msra.mxu0 0.0
        %2147 = vmatprep.subr.mxu0 0.0
        %v2148 = vand.u32 %v419, 4294901760
        %v2149 = vsub.f32 %v419, %v2148
        %2150 = vmatpush1.msra.mxu0 %v2149
        %2151 = vmatprep.subr.mxu0 0.0
        %v2152 = vand.u32 %v409, 4294901760
        %v2153 = vsub.f32 %v409, %v2152
        %2154 = vmatpush1.msra.mxu0 %v2153
        %2155 = vmatprep.subr.mxu0 0.0
        %2156 = vmatpush2.msra.mxu0 0.0
        %2157 = vmatprep.subr.mxu0 0.0
        %2158 = vmatpush2.msra.mxu0 0.0
        %2159 = vmatprep.subr.mxu0 0.0
        %2160 = vmatpush2.msra.mxu0 0.0
        %2161 = vmatprep.subr.mxu0 0.0
        %2162 = vmatpush2.msra.mxu0 0.0
        %2163 = vmatprep.subr.mxu0 0.0
        %2164 = vmatpush2.msra.mxu0 0.0
        %2165 = vmatprep.subr.mxu0 0.0
        %2166 = vmatpush2.msra.mxu0 0.0
        %2167 = vmatprep.subr.mxu0 0.0
        %2168 = vmatpush2.msra.mxu0 0.0
        %2169 = vmatprep.subr.mxu0 0.0
        %2170 = vmatpush2.msra.mxu0 0.0
        %2171 = vmatprep.subr.mxu0 0.0
        %2172 = vmatpush2.msra.mxu0 0.0
        %2173 = vmatprep.subr.mxu0 0.0
        %2174 = vmatpush2.msra.mxu0 0.0
        %2175 = vmatprep.subr.mxu0 0.0
        %2176 = vmatpush2.msra.mxu0 0.0
        %2177 = vmatprep.subr.mxu0 0.0
        %2178 = vmatpush2.msra.mxu0 0.0
        %2179 = vmatprep.subr.mxu0 0.0
        %2180 = vmatpush2.msra.mxu0 0.0
        %2181 = vmatprep.subr.mxu0 0.0
        %2182 = vmatpush2.msra.mxu0 0.0
        %2183 = vmatprep.subr.mxu0 0.0
        %2184 = vmatpush2.msra.mxu0 0.0
        %2185 = vmatprep.subr.mxu0 0.0
        %2186 = vmatpush2.msra.mxu0 0.0
        %2187 = vmatprep.mubr.f32.mxu0 0.0
        %v2188 = vand.u32 %v1940, 4294901760
        %v2189 = vsub.f32 %v1940, %v2188
        %2190 = vmatmul.mubr.f32.gmra.mxu0 %v2189
        %v2191 = vpop.f32.mrf.mxu0
        %v2192 = vadd.f32 %v2110, %v2191
        %v2193 = vpop.f32.mrf.mxu0
        %2194 = vmatprep.mubr.f32.mxu0 0.0
        %v2195 = vand.u32 %v1943, 4294901760
        %v2196 = vsub.f32 %v1943, %v2195
        %2197 = vmatmul.mubr.f32.gmra.mxu0 %v2196
        %v2198 = vpop.f32.mrf.mxu0
        %v2199 = vadd.f32 %v2116, %v2198
        %v2200 = vpop.f32.mrf.mxu0
        %2201 = vdwg.mxu0
        %2202 = vmatprep.subr.mxu0 0.0
        %2203 = vmatpush1.msra.mxu0 0.0
        %2204 = vmatprep.subr.mxu0 0.0
        %2205 = vmatpush1.msra.mxu0 0.0
        %2206 = vmatprep.subr.mxu0 0.0
        %2207 = vmatpush1.msra.mxu0 0.0
        %2208 = vmatprep.subr.mxu0 0.0
        %2209 = vmatpush1.msra.mxu0 0.0
        %2210 = vmatprep.subr.mxu0 0.0
        %2211 = vmatpush1.msra.mxu0 0.0
        %2212 = vmatprep.subr.mxu0 0.0
        %2213 = vmatpush1.msra.mxu0 0.0
        %2214 = vmatprep.subr.mxu0 0.0
        %2215 = vmatpush1.msra.mxu0 0.0
        %2216 = vmatprep.subr.mxu0 0.0
        %2217 = vmatpush1.msra.mxu0 0.0
        %2218 = vmatprep.subr.mxu0 0.0
        %2219 = vmatpush1.msra.mxu0 0.0
        %2220 = vmatprep.subr.mxu0 0.0
        %2221 = vmatpush1.msra.mxu0 0.0
        %2222 = vmatprep.subr.mxu0 0.0
        %2223 = vmatpush1.msra.mxu0 0.0
        %2224 = vmatprep.subr.mxu0 0.0
        %2225 = vmatpush1.msra.mxu0 0.0
        %2226 = vmatprep.subr.mxu0 0.0
        %2227 = vmatpush1.msra.mxu0 0.0
        %2228 = vmatprep.subr.mxu0 0.0
        %2229 = vmatpush1.msra.mxu0 0.0
        %2230 = vmatprep.subr.mxu0 0.0
        %v2231 = vand.u32 %v419, 4294901760
        %2232 = vmatpush1.msra.mxu0 %v2231
        %2233 = vmatprep.subr.mxu0 0.0
        %v2234 = vand.u32 %v409, 4294901760
        %2235 = vmatpush1.msra.mxu0 %v2234
        %2236 = vmatprep.subr.mxu0 0.0
        %2237 = vmatpush2.msra.mxu0 0.0
        %2238 = vmatprep.subr.mxu0 0.0
        %2239 = vmatpush2.msra.mxu0 0.0
        %2240 = vmatprep.subr.mxu0 0.0
        %2241 = vmatpush2.msra.mxu0 0.0
        %2242 = vmatprep.subr.mxu0 0.0
        %2243 = vmatpush2.msra.mxu0 0.0
        %2244 = vmatprep.subr.mxu0 0.0
        %2245 = vmatpush2.msra.mxu0 0.0
        %2246 = vmatprep.subr.mxu0 0.0
        %2247 = vmatpush2.msra.mxu0 0.0
        %2248 = vmatprep.subr.mxu0 0.0
        %2249 = vmatpush2.msra.mxu0 0.0
        %2250 = vmatprep.subr.mxu0 0.0
        %2251 = vmatpush2.msra.mxu0 0.0
        %2252 = vmatprep.subr.mxu0 0.0
        %2253 = vmatpush2.msra.mxu0 0.0
        %2254 = vmatprep.subr.mxu0 0.0
        %2255 = vmatpush2.msra.mxu0 0.0
        %2256 = vmatprep.subr.mxu0 0.0
        %2257 = vmatpush2.msra.mxu0 0.0
        %2258 = vmatprep.subr.mxu0 0.0
        %2259 = vmatpush2.msra.mxu0 0.0
        %2260 = vmatprep.subr.mxu0 0.0
        %2261 = vmatpush2.msra.mxu0 0.0
        %2262 = vmatprep.subr.mxu0 0.0
        %2263 = vmatpush2.msra.mxu0 0.0
        %2264 = vmatprep.subr.mxu0 0.0
        %2265 = vmatpush2.msra.mxu0 0.0
        %2266 = vmatprep.subr.mxu0 0.0
        %2267 = vmatpush2.msra.mxu0 0.0
        %2268 = vmatprep.mubr.f32.mxu0 0.0
        %v2269 = vand.u32 %v1940, 4294901760
        %v2270 = vsub.f32 %v1940, %v2269
        %v2271 = vand.u32 %v2270, 4294901760
        %2272 = vmatmul.mubr.f32.gmra.mxu0 %v2271
        %v2273 = vpop.f32.mrf.mxu0
        %v2274 = vadd.f32 %v2192, %v2273
        %v2275 = vpop.f32.mrf.mxu0
        %2276 = vmatprep.mubr.f32.mxu0 0.0
        %v2277 = vand.u32 %v1943, 4294901760
        %v2278 = vsub.f32 %v1943, %v2277
        %v2279 = vand.u32 %v2278, 4294901760
        %2280 = vmatmul.mubr.f32.gmra.mxu0 %v2279
        %v2281 = vpop.f32.mrf.mxu0
        %v2282 = vadd.f32 %v2199, %v2281
        %v2283 = vpop.f32.mrf.mxu0
        %2284 = vdwg.mxu0
        %2285 = vmatprep.subr.mxu0 0.0
        %2286 = vmatpush1.msra.mxu0 0.0
        %2287 = vmatprep.subr.mxu0 0.0
        %2288 = vmatpush1.msra.mxu0 0.0
        %2289 = vmatprep.subr.mxu0 0.0
        %2290 = vmatpush1.msra.mxu0 0.0
        %2291 = vmatprep.subr.mxu0 0.0
        %2292 = vmatpush1.msra.mxu0 0.0
        %2293 = vmatprep.subr.mxu0 0.0
        %2294 = vmatpush1.msra.mxu0 0.0
        %2295 = vmatprep.subr.mxu0 0.0
        %2296 = vmatpush1.msra.mxu0 0.0
        %2297 = vmatprep.subr.mxu0 0.0
        %2298 = vmatpush1.msra.mxu0 0.0
        %2299 = vmatprep.subr.mxu0 0.0
        %2300 = vmatpush1.msra.mxu0 0.0
        %2301 = vmatprep.subr.mxu0 0.0
        %2302 = vmatpush1.msra.mxu0 0.0
        %2303 = vmatprep.subr.mxu0 0.0
        %2304 = vmatpush1.msra.mxu0 0.0
        %2305 = vmatprep.subr.mxu0 0.0
        %2306 = vmatpush1.msra.mxu0 0.0
        %2307 = vmatprep.subr.mxu0 0.0
        %2308 = vmatpush1.msra.mxu0 0.0
        %2309 = vmatprep.subr.mxu0 0.0
        %2310 = vmatpush1.msra.mxu0 0.0
        %2311 = vmatprep.subr.mxu0 0.0
        %2312 = vmatpush1.msra.mxu0 0.0
        %2313 = vmatprep.subr.mxu0 0.0
        %v2314 = vand.u32 %v419, 4294901760
        %v2315 = vsub.f32 %v419, %v2314
        %v2316 = vand.u32 %v2315, 4294901760
        %2317 = vmatpush1.msra.mxu0 %v2316
        %2318 = vmatprep.subr.mxu0 0.0
        %v2319 = vand.u32 %v409, 4294901760
        %v2320 = vsub.f32 %v409, %v2319
        %v2321 = vand.u32 %v2320, 4294901760
        %2322 = vmatpush1.msra.mxu0 %v2321
        %2323 = vmatprep.subr.mxu0 0.0
        %2324 = vmatpush2.msra.mxu0 0.0
        %2325 = vmatprep.subr.mxu0 0.0
        %2326 = vmatpush2.msra.mxu0 0.0
        %2327 = vmatprep.subr.mxu0 0.0
        %2328 = vmatpush2.msra.mxu0 0.0
        %2329 = vmatprep.subr.mxu0 0.0
        %2330 = vmatpush2.msra.mxu0 0.0
        %2331 = vmatprep.subr.mxu0 0.0
        %2332 = vmatpush2.msra.mxu0 0.0
        %2333 = vmatprep.subr.mxu0 0.0
        %2334 = vmatpush2.msra.mxu0 0.0
        %2335 = vmatprep.subr.mxu0 0.0
        %2336 = vmatpush2.msra.mxu0 0.0
        %2337 = vmatprep.subr.mxu0 0.0
        %2338 = vmatpush2.msra.mxu0 0.0
        %2339 = vmatprep.subr.mxu0 0.0
        %2340 = vmatpush2.msra.mxu0 0.0
        %2341 = vmatprep.subr.mxu0 0.0
        %2342 = vmatpush2.msra.mxu0 0.0
        %2343 = vmatprep.subr.mxu0 0.0
        %2344 = vmatpush2.msra.mxu0 0.0
        %2345 = vmatprep.subr.mxu0 0.0
        %2346 = vmatpush2.msra.mxu0 0.0
        %2347 = vmatprep.subr.mxu0 0.0
        %2348 = vmatpush2.msra.mxu0 0.0
        %2349 = vmatprep.subr.mxu0 0.0
        %2350 = vmatpush2.msra.mxu0 0.0
        %2351 = vmatprep.subr.mxu0 0.0
        %2352 = vmatpush2.msra.mxu0 0.0
        %2353 = vmatprep.subr.mxu0 0.0
        %2354 = vmatpush2.msra.mxu0 0.0
        %2355 = vmatprep.mubr.f32.mxu0 0.0
        %v2356 = vand.u32 %v1940, 4294901760
        %2357 = vmatmul.mubr.f32.gmra.mxu0 %v2356
        %v2358 = vpop.f32.mrf.mxu0
        %v2359 = vadd.f32 %v2274, %v2358
        %v2360 = vpop.f32.mrf.mxu0
        %2361 = vmatprep.mubr.f32.mxu0 0.0
        %v2362 = vand.u32 %v1943, 4294901760
        %2363 = vmatmul.mubr.f32.gmra.mxu0 %v2362
        %v2364 = vpop.f32.mrf.mxu0
        %v2365 = vadd.f32 %v2282, %v2364
        %v2366 = vpop.f32.mrf.mxu0
        %2367 = vdwg.mxu0
        %2368 = vmatprep.subr.mxu0 0.0
        %2369 = vmatpush1.msra.mxu0 0.0
        %2370 = vmatprep.subr.mxu0 0.0
        %2371 = vmatpush1.msra.mxu0 0.0
        %2372 = vmatprep.subr.mxu0 0.0
        %2373 = vmatpush1.msra.mxu0 0.0
        %2374 = vmatprep.subr.mxu0 0.0
        %2375 = vmatpush1.msra.mxu0 0.0
        %2376 = vmatprep.subr.mxu0 0.0
        %2377 = vmatpush1.msra.mxu0 0.0
        %2378 = vmatprep.subr.mxu0 0.0
        %2379 = vmatpush1.msra.mxu0 0.0
        %2380 = vmatprep.subr.mxu0 0.0
        %2381 = vmatpush1.msra.mxu0 0.0
        %2382 = vmatprep.subr.mxu0 0.0
        %2383 = vmatpush1.msra.mxu0 0.0
        %2384 = vmatprep.subr.mxu0 0.0
        %2385 = vmatpush1.msra.mxu0 0.0
        %2386 = vmatprep.subr.mxu0 0.0
        %2387 = vmatpush1.msra.mxu0 0.0
        %2388 = vmatprep.subr.mxu0 0.0
        %2389 = vmatpush1.msra.mxu0 0.0
        %2390 = vmatprep.subr.mxu0 0.0
        %2391 = vmatpush1.msra.mxu0 0.0
        %2392 = vmatprep.subr.mxu0 0.0
        %2393 = vmatpush1.msra.mxu0 0.0
        %2394 = vmatprep.subr.mxu0 0.0
        %2395 = vmatpush1.msra.mxu0 0.0
        %2396 = vmatprep.subr.mxu0 0.0
        %v2397 = vand.u32 %v419, 4294901760
        %2398 = vmatpush1.msra.mxu0 %v2397
        %2399 = vmatprep.subr.mxu0 0.0
        %v2400 = vand.u32 %v409, 4294901760
        %2401 = vmatpush1.msra.mxu0 %v2400
        %2402 = vmatprep.subr.mxu0 0.0
        %2403 = vmatpush2.msra.mxu0 0.0
        %2404 = vmatprep.subr.mxu0 0.0
        %2405 = vmatpush2.msra.mxu0 0.0
        %2406 = vmatprep.subr.mxu0 0.0
        %2407 = vmatpush2.msra.mxu0 0.0
        %2408 = vmatprep.subr.mxu0 0.0
        %2409 = vmatpush2.msra.mxu0 0.0
        %2410 = vmatprep.subr.mxu0 0.0
        %2411 = vmatpush2.msra.mxu0 0.0
        %2412 = vmatprep.subr.mxu0 0.0
        %2413 = vmatpush2.msra.mxu0 0.0
        %2414 = vmatprep.subr.mxu0 0.0
        %2415 = vmatpush2.msra.mxu0 0.0
        %2416 = vmatprep.subr.mxu0 0.0
        %2417 = vmatpush2.msra.mxu0 0.0
        %2418 = vmatprep.subr.mxu0 0.0
        %2419 = vmatpush2.msra.mxu0 0.0
        %2420 = vmatprep.subr.mxu0 0.0
        %2421 = vmatpush2.msra.mxu0 0.0
        %2422 = vmatprep.subr.mxu0 0.0
        %2423 = vmatpush2.msra.mxu0 0.0
        %2424 = vmatprep.subr.mxu0 0.0
        %2425 = vmatpush2.msra.mxu0 0.0
        %2426 = vmatprep.subr.mxu0 0.0
        %2427 = vmatpush2.msra.mxu0 0.0
        %2428 = vmatprep.subr.mxu0 0.0
        %2429 = vmatpush2.msra.mxu0 0.0
        %2430 = vmatprep.subr.mxu0 0.0
        %2431 = vmatpush2.msra.mxu0 0.0
        %2432 = vmatprep.subr.mxu0 0.0
        %2433 = vmatpush2.msra.mxu0 0.0
        %2434 = vmatprep.mubr.f32.mxu0 0.0
        %v2435 = vand.u32 %v1940, 4294901760
        %2436 = vmatmul.mubr.f32.gmra.mxu0 %v2435
        %v2437 = vpop.f32.mrf.mxu0
        %v2438 = vadd.f32 %v2359, %v2437
        %v2439 = vpop.f32.mrf.mxu0
        %2440 = vmatprep.mubr.f32.mxu0 0.0
        %v2441 = vand.u32 %v1943, 4294901760
        %2442 = vmatmul.mubr.f32.gmra.mxu0 %v2441
        %v2443 = vpop.f32.mrf.mxu0
        %v2444 = vadd.f32 %v2365, %v2443
        %v2445 = vpop.f32.mrf.mxu0
        %2446 = vdwg.mxu0
        %v2447 = vmul.u32 %v400, 2
        %vm2448 = vcmp.eq.s32.totalorder %v2447, %v403
        %v2449 = vsel %vm2448, 1, 0
        %v2450 = vcvt.s32.f32 %v2449
        %v2452 = vsel %vm411, %v2450, 0
        %v2455 = vsel %vm329, %v920, 0
        %2457 = vmatprep.subr.mxu0 0.0
        %2458 = vmatpush1.msra.mxu0 0.0
        %2459 = vmatprep.subr.mxu0 0.0
        %2460 = vmatpush1.msra.mxu0 0.0
        %2461 = vmatprep.subr.mxu0 0.0
        %2462 = vmatpush1.msra.mxu0 0.0
        %2463 = vmatprep.subr.mxu0 0.0
        %2464 = vmatpush1.msra.mxu0 0.0
        %2465 = vmatprep.subr.mxu0 0.0
        %2466 = vmatpush1.msra.mxu0 0.0
        %2467 = vmatprep.subr.mxu0 0.0
        %2468 = vmatpush1.msra.mxu0 0.0
        %2469 = vmatprep.subr.mxu0 0.0
        %2470 = vmatpush1.msra.mxu0 0.0
        %2471 = vmatprep.subr.mxu0 0.0
        %2472 = vmatpush1.msra.mxu0 0.0
        %2473 = vmatprep.subr.mxu0 0.0
        %2474 = vmatpush1.msra.mxu0 0.0
        %2475 = vmatprep.subr.mxu0 0.0
        %2476 = vmatpush1.msra.mxu0 0.0
        %2477 = vmatprep.subr.mxu0 0.0
        %2478 = vmatpush1.msra.mxu0 0.0
        %2479 = vmatprep.subr.mxu0 0.0
        %2480 = vmatpush1.msra.mxu0 0.0
        %2481 = vmatprep.subr.mxu0 0.0
        %2482 = vmatpush1.msra.mxu0 0.0
        %2483 = vmatprep.subr.mxu0 0.0
        %2484 = vmatpush1.msra.mxu0 0.0
        %2485 = vmatprep.subr.mxu0 0.0
        %v2486 = vand.u32 %v2455, 4294901760
        %2487 = vmatpush1.msra.mxu0 %v2486
        %2488 = vmatprep.subr.mxu0 0.0
        %v2489 = vand.u32 %v914, 4294901760
        %2490 = vmatpush1.msra.mxu0 %v2489
        %2491 = vmatprep.subr.mxu0 0.0
        %2492 = vmatpush2.msra.mxu0 0.0
        %2493 = vmatprep.subr.mxu0 0.0
        %2494 = vmatpush2.msra.mxu0 0.0
        %2495 = vmatprep.subr.mxu0 0.0
        %2496 = vmatpush2.msra.mxu0 0.0
        %2497 = vmatprep.subr.mxu0 0.0
        %2498 = vmatpush2.msra.mxu0 0.0
        %2499 = vmatprep.subr.mxu0 0.0
        %2500 = vmatpush2.msra.mxu0 0.0
        %2501 = vmatprep.subr.mxu0 0.0
        %2502 = vmatpush2.msra.mxu0 0.0
        %2503 = vmatprep.subr.mxu0 0.0
        %2504 = vmatpush2.msra.mxu0 0.0
        %2505 = vmatprep.subr.mxu0 0.0
        %2506 = vmatpush2.msra.mxu0 0.0
        %2507 = vmatprep.subr.mxu0 0.0
        %2508 = vmatpush2.msra.mxu0 0.0
        %2509 = vmatprep.subr.mxu0 0.0
        %2510 = vmatpush2.msra.mxu0 0.0
        %2511 = vmatprep.subr.mxu0 0.0
        %2512 = vmatpush2.msra.mxu0 0.0
        %2513 = vmatprep.subr.mxu0 0.0
        %2514 = vmatpush2.msra.mxu0 0.0
        %2515 = vmatprep.subr.mxu0 0.0
        %2516 = vmatpush2.msra.mxu0 0.0
        %2517 = vmatprep.subr.mxu0 0.0
        %2518 = vmatpush2.msra.mxu0 0.0
        %2519 = vmatprep.subr.mxu0 0.0
        %2520 = vmatpush2.msra.mxu0 0.0
        %2521 = vmatprep.subr.mxu0 0.0
        %2522 = vmatpush2.msra.mxu0 0.0
        %2523 = vmatprep.mubr.f32.mxu0 0.0
        %v2524 = vand.u32 %v2452, 4294901760
        %v2525 = vsub.f32 %v2452, %v2524
        %v2526 = vand.u32 %v2525, 4294901760
        %v2527 = vsub.f32 %v2525, %v2526
        %v2528 = vand.u32 %v2527, 4294901760
        %2529 = vmatmul.mubr.f32.gmra.mxu0 %v2528
        %v2530 = vpop.f32.mrf.mxu0
        %v2531 = vadd.f32 0.0, %v2530
        %v2532 = vpop.f32.mrf.mxu0
        %2533 = vdwg.mxu0
        %2534 = vmatprep.subr.mxu0 0.0
        %2535 = vmatpush1.msra.mxu0 0.0
        %2536 = vmatprep.subr.mxu0 0.0
        %2537 = vmatpush1.msra.mxu0 0.0
        %2538 = vmatprep.subr.mxu0 0.0
        %2539 = vmatpush1.msra.mxu0 0.0
        %2540 = vmatprep.subr.mxu0 0.0
        %2541 = vmatpush1.msra.mxu0 0.0
        %2542 = vmatprep.subr.mxu0 0.0
        %2543 = vmatpush1.msra.mxu0 0.0
        %2544 = vmatprep.subr.mxu0 0.0
        %2545 = vmatpush1.msra.mxu0 0.0
        %2546 = vmatprep.subr.mxu0 0.0
        %2547 = vmatpush1.msra.mxu0 0.0
        %2548 = vmatprep.subr.mxu0 0.0
        %2549 = vmatpush1.msra.mxu0 0.0
        %2550 = vmatprep.subr.mxu0 0.0
        %2551 = vmatpush1.msra.mxu0 0.0
        %2552 = vmatprep.subr.mxu0 0.0
        %2553 = vmatpush1.msra.mxu0 0.0
        %2554 = vmatprep.subr.mxu0 0.0
        %2555 = vmatpush1.msra.mxu0 0.0
        %2556 = vmatprep.subr.mxu0 0.0
        %2557 = vmatpush1.msra.mxu0 0.0
        %2558 = vmatprep.subr.mxu0 0.0
        %2559 = vmatpush1.msra.mxu0 0.0
        %2560 = vmatprep.subr.mxu0 0.0
        %2561 = vmatpush1.msra.mxu0 0.0
        %2562 = vmatprep.subr.mxu0 0.0
        %v2563 = vand.u32 %v2455, 4294901760
        %v2564 = vsub.f32 %v2455, %v2563
        %v2565 = vand.u32 %v2564, 4294901760
        %v2566 = vsub.f32 %v2564, %v2565
        %v2567 = vand.u32 %v2566, 4294901760
        %2568 = vmatpush1.msra.mxu0 %v2567
        %2569 = vmatprep.subr.mxu0 0.0
        %v2570 = vand.u32 %v914, 4294901760
        %v2571 = vsub.f32 %v914, %v2570
        %v2572 = vand.u32 %v2571, 4294901760
        %v2573 = vsub.f32 %v2571, %v2572
        %v2574 = vand.u32 %v2573, 4294901760
        %2575 = vmatpush1.msra.mxu0 %v2574
        %2576 = vmatprep.subr.mxu0 0.0
        %2577 = vmatpush2.msra.mxu0 0.0
        %2578 = vmatprep.subr.mxu0 0.0
        %2579 = vmatpush2.msra.mxu0 0.0
        %2580 = vmatprep.subr.mxu0 0.0
        %2581 = vmatpush2.msra.mxu0 0.0
        %2582 = vmatprep.subr.mxu0 0.0
        %2583 = vmatpush2.msra.mxu0 0.0
        %2584 = vmatprep.subr.mxu0 0.0
        %2585 = vmatpush2.msra.mxu0 0.0
        %2586 = vmatprep.subr.mxu0 0.0
        %2587 = vmatpush2.msra.mxu0 0.0
        %2588 = vmatprep.subr.mxu0 0.0
        %2589 = vmatpush2.msra.mxu0 0.0
        %2590 = vmatprep.subr.mxu0 0.0
        %2591 = vmatpush2.msra.mxu0 0.0
        %2592 = vmatprep.subr.mxu0 0.0
        %2593 = vmatpush2.msra.mxu0 0.0
        %2594 = vmatprep.subr.mxu0 0.0
        %2595 = vmatpush2.msra.mxu0 0.0
        %2596 = vmatprep.subr.mxu0 0.0
        %2597 = vmatpush2.msra.mxu0 0.0
        %2598 = vmatprep.subr.mxu0 0.0
        %2599 = vmatpush2.msra.mxu0 0.0
        %2600 = vmatprep.subr.mxu0 0.0
        %2601 = vmatpush2.msra.mxu0 0.0
        %2602 = vmatprep.subr.mxu0 0.0
        %2603 = vmatpush2.msra.mxu0 0.0
        %2604 = vmatprep.subr.mxu0 0.0
        %2605 = vmatpush2.msra.mxu0 0.0
        %2606 = vmatprep.subr.mxu0 0.0
        %2607 = vmatpush2.msra.mxu0 0.0
        %2608 = vmatprep.mubr.f32.mxu0 0.0
        %v2609 = vand.u32 %v2452, 4294901760
        %2610 = vmatmul.mubr.f32.gmra.mxu0 %v2609
        %v2611 = vpop.f32.mrf.mxu0
        %v2612 = vadd.f32 %v2531, %v2611
        %v2613 = vpop.f32.mrf.mxu0
        %2614 = vdwg.mxu0
        %2615 = vmatprep.subr.mxu0 0.0
        %2616 = vmatpush1.msra.mxu0 0.0
        %2617 = vmatprep.subr.mxu0 0.0
        %2618 = vmatpush1.msra.mxu0 0.0
        %2619 = vmatprep.subr.mxu0 0.0
        %2620 = vmatpush1.msra.mxu0 0.0
        %2621 = vmatprep.subr.mxu0 0.0
        %2622 = vmatpush1.msra.mxu0 0.0
        %2623 = vmatprep.subr.mxu0 0.0
        %2624 = vmatpush1.msra.mxu0 0.0
        %2625 = vmatprep.subr.mxu0 0.0
        %2626 = vmatpush1.msra.mxu0 0.0
        %2627 = vmatprep.subr.mxu0 0.0
        %2628 = vmatpush1.msra.mxu0 0.0
        %2629 = vmatprep.subr.mxu0 0.0
        %2630 = vmatpush1.msra.mxu0 0.0
        %2631 = vmatprep.subr.mxu0 0.0
        %2632 = vmatpush1.msra.mxu0 0.0
        %2633 = vmatprep.subr.mxu0 0.0
        %2634 = vmatpush1.msra.mxu0 0.0
        %2635 = vmatprep.subr.mxu0 0.0
        %2636 = vmatpush1.msra.mxu0 0.0
        %2637 = vmatprep.subr.mxu0 0.0
        %2638 = vmatpush1.msra.mxu0 0.0
        %2639 = vmatprep.subr.mxu0 0.0
        %2640 = vmatpush1.msra.mxu0 0.0
        %2641 = vmatprep.subr.mxu0 0.0
        %2642 = vmatpush1.msra.mxu0 0.0
        %2643 = vmatprep.subr.mxu0 0.0
        %v2644 = vand.u32 %v2455, 4294901760
        %v2645 = vsub.f32 %v2455, %v2644
        %2646 = vmatpush1.msra.mxu0 %v2645
        %2647 = vmatprep.subr.mxu0 0.0
        %v2648 = vand.u32 %v914, 4294901760
        %v2649 = vsub.f32 %v914, %v2648
        %2650 = vmatpush1.msra.mxu0 %v2649
        %2651 = vmatprep.subr.mxu0 0.0
        %2652 = vmatpush2.msra.mxu0 0.0
        %2653 = vmatprep.subr.mxu0 0.0
        %2654 = vmatpush2.msra.mxu0 0.0
        %2655 = vmatprep.subr.mxu0 0.0
        %2656 = vmatpush2.msra.mxu0 0.0
        %2657 = vmatprep.subr.mxu0 0.0
        %2658 = vmatpush2.msra.mxu0 0.0
        %2659 = vmatprep.subr.mxu0 0.0
        %2660 = vmatpush2.msra.mxu0 0.0
        %2661 = vmatprep.subr.mxu0 0.0
        %2662 = vmatpush2.msra.mxu0 0.0
        %2663 = vmatprep.subr.mxu0 0.0
        %2664 = vmatpush2.msra.mxu0 0.0
        %2665 = vmatprep.subr.mxu0 0.0
        %2666 = vmatpush2.msra.mxu0 0.0
        %2667 = vmatprep.subr.mxu0 0.0
        %2668 = vmatpush2.msra.mxu0 0.0
        %2669 = vmatprep.subr.mxu0 0.0
        %2670 = vmatpush2.msra.mxu0 0.0
        %2671 = vmatprep.subr.mxu0 0.0
        %2672 = vmatpush2.msra.mxu0 0.0
        %2673 = vmatprep.subr.mxu0 0.0
        %2674 = vmatpush2.msra.mxu0 0.0
        %2675 = vmatprep.subr.mxu0 0.0
        %2676 = vmatpush2.msra.mxu0 0.0
        %2677 = vmatprep.subr.mxu0 0.0
        %2678 = vmatpush2.msra.mxu0 0.0
        %2679 = vmatprep.subr.mxu0 0.0
        %2680 = vmatpush2.msra.mxu0 0.0
        %2681 = vmatprep.subr.mxu0 0.0
        %2682 = vmatpush2.msra.mxu0 0.0
        %2683 = vmatprep.mubr.f32.mxu0 0.0
        %v2684 = vand.u32 %v2452, 4294901760
        %v2685 = vsub.f32 %v2452, %v2684
        %2686 = vmatmul.mubr.f32.gmra.mxu0 %v2685
        %v2687 = vpop.f32.mrf.mxu0
        %v2688 = vadd.f32 %v2612, %v2687
        %v2689 = vpop.f32.mrf.mxu0
        %2690 = vdwg.mxu0
        %2691 = vmatprep.subr.mxu0 0.0
        %2692 = vmatpush1.msra.mxu0 0.0
        %2693 = vmatprep.subr.mxu0 0.0
        %2694 = vmatpush1.msra.mxu0 0.0
        %2695 = vmatprep.subr.mxu0 0.0
        %2696 = vmatpush1.msra.mxu0 0.0
        %2697 = vmatprep.subr.mxu0 0.0
        %2698 = vmatpush1.msra.mxu0 0.0
        %2699 = vmatprep.subr.mxu0 0.0
        %2700 = vmatpush1.msra.mxu0 0.0
        %2701 = vmatprep.subr.mxu0 0.0
        %2702 = vmatpush1.msra.mxu0 0.0
        %2703 = vmatprep.subr.mxu0 0.0
        %2704 = vmatpush1.msra.mxu0 0.0
        %2705 = vmatprep.subr.mxu0 0.0
        %2706 = vmatpush1.msra.mxu0 0.0
        %2707 = vmatprep.subr.mxu0 0.0
        %2708 = vmatpush1.msra.mxu0 0.0
        %2709 = vmatprep.subr.mxu0 0.0
        %2710 = vmatpush1.msra.mxu0 0.0
        %2711 = vmatprep.subr.mxu0 0.0
        %2712 = vmatpush1.msra.mxu0 0.0
        %2713 = vmatprep.subr.mxu0 0.0
        %2714 = vmatpush1.msra.mxu0 0.0
        %2715 = vmatprep.subr.mxu0 0.0
        %2716 = vmatpush1.msra.mxu0 0.0
        %2717 = vmatprep.subr.mxu0 0.0
        %2718 = vmatpush1.msra.mxu0 0.0
        %2719 = vmatprep.subr.mxu0 0.0
        %v2720 = vand.u32 %v2455, 4294901760
        %2721 = vmatpush1.msra.mxu0 %v2720
        %2722 = vmatprep.subr.mxu0 0.0
        %v2723 = vand.u32 %v914, 4294901760
        %2724 = vmatpush1.msra.mxu0 %v2723
        %2725 = vmatprep.subr.mxu0 0.0
        %2726 = vmatpush2.msra.mxu0 0.0
        %2727 = vmatprep.subr.mxu0 0.0
        %2728 = vmatpush2.msra.mxu0 0.0
        %2729 = vmatprep.subr.mxu0 0.0
        %2730 = vmatpush2.msra.mxu0 0.0
        %2731 = vmatprep.subr.mxu0 0.0
        %2732 = vmatpush2.msra.mxu0 0.0
        %2733 = vmatprep.subr.mxu0 0.0
        %2734 = vmatpush2.msra.mxu0 0.0
        %2735 = vmatprep.subr.mxu0 0.0
        %2736 = vmatpush2.msra.mxu0 0.0
        %2737 = vmatprep.subr.mxu0 0.0
        %2738 = vmatpush2.msra.mxu0 0.0
        %2739 = vmatprep.subr.mxu0 0.0
        %2740 = vmatpush2.msra.mxu0 0.0
        %2741 = vmatprep.subr.mxu0 0.0
        %2742 = vmatpush2.msra.mxu0 0.0
        %2743 = vmatprep.subr.mxu0 0.0
        %2744 = vmatpush2.msra.mxu0 0.0
        %2745 = vmatprep.subr.mxu0 0.0
        %2746 = vmatpush2.msra.mxu0 0.0
        %2747 = vmatprep.subr.mxu0 0.0
        %2748 = vmatpush2.msra.mxu0 0.0
        %2749 = vmatprep.subr.mxu0 0.0
        %2750 = vmatpush2.msra.mxu0 0.0
        %2751 = vmatprep.subr.mxu0 0.0
        %2752 = vmatpush2.msra.mxu0 0.0
        %2753 = vmatprep.subr.mxu0 0.0
        %2754 = vmatpush2.msra.mxu0 0.0
        %2755 = vmatprep.subr.mxu0 0.0
        %2756 = vmatpush2.msra.mxu0 0.0
        %2757 = vmatprep.mubr.f32.mxu0 0.0
        %v2758 = vand.u32 %v2452, 4294901760
        %v2759 = vsub.f32 %v2452, %v2758
        %v2760 = vand.u32 %v2759, 4294901760
        %2761 = vmatmul.mubr.f32.gmra.mxu0 %v2760
        %v2762 = vpop.f32.mrf.mxu0
        %v2763 = vadd.f32 %v2688, %v2762
        %v2764 = vpop.f32.mrf.mxu0
        %2765 = vdwg.mxu0
        %2766 = vmatprep.subr.mxu0 0.0
        %2767 = vmatpush1.msra.mxu0 0.0
        %2768 = vmatprep.subr.mxu0 0.0
        %2769 = vmatpush1.msra.mxu0 0.0
        %2770 = vmatprep.subr.mxu0 0.0
        %2771 = vmatpush1.msra.mxu0 0.0
        %2772 = vmatprep.subr.mxu0 0.0
        %2773 = vmatpush1.msra.mxu0 0.0
        %2774 = vmatprep.subr.mxu0 0.0
        %2775 = vmatpush1.msra.mxu0 0.0
        %2776 = vmatprep.subr.mxu0 0.0
        %2777 = vmatpush1.msra.mxu0 0.0
        %2778 = vmatprep.subr.mxu0 0.0
        %2779 = vmatpush1.msra.mxu0 0.0
        %2780 = vmatprep.subr.mxu0 0.0
        %2781 = vmatpush1.msra.mxu0 0.0
        %2782 = vmatprep.subr.mxu0 0.0
        %2783 = vmatpush1.msra.mxu0 0.0
        %2784 = vmatprep.subr.mxu0 0.0
        %2785 = vmatpush1.msra.mxu0 0.0
        %2786 = vmatprep.subr.mxu0 0.0
        %2787 = vmatpush1.msra.mxu0 0.0
        %2788 = vmatprep.subr.mxu0 0.0
        %2789 = vmatpush1.msra.mxu0 0.0
        %2790 = vmatprep.subr.mxu0 0.0
        %2791 = vmatpush1.msra.mxu0 0.0
        %2792 = vmatprep.subr.mxu0 0.0
        %2793 = vmatpush1.msra.mxu0 0.0
        %2794 = vmatprep.subr.mxu0 0.0
        %v2795 = vand.u32 %v2455, 4294901760
        %v2796 = vsub.f32 %v2455, %v2795
        %v2797 = vand.u32 %v2796, 4294901760
        %2798 = vmatpush1.msra.mxu0 %v2797
        %2799 = vmatprep.subr.mxu0 0.0
        %v2800 = vand.u32 %v914, 4294901760
        %v2801 = vsub.f32 %v914, %v2800
        %v2802 = vand.u32 %v2801, 4294901760
        %2803 = vmatpush1.msra.mxu0 %v2802
        %2804 = vmatprep.subr.mxu0 0.0
        %2805 = vmatpush2.msra.mxu0 0.0
        %2806 = vmatprep.subr.mxu0 0.0
        %2807 = vmatpush2.msra.mxu0 0.0
        %2808 = vmatprep.subr.mxu0 0.0
        %2809 = vmatpush2.msra.mxu0 0.0
        %2810 = vmatprep.subr.mxu0 0.0
        %2811 = vmatpush2.msra.mxu0 0.0
        %2812 = vmatprep.subr.mxu0 0.0
        %2813 = vmatpush2.msra.mxu0 0.0
        %2814 = vmatprep.subr.mxu0 0.0
        %2815 = vmatpush2.msra.mxu0 0.0
        %2816 = vmatprep.subr.mxu0 0.0
        %2817 = vmatpush2.msra.mxu0 0.0
        %2818 = vmatprep.subr.mxu0 0.0
        %2819 = vmatpush2.msra.mxu0 0.0
        %2820 = vmatprep.subr.mxu0 0.0
        %2821 = vmatpush2.msra.mxu0 0.0
        %2822 = vmatprep.subr.mxu0 0.0
        %2823 = vmatpush2.msra.mxu0 0.0
        %2824 = vmatprep.subr.mxu0 0.0
        %2825 = vmatpush2.msra.mxu0 0.0
        %2826 = vmatprep.subr.mxu0 0.0
        %2827 = vmatpush2.msra.mxu0 0.0
        %2828 = vmatprep.subr.mxu0 0.0
        %2829 = vmatpush2.msra.mxu0 0.0
        %2830 = vmatprep.subr.mxu0 0.0
        %2831 = vmatpush2.msra.mxu0 0.0
        %2832 = vmatprep.subr.mxu0 0.0
        %2833 = vmatpush2.msra.mxu0 0.0
        %2834 = vmatprep.subr.mxu0 0.0
        %2835 = vmatpush2.msra.mxu0 0.0
        %2836 = vmatprep.mubr.f32.mxu0 0.0
        %v2837 = vand.u32 %v2452, 4294901760
        %2838 = vmatmul.mubr.f32.gmra.mxu0 %v2837
        %v2839 = vpop.f32.mrf.mxu0
        %v2840 = vadd.f32 %v2763, %v2839
        %v2841 = vpop.f32.mrf.mxu0
        %2842 = vdwg.mxu0
        %2843 = vmatprep.subr.mxu0 0.0
        %2844 = vmatpush1.msra.mxu0 0.0
        %2845 = vmatprep.subr.mxu0 0.0
        %2846 = vmatpush1.msra.mxu0 0.0
        %2847 = vmatprep.subr.mxu0 0.0
        %2848 = vmatpush1.msra.mxu0 0.0
        %2849 = vmatprep.subr.mxu0 0.0
        %2850 = vmatpush1.msra.mxu0 0.0
        %2851 = vmatprep.subr.mxu0 0.0
        %2852 = vmatpush1.msra.mxu0 0.0
        %2853 = vmatprep.subr.mxu0 0.0
        %2854 = vmatpush1.msra.mxu0 0.0
        %2855 = vmatprep.subr.mxu0 0.0
        %2856 = vmatpush1.msra.mxu0 0.0
        %2857 = vmatprep.subr.mxu0 0.0
        %2858 = vmatpush1.msra.mxu0 0.0
        %2859 = vmatprep.subr.mxu0 0.0
        %2860 = vmatpush1.msra.mxu0 0.0
        %2861 = vmatprep.subr.mxu0 0.0
        %2862 = vmatpush1.msra.mxu0 0.0
        %2863 = vmatprep.subr.mxu0 0.0
        %2864 = vmatpush1.msra.mxu0 0.0
        %2865 = vmatprep.subr.mxu0 0.0
        %2866 = vmatpush1.msra.mxu0 0.0
        %2867 = vmatprep.subr.mxu0 0.0
        %2868 = vmatpush1.msra.mxu0 0.0
        %2869 = vmatprep.subr.mxu0 0.0
        %2870 = vmatpush1.msra.mxu0 0.0
        %2871 = vmatprep.subr.mxu0 0.0
        %v2872 = vand.u32 %v2455, 4294901760
        %2873 = vmatpush1.msra.mxu0 %v2872
        %2874 = vmatprep.subr.mxu0 0.0
        %v2875 = vand.u32 %v914, 4294901760
        %2876 = vmatpush1.msra.mxu0 %v2875
        %2877 = vmatprep.subr.mxu0 0.0
        %2878 = vmatpush2.msra.mxu0 0.0
        %2879 = vmatprep.subr.mxu0 0.0
        %2880 = vmatpush2.msra.mxu0 0.0
        %2881 = vmatprep.subr.mxu0 0.0
        %2882 = vmatpush2.msra.mxu0 0.0
        %2883 = vmatprep.subr.mxu0 0.0
        %2884 = vmatpush2.msra.mxu0 0.0
        %2885 = vmatprep.subr.mxu0 0.0
        %2886 = vmatpush2.msra.mxu0 0.0
        %2887 = vmatprep.subr.mxu0 0.0
        %2888 = vmatpush2.msra.mxu0 0.0
        %2889 = vmatprep.subr.mxu0 0.0
        %2890 = vmatpush2.msra.mxu0 0.0
        %2891 = vmatprep.subr.mxu0 0.0
        %2892 = vmatpush2.msra.mxu0 0.0
        %2893 = vmatprep.subr.mxu0 0.0
        %2894 = vmatpush2.msra.mxu0 0.0
        %2895 = vmatprep.subr.mxu0 0.0
        %2896 = vmatpush2.msra.mxu0 0.0
        %2897 = vmatprep.subr.mxu0 0.0
        %2898 = vmatpush2.msra.mxu0 0.0
        %2899 = vmatprep.subr.mxu0 0.0
        %2900 = vmatpush2.msra.mxu0 0.0
        %2901 = vmatprep.subr.mxu0 0.0
        %2902 = vmatpush2.msra.mxu0 0.0
        %2903 = vmatprep.subr.mxu0 0.0
        %2904 = vmatpush2.msra.mxu0 0.0
        %2905 = vmatprep.subr.mxu0 0.0
        %2906 = vmatpush2.msra.mxu0 0.0
        %2907 = vmatprep.subr.mxu0 0.0
        %2908 = vmatpush2.msra.mxu0 0.0
        %2909 = vmatprep.mubr.f32.mxu0 0.0
        %v2910 = vand.u32 %v2452, 4294901760
        %2911 = vmatmul.mubr.f32.gmra.mxu0 %v2910
        %v2912 = vpop.f32.mrf.mxu0
        %v2913 = vadd.f32 %v2840, %v2912
        %v2914 = vpop.f32.mrf.mxu0
        %2915 = vdwg.mxu0
        %v2917 = vsel %vm329, %v1428, 0
        %2919 = vmatprep.subr.mxu0 0.0
        %2920 = vmatpush1.msra.mxu0 0.0
        %2921 = vmatprep.subr.mxu0 0.0
        %2922 = vmatpush1.msra.mxu0 0.0
        %2923 = vmatprep.subr.mxu0 0.0
        %2924 = vmatpush1.msra.mxu0 0.0
        %2925 = vmatprep.subr.mxu0 0.0
        %2926 = vmatpush1.msra.mxu0 0.0
        %2927 = vmatprep.subr.mxu0 0.0
        %2928 = vmatpush1.msra.mxu0 0.0
        %2929 = vmatprep.subr.mxu0 0.0
        %2930 = vmatpush1.msra.mxu0 0.0
        %2931 = vmatprep.subr.mxu0 0.0
        %2932 = vmatpush1.msra.mxu0 0.0
        %2933 = vmatprep.subr.mxu0 0.0
        %2934 = vmatpush1.msra.mxu0 0.0
        %2935 = vmatprep.subr.mxu0 0.0
        %2936 = vmatpush1.msra.mxu0 0.0
        %2937 = vmatprep.subr.mxu0 0.0
        %2938 = vmatpush1.msra.mxu0 0.0
        %2939 = vmatprep.subr.mxu0 0.0
        %2940 = vmatpush1.msra.mxu0 0.0
        %2941 = vmatprep.subr.mxu0 0.0
        %2942 = vmatpush1.msra.mxu0 0.0
        %2943 = vmatprep.subr.mxu0 0.0
        %2944 = vmatpush1.msra.mxu0 0.0
        %2945 = vmatprep.subr.mxu0 0.0
        %2946 = vmatpush1.msra.mxu0 0.0
        %2947 = vmatprep.subr.mxu0 0.0
        %v2948 = vand.u32 %v2917, 4294901760
        %2949 = vmatpush1.msra.mxu0 %v2948
        %2950 = vmatprep.subr.mxu0 0.0
        %v2951 = vand.u32 %v1422, 4294901760
        %2952 = vmatpush1.msra.mxu0 %v2951
        %2953 = vmatprep.subr.mxu0 0.0
        %2954 = vmatpush2.msra.mxu0 0.0
        %2955 = vmatprep.subr.mxu0 0.0
        %2956 = vmatpush2.msra.mxu0 0.0
        %2957 = vmatprep.subr.mxu0 0.0
        %2958 = vmatpush2.msra.mxu0 0.0
        %2959 = vmatprep.subr.mxu0 0.0
        %2960 = vmatpush2.msra.mxu0 0.0
        %2961 = vmatprep.subr.mxu0 0.0
        %2962 = vmatpush2.msra.mxu0 0.0
        %2963 = vmatprep.subr.mxu0 0.0
        %2964 = vmatpush2.msra.mxu0 0.0
        %2965 = vmatprep.subr.mxu0 0.0
        %2966 = vmatpush2.msra.mxu0 0.0
        %2967 = vmatprep.subr.mxu0 0.0
        %2968 = vmatpush2.msra.mxu0 0.0
        %2969 = vmatprep.subr.mxu0 0.0
        %2970 = vmatpush2.msra.mxu0 0.0
        %2971 = vmatprep.subr.mxu0 0.0
        %2972 = vmatpush2.msra.mxu0 0.0
        %2973 = vmatprep.subr.mxu0 0.0
        %2974 = vmatpush2.msra.mxu0 0.0
        %2975 = vmatprep.subr.mxu0 0.0
        %2976 = vmatpush2.msra.mxu0 0.0
        %2977 = vmatprep.subr.mxu0 0.0
        %2978 = vmatpush2.msra.mxu0 0.0
        %2979 = vmatprep.subr.mxu0 0.0
        %2980 = vmatpush2.msra.mxu0 0.0
        %2981 = vmatprep.subr.mxu0 0.0
        %2982 = vmatpush2.msra.mxu0 0.0
        %2983 = vmatprep.subr.mxu0 0.0
        %2984 = vmatpush2.msra.mxu0 0.0
        %2985 = vmatprep.mubr.f32.mxu0 0.0
        %v2986 = vand.u32 %v2452, 4294901760
        %v2987 = vsub.f32 %v2452, %v2986
        %v2988 = vand.u32 %v2987, 4294901760
        %v2989 = vsub.f32 %v2987, %v2988
        %v2990 = vand.u32 %v2989, 4294901760
        %2991 = vmatmul.mubr.f32.gmra.mxu0 %v2990
        %v2992 = vpop.f32.mrf.mxu0
        %v2993 = vadd.f32 0.0, %v2992
        %v2994 = vpop.f32.mrf.mxu0
        %2995 = vdwg.mxu0
        %2996 = vmatprep.subr.mxu0 0.0
        %2997 = vmatpush1.msra.mxu0 0.0
        %2998 = vmatprep.subr.mxu0 0.0
        %2999 = vmatpush1.msra.mxu0 0.0
        %3000 = vmatprep.subr.mxu0 0.0
        %3001 = vmatpush1.msra.mxu0 0.0
        %3002 = vmatprep.subr.mxu0 0.0
        %3003 = vmatpush1.msra.mxu0 0.0
        %3004 = vmatprep.subr.mxu0 0.0
        %3005 = vmatpush1.msra.mxu0 0.0
        %3006 = vmatprep.subr.mxu0 0.0
        %3007 = vmatpush1.msra.mxu0 0.0
        %3008 = vmatprep.subr.mxu0 0.0
        %3009 = vmatpush1.msra.mxu0 0.0
        %3010 = vmatprep.subr.mxu0 0.0
        %3011 = vmatpush1.msra.mxu0 0.0
        %3012 = vmatprep.subr.mxu0 0.0
        %3013 = vmatpush1.msra.mxu0 0.0
        %3014 = vmatprep.subr.mxu0 0.0
        %3015 = vmatpush1.msra.mxu0 0.0
        %3016 = vmatprep.subr.mxu0 0.0
        %3017 = vmatpush1.msra.mxu0 0.0
        %3018 = vmatprep.subr.mxu0 0.0
        %3019 = vmatpush1.msra.mxu0 0.0
        %3020 = vmatprep.subr.mxu0 0.0
        %3021 = vmatpush1.msra.mxu0 0.0
        %3022 = vmatprep.subr.mxu0 0.0
        %3023 = vmatpush1.msra.mxu0 0.0
        %3024 = vmatprep.subr.mxu0 0.0
        %v3025 = vand.u32 %v2917, 4294901760
        %v3026 = vsub.f32 %v2917, %v3025
        %v3027 = vand.u32 %v3026, 4294901760
        %v3028 = vsub.f32 %v3026, %v3027
        %v3029 = vand.u32 %v3028, 4294901760
        %3030 = vmatpush1.msra.mxu0 %v3029
        %3031 = vmatprep.subr.mxu0 0.0
        %v3032 = vand.u32 %v1422, 4294901760
        %v3033 = vsub.f32 %v1422, %v3032
        %v3034 = vand.u32 %v3033, 4294901760
        %v3035 = vsub.f32 %v3033, %v3034
        %v3036 = vand.u32 %v3035, 4294901760
        %3037 = vmatpush1.msra.mxu0 %v3036
        %3038 = vmatprep.subr.mxu0 0.0
        %3039 = vmatpush2.msra.mxu0 0.0
        %3040 = vmatprep.subr.mxu0 0.0
        %3041 = vmatpush2.msra.mxu0 0.0
        %3042 = vmatprep.subr.mxu0 0.0
        %3043 = vmatpush2.msra.mxu0 0.0
        %3044 = vmatprep.subr.mxu0 0.0
        %3045 = vmatpush2.msra.mxu0 0.0
        %3046 = vmatprep.subr.mxu0 0.0
        %3047 = vmatpush2.msra.mxu0 0.0
        %3048 = vmatprep.subr.mxu0 0.0
        %3049 = vmatpush2.msra.mxu0 0.0
        %3050 = vmatprep.subr.mxu0 0.0
        %3051 = vmatpush2.msra.mxu0 0.0
        %3052 = vmatprep.subr.mxu0 0.0
        %3053 = vmatpush2.msra.mxu0 0.0
        %3054 = vmatprep.subr.mxu0 0.0
        %3055 = vmatpush2.msra.mxu0 0.0
        %3056 = vmatprep.subr.mxu0 0.0
        %3057 = vmatpush2.msra.mxu0 0.0
        %3058 = vmatprep.subr.mxu0 0.0
        %3059 = vmatpush2.msra.mxu0 0.0
        %3060 = vmatprep.subr.mxu0 0.0
        %3061 = vmatpush2.msra.mxu0 0.0
        %3062 = vmatprep.subr.mxu0 0.0
        %3063 = vmatpush2.msra.mxu0 0.0
        %3064 = vmatprep.subr.mxu0 0.0
        %3065 = vmatpush2.msra.mxu0 0.0
        %3066 = vmatprep.subr.mxu0 0.0
        %3067 = vmatpush2.msra.mxu0 0.0
        %3068 = vmatprep.subr.mxu0 0.0
        %3069 = vmatpush2.msra.mxu0 0.0
        %3070 = vmatprep.mubr.f32.mxu0 0.0
        %v3071 = vand.u32 %v2452, 4294901760
        %3072 = vmatmul.mubr.f32.gmra.mxu0 %v3071
        %v3073 = vpop.f32.mrf.mxu0
        %v3074 = vadd.f32 %v2993, %v3073
        %v3075 = vpop.f32.mrf.mxu0
        %3076 = vdwg.mxu0
        %3077 = vmatprep.subr.mxu0 0.0
        %3078 = vmatpush1.msra.mxu0 0.0
        %3079 = vmatprep.subr.mxu0 0.0
        %3080 = vmatpush1.msra.mxu0 0.0
        %3081 = vmatprep.subr.mxu0 0.0
        %3082 = vmatpush1.msra.mxu0 0.0
        %3083 = vmatprep.subr.mxu0 0.0
        %3084 = vmatpush1.msra.mxu0 0.0
        %3085 = vmatprep.subr.mxu0 0.0
        %3086 = vmatpush1.msra.mxu0 0.0
        %3087 = vmatprep.subr.mxu0 0.0
        %3088 = vmatpush1.msra.mxu0 0.0
        %3089 = vmatprep.subr.mxu0 0.0
        %3090 = vmatpush1.msra.mxu0 0.0
        %3091 = vmatprep.subr.mxu0 0.0
        %3092 = vmatpush1.msra.mxu0 0.0
        %3093 = vmatprep.subr.mxu0 0.0
        %3094 = vmatpush1.msra.mxu0 0.0
        %3095 = vmatprep.subr.mxu0 0.0
        %3096 = vmatpush1.msra.mxu0 0.0
        %3097 = vmatprep.subr.mxu0 0.0
        %3098 = vmatpush1.msra.mxu0 0.0
        %3099 = vmatprep.subr.mxu0 0.0
        %3100 = vmatpush1.msra.mxu0 0.0
        %3101 = vmatprep.subr.mxu0 0.0
        %3102 = vmatpush1.msra.mxu0 0.0
        %3103 = vmatprep.subr.mxu0 0.0
        %3104 = vmatpush1.msra.mxu0 0.0
        %3105 = vmatprep.subr.mxu0 0.0
        %v3106 = vand.u32 %v2917, 4294901760
        %v3107 = vsub.f32 %v2917, %v3106
        %3108 = vmatpush1.msra.mxu0 %v3107
        %3109 = vmatprep.subr.mxu0 0.0
        %v3110 = vand.u32 %v1422, 4294901760
        %v3111 = vsub.f32 %v1422, %v3110
        %3112 = vmatpush1.msra.mxu0 %v3111
        %3113 = vmatprep.subr.mxu0 0.0
        %3114 = vmatpush2.msra.mxu0 0.0
        %3115 = vmatprep.subr.mxu0 0.0
        %3116 = vmatpush2.msra.mxu0 0.0
        %3117 = vmatprep.subr.mxu0 0.0
        %3118 = vmatpush2.msra.mxu0 0.0
        %3119 = vmatprep.subr.mxu0 0.0
        %3120 = vmatpush2.msra.mxu0 0.0
        %3121 = vmatprep.subr.mxu0 0.0
        %3122 = vmatpush2.msra.mxu0 0.0
        %3123 = vmatprep.subr.mxu0 0.0
        %3124 = vmatpush2.msra.mxu0 0.0
        %3125 = vmatprep.subr.mxu0 0.0
        %3126 = vmatpush2.msra.mxu0 0.0
        %3127 = vmatprep.subr.mxu0 0.0
        %3128 = vmatpush2.msra.mxu0 0.0
        %3129 = vmatprep.subr.mxu0 0.0
        %3130 = vmatpush2.msra.mxu0 0.0
        %3131 = vmatprep.subr.mxu0 0.0
        %3132 = vmatpush2.msra.mxu0 0.0
        %3133 = vmatprep.subr.mxu0 0.0
        %3134 = vmatpush2.msra.mxu0 0.0
        %3135 = vmatprep.subr.mxu0 0.0
        %3136 = vmatpush2.msra.mxu0 0.0
        %3137 = vmatprep.subr.mxu0 0.0
        %3138 = vmatpush2.msra.mxu0 0.0
        %3139 = vmatprep.subr.mxu0 0.0
        %3140 = vmatpush2.msra.mxu0 0.0
        %3141 = vmatprep.subr.mxu0 0.0
        %3142 = vmatpush2.msra.mxu0 0.0
        %3143 = vmatprep.subr.mxu0 0.0
        %3144 = vmatpush2.msra.mxu0 0.0
        %3145 = vmatprep.mubr.f32.mxu0 0.0
        %v3146 = vand.u32 %v2452, 4294901760
        %v3147 = vsub.f32 %v2452, %v3146
        %3148 = vmatmul.mubr.f32.gmra.mxu0 %v3147
        %v3149 = vpop.f32.mrf.mxu0
        %v3150 = vadd.f32 %v3074, %v3149
        %v3151 = vpop.f32.mrf.mxu0
        %3152 = vdwg.mxu0
        %3153 = vmatprep.subr.mxu0 0.0
        %3154 = vmatpush1.msra.mxu0 0.0
        %3155 = vmatprep.subr.mxu0 0.0
        %3156 = vmatpush1.msra.mxu0 0.0
        %3157 = vmatprep.subr.mxu0 0.0
        %3158 = vmatpush1.msra.mxu0 0.0
        %3159 = vmatprep.subr.mxu0 0.0
        %3160 = vmatpush1.msra.mxu0 0.0
        %3161 = vmatprep.subr.mxu0 0.0
        %3162 = vmatpush1.msra.mxu0 0.0
        %3163 = vmatprep.subr.mxu0 0.0
        %3164 = vmatpush1.msra.mxu0 0.0
        %3165 = vmatprep.subr.mxu0 0.0
        %3166 = vmatpush1.msra.mxu0 0.0
        %3167 = vmatprep.subr.mxu0 0.0
        %3168 = vmatpush1.msra.mxu0 0.0
        %3169 = vmatprep.subr.mxu0 0.0
        %3170 = vmatpush1.msra.mxu0 0.0
        %3171 = vmatprep.subr.mxu0 0.0
        %3172 = vmatpush1.msra.mxu0 0.0
        %3173 = vmatprep.subr.mxu0 0.0
        %3174 = vmatpush1.msra.mxu0 0.0
        %3175 = vmatprep.subr.mxu0 0.0
        %3176 = vmatpush1.msra.mxu0 0.0
        %3177 = vmatprep.subr.mxu0 0.0
        %3178 = vmatpush1.msra.mxu0 0.0
        %3179 = vmatprep.subr.mxu0 0.0
        %3180 = vmatpush1.msra.mxu0 0.0
        %3181 = vmatprep.subr.mxu0 0.0
        %v3182 = vand.u32 %v2917, 4294901760
        %3183 = vmatpush1.msra.mxu0 %v3182
        %3184 = vmatprep.subr.mxu0 0.0
        %v3185 = vand.u32 %v1422, 4294901760
        %3186 = vmatpush1.msra.mxu0 %v3185
        %3187 = vmatprep.subr.mxu0 0.0
        %3188 = vmatpush2.msra.mxu0 0.0
        %3189 = vmatprep.subr.mxu0 0.0
        %3190 = vmatpush2.msra.mxu0 0.0
        %3191 = vmatprep.subr.mxu0 0.0
        %3192 = vmatpush2.msra.mxu0 0.0
        %3193 = vmatprep.subr.mxu0 0.0
        %3194 = vmatpush2.msra.mxu0 0.0
        %3195 = vmatprep.subr.mxu0 0.0
        %3196 = vmatpush2.msra.mxu0 0.0
        %3197 = vmatprep.subr.mxu0 0.0
        %3198 = vmatpush2.msra.mxu0 0.0
        %3199 = vmatprep.subr.mxu0 0.0
        %3200 = vmatpush2.msra.mxu0 0.0
        %3201 = vmatprep.subr.mxu0 0.0
        %3202 = vmatpush2.msra.mxu0 0.0
        %3203 = vmatprep.subr.mxu0 0.0
        %3204 = vmatpush2.msra.mxu0 0.0
        %3205 = vmatprep.subr.mxu0 0.0
        %3206 = vmatpush2.msra.mxu0 0.0
        %3207 = vmatprep.subr.mxu0 0.0
        %3208 = vmatpush2.msra.mxu0 0.0
        %3209 = vmatprep.subr.mxu0 0.0
        %3210 = vmatpush2.msra.mxu0 0.0
        %3211 = vmatprep.subr.mxu0 0.0
        %3212 = vmatpush2.msra.mxu0 0.0
        %3213 = vmatprep.subr.mxu0 0.0
        %3214 = vmatpush2.msra.mxu0 0.0
        %3215 = vmatprep.subr.mxu0 0.0
        %3216 = vmatpush2.msra.mxu0 0.0
        %3217 = vmatprep.subr.mxu0 0.0
        %3218 = vmatpush2.msra.mxu0 0.0
        %3219 = vmatprep.mubr.f32.mxu0 0.0
        %v3220 = vand.u32 %v2452, 4294901760
        %v3221 = vsub.f32 %v2452, %v3220
        %v3222 = vand.u32 %v3221, 4294901760
        %3223 = vmatmul.mubr.f32.gmra.mxu0 %v3222
        %v3224 = vpop.f32.mrf.mxu0
        %v3225 = vadd.f32 %v3150, %v3224
        %v3226 = vpop.f32.mrf.mxu0
        %3227 = vdwg.mxu0
        %3228 = vmatprep.subr.mxu0 0.0
        %3229 = vmatpush1.msra.mxu0 0.0
        %3230 = vmatprep.subr.mxu0 0.0
        %3231 = vmatpush1.msra.mxu0 0.0
        %3232 = vmatprep.subr.mxu0 0.0
        %3233 = vmatpush1.msra.mxu0 0.0
        %3234 = vmatprep.subr.mxu0 0.0
        %3235 = vmatpush1.msra.mxu0 0.0
        %3236 = vmatprep.subr.mxu0 0.0
        %3237 = vmatpush1.msra.mxu0 0.0
        %3238 = vmatprep.subr.mxu0 0.0
        %3239 = vmatpush1.msra.mxu0 0.0
        %3240 = vmatprep.subr.mxu0 0.0
        %3241 = vmatpush1.msra.mxu0 0.0
        %3242 = vmatprep.subr.mxu0 0.0
        %3243 = vmatpush1.msra.mxu0 0.0
        %3244 = vmatprep.subr.mxu0 0.0
        %3245 = vmatpush1.msra.mxu0 0.0
        %3246 = vmatprep.subr.mxu0 0.0
        %3247 = vmatpush1.msra.mxu0 0.0
        %3248 = vmatprep.subr.mxu0 0.0
        %3249 = vmatpush1.msra.mxu0 0.0
        %3250 = vmatprep.subr.mxu0 0.0
        %3251 = vmatpush1.msra.mxu0 0.0
        %3252 = vmatprep.subr.mxu0 0.0
        %3253 = vmatpush1.msra.mxu0 0.0
        %3254 = vmatprep.subr.mxu0 0.0
        %3255 = vmatpush1.msra.mxu0 0.0
        %3256 = vmatprep.subr.mxu0 0.0
        %v3257 = vand.u32 %v2917, 4294901760
        %v3258 = vsub.f32 %v2917, %v3257
        %v3259 = vand.u32 %v3258, 4294901760
        %3260 = vmatpush1.msra.mxu0 %v3259
        %3261 = vmatprep.subr.mxu0 0.0
        %v3262 = vand.u32 %v1422, 4294901760
        %v3263 = vsub.f32 %v1422, %v3262
        %v3264 = vand.u32 %v3263, 4294901760
        %3265 = vmatpush1.msra.mxu0 %v3264
        %3266 = vmatprep.subr.mxu0 0.0
        %3267 = vmatpush2.msra.mxu0 0.0
        %3268 = vmatprep.subr.mxu0 0.0
        %3269 = vmatpush2.msra.mxu0 0.0
        %3270 = vmatprep.subr.mxu0 0.0
        %3271 = vmatpush2.msra.mxu0 0.0
        %3272 = vmatprep.subr.mxu0 0.0
        %3273 = vmatpush2.msra.mxu0 0.0
        %3274 = vmatprep.subr.mxu0 0.0
        %3275 = vmatpush2.msra.mxu0 0.0
        %3276 = vmatprep.subr.mxu0 0.0
        %3277 = vmatpush2.msra.mxu0 0.0
        %3278 = vmatprep.subr.mxu0 0.0
        %3279 = vmatpush2.msra.mxu0 0.0
        %3280 = vmatprep.subr.mxu0 0.0
        %3281 = vmatpush2.msra.mxu0 0.0
        %3282 = vmatprep.subr.mxu0 0.0
        %3283 = vmatpush2.msra.mxu0 0.0
        %3284 = vmatprep.subr.mxu0 0.0
        %3285 = vmatpush2.msra.mxu0 0.0
        %3286 = vmatprep.subr.mxu0 0.0
        %3287 = vmatpush2.msra.mxu0 0.0
        %3288 = vmatprep.subr.mxu0 0.0
        %3289 = vmatpush2.msra.mxu0 0.0
        %3290 = vmatprep.subr.mxu0 0.0
        %3291 = vmatpush2.msra.mxu0 0.0
        %3292 = vmatprep.subr.mxu0 0.0
        %3293 = vmatpush2.msra.mxu0 0.0
        %3294 = vmatprep.subr.mxu0 0.0
        %3295 = vmatpush2.msra.mxu0 0.0
        %3296 = vmatprep.subr.mxu0 0.0
        %3297 = vmatpush2.msra.mxu0 0.0
        %3298 = vmatprep.mubr.f32.mxu0 0.0
        %v3299 = vand.u32 %v2452, 4294901760
        %3300 = vmatmul.mubr.f32.gmra.mxu0 %v3299
        %v3301 = vpop.f32.mrf.mxu0
        %v3302 = vadd.f32 %v3225, %v3301
        %v3303 = vpop.f32.mrf.mxu0
        %3304 = vdwg.mxu0
        %3305 = vmatprep.subr.mxu0 0.0
        %3306 = vmatpush1.msra.mxu0 0.0
        %3307 = vmatprep.subr.mxu0 0.0
        %3308 = vmatpush1.msra.mxu0 0.0
        %3309 = vmatprep.subr.mxu0 0.0
        %3310 = vmatpush1.msra.mxu0 0.0
        %3311 = vmatprep.subr.mxu0 0.0
        %3312 = vmatpush1.msra.mxu0 0.0
        %3313 = vmatprep.subr.mxu0 0.0
        %3314 = vmatpush1.msra.mxu0 0.0
        %3315 = vmatprep.subr.mxu0 0.0
        %3316 = vmatpush1.msra.mxu0 0.0
        %3317 = vmatprep.subr.mxu0 0.0
        %3318 = vmatpush1.msra.mxu0 0.0
        %3319 = vmatprep.subr.mxu0 0.0
        %3320 = vmatpush1.msra.mxu0 0.0
        %3321 = vmatprep.subr.mxu0 0.0
        %3322 = vmatpush1.msra.mxu0 0.0
        %3323 = vmatprep.subr.mxu0 0.0
        %3324 = vmatpush1.msra.mxu0 0.0
        %3325 = vmatprep.subr.mxu0 0.0
        %3326 = vmatpush1.msra.mxu0 0.0
        %3327 = vmatprep.subr.mxu0 0.0
        %3328 = vmatpush1.msra.mxu0 0.0
        %3329 = vmatprep.subr.mxu0 0.0
        %3330 = vmatpush1.msra.mxu0 0.0
        %3331 = vmatprep.subr.mxu0 0.0
        %3332 = vmatpush1.msra.mxu0 0.0
        %3333 = vmatprep.subr.mxu0 0.0
        %v3334 = vand.u32 %v2917, 4294901760
        %3335 = vmatpush1.msra.mxu0 %v3334
        %3336 = vmatprep.subr.mxu0 0.0
        %v3337 = vand.u32 %v1422, 4294901760
        %3338 = vmatpush1.msra.mxu0 %v3337
        %3339 = vmatprep.subr.mxu0 0.0
        %3340 = vmatpush2.msra.mxu0 0.0
        %3341 = vmatprep.subr.mxu0 0.0
        %3342 = vmatpush2.msra.mxu0 0.0
        %3343 = vmatprep.subr.mxu0 0.0
        %3344 = vmatpush2.msra.mxu0 0.0
        %3345 = vmatprep.subr.mxu0 0.0
        %3346 = vmatpush2.msra.mxu0 0.0
        %3347 = vmatprep.subr.mxu0 0.0
        %3348 = vmatpush2.msra.mxu0 0.0
        %3349 = vmatprep.subr.mxu0 0.0
        %3350 = vmatpush2.msra.mxu0 0.0
        %3351 = vmatprep.subr.mxu0 0.0
        %3352 = vmatpush2.msra.mxu0 0.0
        %3353 = vmatprep.subr.mxu0 0.0
        %3354 = vmatpush2.msra.mxu0 0.0
        %3355 = vmatprep.subr.mxu0 0.0
        %3356 = vmatpush2.msra.mxu0 0.0
        %3357 = vmatprep.subr.mxu0 0.0
        %3358 = vmatpush2.msra.mxu0 0.0
        %3359 = vmatprep.subr.mxu0 0.0
        %3360 = vmatpush2.msra.mxu0 0.0
        %3361 = vmatprep.subr.mxu0 0.0
        %3362 = vmatpush2.msra.mxu0 0.0
        %3363 = vmatprep.subr.mxu0 0.0
        %3364 = vmatpush2.msra.mxu0 0.0
        %3365 = vmatprep.subr.mxu0 0.0
        %3366 = vmatpush2.msra.mxu0 0.0
        %3367 = vmatprep.subr.mxu0 0.0
        %3368 = vmatpush2.msra.mxu0 0.0
        %3369 = vmatprep.subr.mxu0 0.0
        %3370 = vmatpush2.msra.mxu0 0.0
        %3371 = vmatprep.mubr.f32.mxu0 0.0
        %v3372 = vand.u32 %v2452, 4294901760
        %3373 = vmatmul.mubr.f32.gmra.mxu0 %v3372
        %v3374 = vpop.f32.mrf.mxu0
        %v3375 = vadd.f32 %v3302, %v3374
        %v3376 = vpop.f32.mrf.mxu0
        %3377 = vdwg.mxu0
        %v3379 = vsel %vm329, %v1936, 0
        %3381 = vmatprep.subr.mxu0 0.0
        %3382 = vmatpush1.msra.mxu0 0.0
        %3383 = vmatprep.subr.mxu0 0.0
        %3384 = vmatpush1.msra.mxu0 0.0
        %3385 = vmatprep.subr.mxu0 0.0
        %3386 = vmatpush1.msra.mxu0 0.0
        %3387 = vmatprep.subr.mxu0 0.0
        %3388 = vmatpush1.msra.mxu0 0.0
        %3389 = vmatprep.subr.mxu0 0.0
        %3390 = vmatpush1.msra.mxu0 0.0
        %3391 = vmatprep.subr.mxu0 0.0
        %3392 = vmatpush1.msra.mxu0 0.0
        %3393 = vmatprep.subr.mxu0 0.0
        %3394 = vmatpush1.msra.mxu0 0.0
        %3395 = vmatprep.subr.mxu0 0.0
        %3396 = vmatpush1.msra.mxu0 0.0
        %3397 = vmatprep.subr.mxu0 0.0
        %3398 = vmatpush1.msra.mxu0 0.0
        %3399 = vmatprep.subr.mxu0 0.0
        %3400 = vmatpush1.msra.mxu0 0.0
        %3401 = vmatprep.subr.mxu0 0.0
        %3402 = vmatpush1.msra.mxu0 0.0
        %3403 = vmatprep.subr.mxu0 0.0
        %3404 = vmatpush1.msra.mxu0 0.0
        %3405 = vmatprep.subr.mxu0 0.0
        %3406 = vmatpush1.msra.mxu0 0.0
        %3407 = vmatprep.subr.mxu0 0.0
        %3408 = vmatpush1.msra.mxu0 0.0
        %3409 = vmatprep.subr.mxu0 0.0
        %v3410 = vand.u32 %v3379, 4294901760
        %3411 = vmatpush1.msra.mxu0 %v3410
        %3412 = vmatprep.subr.mxu0 0.0
        %v3413 = vand.u32 %v1930, 4294901760
        %3414 = vmatpush1.msra.mxu0 %v3413
        %3415 = vmatprep.subr.mxu0 0.0
        %3416 = vmatpush2.msra.mxu0 0.0
        %3417 = vmatprep.subr.mxu0 0.0
        %3418 = vmatpush2.msra.mxu0 0.0
        %3419 = vmatprep.subr.mxu0 0.0
        %3420 = vmatpush2.msra.mxu0 0.0
        %3421 = vmatprep.subr.mxu0 0.0
        %3422 = vmatpush2.msra.mxu0 0.0
        %3423 = vmatprep.subr.mxu0 0.0
        %3424 = vmatpush2.msra.mxu0 0.0
        %3425 = vmatprep.subr.mxu0 0.0
        %3426 = vmatpush2.msra.mxu0 0.0
        %3427 = vmatprep.subr.mxu0 0.0
        %3428 = vmatpush2.msra.mxu0 0.0
        %3429 = vmatprep.subr.mxu0 0.0
        %3430 = vmatpush2.msra.mxu0 0.0
        %3431 = vmatprep.subr.mxu0 0.0
        %3432 = vmatpush2.msra.mxu0 0.0
        %3433 = vmatprep.subr.mxu0 0.0
        %3434 = vmatpush2.msra.mxu0 0.0
        %3435 = vmatprep.subr.mxu0 0.0
        %3436 = vmatpush2.msra.mxu0 0.0
        %3437 = vmatprep.subr.mxu0 0.0
        %3438 = vmatpush2.msra.mxu0 0.0
        %3439 = vmatprep.subr.mxu0 0.0
        %3440 = vmatpush2.msra.mxu0 0.0
        %3441 = vmatprep.subr.mxu0 0.0
        %3442 = vmatpush2.msra.mxu0 0.0
        %3443 = vmatprep.subr.mxu0 0.0
        %3444 = vmatpush2.msra.mxu0 0.0
        %3445 = vmatprep.subr.mxu0 0.0
        %3446 = vmatpush2.msra.mxu0 0.0
        %3447 = vmatprep.mubr.f32.mxu0 0.0
        %v3448 = vand.u32 %v2452, 4294901760
        %v3449 = vsub.f32 %v2452, %v3448
        %v3450 = vand.u32 %v3449, 4294901760
        %v3451 = vsub.f32 %v3449, %v3450
        %v3452 = vand.u32 %v3451, 4294901760
        %3453 = vmatmul.mubr.f32.gmra.mxu0 %v3452
        %v3454 = vpop.f32.mrf.mxu0
        %v3455 = vadd.f32 0.0, %v3454
        %v3456 = vpop.f32.mrf.mxu0
        %3457 = vdwg.mxu0
        %3458 = vmatprep.subr.mxu0 0.0
        %3459 = vmatpush1.msra.mxu0 0.0
        %3460 = vmatprep.subr.mxu0 0.0
        %3461 = vmatpush1.msra.mxu0 0.0
        %3462 = vmatprep.subr.mxu0 0.0
        %3463 = vmatpush1.msra.mxu0 0.0
        %3464 = vmatprep.subr.mxu0 0.0
        %3465 = vmatpush1.msra.mxu0 0.0
        %3466 = vmatprep.subr.mxu0 0.0
        %3467 = vmatpush1.msra.mxu0 0.0
        %3468 = vmatprep.subr.mxu0 0.0
        %3469 = vmatpush1.msra.mxu0 0.0
        %3470 = vmatprep.subr.mxu0 0.0
        %3471 = vmatpush1.msra.mxu0 0.0
        %3472 = vmatprep.subr.mxu0 0.0
        %3473 = vmatpush1.msra.mxu0 0.0
        %3474 = vmatprep.subr.mxu0 0.0
        %3475 = vmatpush1.msra.mxu0 0.0
        %3476 = vmatprep.subr.mxu0 0.0
        %3477 = vmatpush1.msra.mxu0 0.0
        %3478 = vmatprep.subr.mxu0 0.0
        %3479 = vmatpush1.msra.mxu0 0.0
        %3480 = vmatprep.subr.mxu0 0.0
        %3481 = vmatpush1.msra.mxu0 0.0
        %3482 = vmatprep.subr.mxu0 0.0
        %3483 = vmatpush1.msra.mxu0 0.0
        %3484 = vmatprep.subr.mxu0 0.0
        %3485 = vmatpush1.msra.mxu0 0.0
        %3486 = vmatprep.subr.mxu0 0.0
        %v3487 = vand.u32 %v3379, 4294901760
        %v3488 = vsub.f32 %v3379, %v3487
        %v3489 = vand.u32 %v3488, 4294901760
        %v3490 = vsub.f32 %v3488, %v3489
        %v3491 = vand.u32 %v3490, 4294901760
        %3492 = vmatpush1.msra.mxu0 %v3491
        %3493 = vmatprep.subr.mxu0 0.0
        %v3494 = vand.u32 %v1930, 4294901760
        %v3495 = vsub.f32 %v1930, %v3494
        %v3496 = vand.u32 %v3495, 4294901760
        %v3497 = vsub.f32 %v3495, %v3496
        %v3498 = vand.u32 %v3497, 4294901760
        %3499 = vmatpush1.msra.mxu0 %v3498
        %3500 = vmatprep.subr.mxu0 0.0
        %3501 = vmatpush2.msra.mxu0 0.0
        %3502 = vmatprep.subr.mxu0 0.0
        %3503 = vmatpush2.msra.mxu0 0.0
        %3504 = vmatprep.subr.mxu0 0.0
        %3505 = vmatpush2.msra.mxu0 0.0
        %3506 = vmatprep.subr.mxu0 0.0
        %3507 = vmatpush2.msra.mxu0 0.0
        %3508 = vmatprep.subr.mxu0 0.0
        %3509 = vmatpush2.msra.mxu0 0.0
        %3510 = vmatprep.subr.mxu0 0.0
        %3511 = vmatpush2.msra.mxu0 0.0
        %3512 = vmatprep.subr.mxu0 0.0
        %3513 = vmatpush2.msra.mxu0 0.0
        %3514 = vmatprep.subr.mxu0 0.0
        %3515 = vmatpush2.msra.mxu0 0.0
        %3516 = vmatprep.subr.mxu0 0.0
        %3517 = vmatpush2.msra.mxu0 0.0
        %3518 = vmatprep.subr.mxu0 0.0
        %3519 = vmatpush2.msra.mxu0 0.0
        %3520 = vmatprep.subr.mxu0 0.0
        %3521 = vmatpush2.msra.mxu0 0.0
        %3522 = vmatprep.subr.mxu0 0.0
        %3523 = vmatpush2.msra.mxu0 0.0
        %3524 = vmatprep.subr.mxu0 0.0
        %3525 = vmatpush2.msra.mxu0 0.0
        %3526 = vmatprep.subr.mxu0 0.0
        %3527 = vmatpush2.msra.mxu0 0.0
        %3528 = vmatprep.subr.mxu0 0.0
        %3529 = vmatpush2.msra.mxu0 0.0
        %3530 = vmatprep.subr.mxu0 0.0
        %3531 = vmatpush2.msra.mxu0 0.0
        %3532 = vmatprep.mubr.f32.mxu0 0.0
        %v3533 = vand.u32 %v2452, 4294901760
        %3534 = vmatmul.mubr.f32.gmra.mxu0 %v3533
        %v3535 = vpop.f32.mrf.mxu0
        %v3536 = vadd.f32 %v3455, %v3535
        %v3537 = vpop.f32.mrf.mxu0
        %3538 = vdwg.mxu0
        %3539 = vmatprep.subr.mxu0 0.0
        %3540 = vmatpush1.msra.mxu0 0.0
        %3541 = vmatprep.subr.mxu0 0.0
        %3542 = vmatpush1.msra.mxu0 0.0
        %3543 = vmatprep.subr.mxu0 0.0
        %3544 = vmatpush1.msra.mxu0 0.0
        %3545 = vmatprep.subr.mxu0 0.0
        %3546 = vmatpush1.msra.mxu0 0.0
        %3547 = vmatprep.subr.mxu0 0.0
        %3548 = vmatpush1.msra.mxu0 0.0
        %3549 = vmatprep.subr.mxu0 0.0
        %3550 = vmatpush1.msra.mxu0 0.0
        %3551 = vmatprep.subr.mxu0 0.0
        %3552 = vmatpush1.msra.mxu0 0.0
        %3553 = vmatprep.subr.mxu0 0.0
        %3554 = vmatpush1.msra.mxu0 0.0
        %3555 = vmatprep.subr.mxu0 0.0
        %3556 = vmatpush1.msra.mxu0 0.0
        %3557 = vmatprep.subr.mxu0 0.0
        %3558 = vmatpush1.msra.mxu0 0.0
        %3559 = vmatprep.subr.mxu0 0.0
        %3560 = vmatpush1.msra.mxu0 0.0
        %3561 = vmatprep.subr.mxu0 0.0
        %3562 = vmatpush1.msra.mxu0 0.0
        %3563 = vmatprep.subr.mxu0 0.0
        %3564 = vmatpush1.msra.mxu0 0.0
        %3565 = vmatprep.subr.mxu0 0.0
        %3566 = vmatpush1.msra.mxu0 0.0
        %3567 = vmatprep.subr.mxu0 0.0
        %v3568 = vand.u32 %v3379, 4294901760
        %v3569 = vsub.f32 %v3379, %v3568
        %3570 = vmatpush1.msra.mxu0 %v3569
        %3571 = vmatprep.subr.mxu0 0.0
        %v3572 = vand.u32 %v1930, 4294901760
        %v3573 = vsub.f32 %v1930, %v3572
        %3574 = vmatpush1.msra.mxu0 %v3573
        %3575 = vmatprep.subr.mxu0 0.0
        %3576 = vmatpush2.msra.mxu0 0.0
        %3577 = vmatprep.subr.mxu0 0.0
        %3578 = vmatpush2.msra.mxu0 0.0
        %3579 = vmatprep.subr.mxu0 0.0
        %3580 = vmatpush2.msra.mxu0 0.0
        %3581 = vmatprep.subr.mxu0 0.0
        %3582 = vmatpush2.msra.mxu0 0.0
        %3583 = vmatprep.subr.mxu0 0.0
        %3584 = vmatpush2.msra.mxu0 0.0
        %3585 = vmatprep.subr.mxu0 0.0
        %3586 = vmatpush2.msra.mxu0 0.0
        %3587 = vmatprep.subr.mxu0 0.0
        %3588 = vmatpush2.msra.mxu0 0.0
        %3589 = vmatprep.subr.mxu0 0.0
        %3590 = vmatpush2.msra.mxu0 0.0
        %3591 = vmatprep.subr.mxu0 0.0
        %3592 = vmatpush2.msra.mxu0 0.0
        %3593 = vmatprep.subr.mxu0 0.0
        %3594 = vmatpush2.msra.mxu0 0.0
        %3595 = vmatprep.subr.mxu0 0.0
        %3596 = vmatpush2.msra.mxu0 0.0
        %3597 = vmatprep.subr.mxu0 0.0
        %3598 = vmatpush2.msra.mxu0 0.0
        %3599 = vmatprep.subr.mxu0 0.0
        %3600 = vmatpush2.msra.mxu0 0.0
        %3601 = vmatprep.subr.mxu0 0.0
        %3602 = vmatpush2.msra.mxu0 0.0
        %3603 = vmatprep.subr.mxu0 0.0
        %3604 = vmatpush2.msra.mxu0 0.0
        %3605 = vmatprep.subr.mxu0 0.0
        %3606 = vmatpush2.msra.mxu0 0.0
        %3607 = vmatprep.mubr.f32.mxu0 0.0
        %v3608 = vand.u32 %v2452, 4294901760
        %v3609 = vsub.f32 %v2452, %v3608
        %3610 = vmatmul.mubr.f32.gmra.mxu0 %v3609
        %v3611 = vpop.f32.mrf.mxu0
        %v3612 = vadd.f32 %v3536, %v3611
        %v3613 = vpop.f32.mrf.mxu0
        %3614 = vdwg.mxu0
        %3615 = vmatprep.subr.mxu0 0.0
        %3616 = vmatpush1.msra.mxu0 0.0
        %3617 = vmatprep.subr.mxu0 0.0
        %3618 = vmatpush1.msra.mxu0 0.0
        %3619 = vmatprep.subr.mxu0 0.0
        %3620 = vmatpush1.msra.mxu0 0.0
        %3621 = vmatprep.subr.mxu0 0.0
        %3622 = vmatpush1.msra.mxu0 0.0
        %3623 = vmatprep.subr.mxu0 0.0
        %3624 = vmatpush1.msra.mxu0 0.0
        %3625 = vmatprep.subr.mxu0 0.0
        %3626 = vmatpush1.msra.mxu0 0.0
        %3627 = vmatprep.subr.mxu0 0.0
        %3628 = vmatpush1.msra.mxu0 0.0
        %3629 = vmatprep.subr.mxu0 0.0
        %3630 = vmatpush1.msra.mxu0 0.0
        %3631 = vmatprep.subr.mxu0 0.0
        %3632 = vmatpush1.msra.mxu0 0.0
        %3633 = vmatprep.subr.mxu0 0.0
        %3634 = vmatpush1.msra.mxu0 0.0
        %3635 = vmatprep.subr.mxu0 0.0
        %3636 = vmatpush1.msra.mxu0 0.0
        %3637 = vmatprep.subr.mxu0 0.0
        %3638 = vmatpush1.msra.mxu0 0.0
        %3639 = vmatprep.subr.mxu0 0.0
        %3640 = vmatpush1.msra.mxu0 0.0
        %3641 = vmatprep.subr.mxu0 0.0
        %3642 = vmatpush1.msra.mxu0 0.0
        %3643 = vmatprep.subr.mxu0 0.0
        %v3644 = vand.u32 %v3379, 4294901760
        %3645 = vmatpush1.msra.mxu0 %v3644
        %3646 = vmatprep.subr.mxu0 0.0
        %v3647 = vand.u32 %v1930, 4294901760
        %3648 = vmatpush1.msra.mxu0 %v3647
        %3649 = vmatprep.subr.mxu0 0.0
        %3650 = vmatpush2.msra.mxu0 0.0
        %3651 = vmatprep.subr.mxu0 0.0
        %3652 = vmatpush2.msra.mxu0 0.0
        %3653 = vmatprep.subr.mxu0 0.0
        %3654 = vmatpush2.msra.mxu0 0.0
        %3655 = vmatprep.subr.mxu0 0.0
        %3656 = vmatpush2.msra.mxu0 0.0
        %3657 = vmatprep.subr.mxu0 0.0
        %3658 = vmatpush2.msra.mxu0 0.0
        %3659 = vmatprep.subr.mxu0 0.0
        %3660 = vmatpush2.msra.mxu0 0.0
        %3661 = vmatprep.subr.mxu0 0.0
        %3662 = vmatpush2.msra.mxu0 0.0
        %3663 = vmatprep.subr.mxu0 0.0
        %3664 = vmatpush2.msra.mxu0 0.0
        %3665 = vmatprep.subr.mxu0 0.0
        %3666 = vmatpush2.msra.mxu0 0.0
        %3667 = vmatprep.subr.mxu0 0.0
        %3668 = vmatpush2.msra.mxu0 0.0
        %3669 = vmatprep.subr.mxu0 0.0
        %3670 = vmatpush2.msra.mxu0 0.0
        %3671 = vmatprep.subr.mxu0 0.0
        %3672 = vmatpush2.msra.mxu0 0.0
        %3673 = vmatprep.subr.mxu0 0.0
        %3674 = vmatpush2.msra.mxu0 0.0
        %3675 = vmatprep.subr.mxu0 0.0
        %3676 = vmatpush2.msra.mxu0 0.0
        %3677 = vmatprep.subr.mxu0 0.0
        %3678 = vmatpush2.msra.mxu0 0.0
        %3679 = vmatprep.subr.mxu0 0.0
        %3680 = vmatpush2.msra.mxu0 0.0
        %3681 = vmatprep.mubr.f32.mxu0 0.0
        %v3682 = vand.u32 %v2452, 4294901760
        %v3683 = vsub.f32 %v2452, %v3682
        %v3684 = vand.u32 %v3683, 4294901760
        %3685 = vmatmul.mubr.f32.gmra.mxu0 %v3684
        %v3686 = vpop.f32.mrf.mxu0
        %v3687 = vadd.f32 %v3612, %v3686
        %v3688 = vpop.f32.mrf.mxu0
        %3689 = vdwg.mxu0
        %3690 = vmatprep.subr.mxu0 0.0
        %3691 = vmatpush1.msra.mxu0 0.0
        %3692 = vmatprep.subr.mxu0 0.0
        %3693 = vmatpush1.msra.mxu0 0.0
        %3694 = vmatprep.subr.mxu0 0.0
        %3695 = vmatpush1.msra.mxu0 0.0
        %3696 = vmatprep.subr.mxu0 0.0
        %3697 = vmatpush1.msra.mxu0 0.0
        %3698 = vmatprep.subr.mxu0 0.0
        %3699 = vmatpush1.msra.mxu0 0.0
        %3700 = vmatprep.subr.mxu0 0.0
        %3701 = vmatpush1.msra.mxu0 0.0
        %3702 = vmatprep.subr.mxu0 0.0
        %3703 = vmatpush1.msra.mxu0 0.0
        %3704 = vmatprep.subr.mxu0 0.0
        %3705 = vmatpush1.msra.mxu0 0.0
        %3706 = vmatprep.subr.mxu0 0.0
        %3707 = vmatpush1.msra.mxu0 0.0
        %3708 = vmatprep.subr.mxu0 0.0
        %3709 = vmatpush1.msra.mxu0 0.0
        %3710 = vmatprep.subr.mxu0 0.0
        %3711 = vmatpush1.msra.mxu0 0.0
        %3712 = vmatprep.subr.mxu0 0.0
        %3713 = vmatpush1.msra.mxu0 0.0
        %3714 = vmatprep.subr.mxu0 0.0
        %3715 = vmatpush1.msra.mxu0 0.0
        %3716 = vmatprep.subr.mxu0 0.0
        %3717 = vmatpush1.msra.mxu0 0.0
        %3718 = vmatprep.subr.mxu0 0.0
        %v3719 = vand.u32 %v3379, 4294901760
        %v3720 = vsub.f32 %v3379, %v3719
        %v3721 = vand.u32 %v3720, 4294901760
        %3722 = vmatpush1.msra.mxu0 %v3721
        %3723 = vmatprep.subr.mxu0 0.0
        %v3724 = vand.u32 %v1930, 4294901760
        %v3725 = vsub.f32 %v1930, %v3724
        %v3726 = vand.u32 %v3725, 4294901760
        %3727 = vmatpush1.msra.mxu0 %v3726
        %3728 = vmatprep.subr.mxu0 0.0
        %3729 = vmatpush2.msra.mxu0 0.0
        %3730 = vmatprep.subr.mxu0 0.0
        %3731 = vmatpush2.msra.mxu0 0.0
        %3732 = vmatprep.subr.mxu0 0.0
        %3733 = vmatpush2.msra.mxu0 0.0
        %3734 = vmatprep.subr.mxu0 0.0
        %3735 = vmatpush2.msra.mxu0 0.0
        %3736 = vmatprep.subr.mxu0 0.0
        %3737 = vmatpush2.msra.mxu0 0.0
        %3738 = vmatprep.subr.mxu0 0.0
        %3739 = vmatpush2.msra.mxu0 0.0
        %3740 = vmatprep.subr.mxu0 0.0
        %3741 = vmatpush2.msra.mxu0 0.0
        %3742 = vmatprep.subr.mxu0 0.0
        %3743 = vmatpush2.msra.mxu0 0.0
        %3744 = vmatprep.subr.mxu0 0.0
        %3745 = vmatpush2.msra.mxu0 0.0
        %3746 = vmatprep.subr.mxu0 0.0
        %3747 = vmatpush2.msra.mxu0 0.0
        %3748 = vmatprep.subr.mxu0 0.0
        %3749 = vmatpush2.msra.mxu0 0.0
        %3750 = vmatprep.subr.mxu0 0.0
        %3751 = vmatpush2.msra.mxu0 0.0
        %3752 = vmatprep.subr.mxu0 0.0
        %3753 = vmatpush2.msra.mxu0 0.0
        %3754 = vmatprep.subr.mxu0 0.0
        %3755 = vmatpush2.msra.mxu0 0.0
        %3756 = vmatprep.subr.mxu0 0.0
        %3757 = vmatpush2.msra.mxu0 0.0
        %3758 = vmatprep.subr.mxu0 0.0
        %3759 = vmatpush2.msra.mxu0 0.0
        %3760 = vmatprep.mubr.f32.mxu0 0.0
        %v3761 = vand.u32 %v2452, 4294901760
        %3762 = vmatmul.mubr.f32.gmra.mxu0 %v3761
        %v3763 = vpop.f32.mrf.mxu0
        %v3764 = vadd.f32 %v3687, %v3763
        %v3765 = vpop.f32.mrf.mxu0
        %3766 = vdwg.mxu0
        %3767 = vmatprep.subr.mxu0 0.0
        %3768 = vmatpush1.msra.mxu0 0.0
        %3769 = vmatprep.subr.mxu0 0.0
        %3770 = vmatpush1.msra.mxu0 0.0
        %3771 = vmatprep.subr.mxu0 0.0
        %3772 = vmatpush1.msra.mxu0 0.0
        %3773 = vmatprep.subr.mxu0 0.0
        %3774 = vmatpush1.msra.mxu0 0.0
        %3775 = vmatprep.subr.mxu0 0.0
        %3776 = vmatpush1.msra.mxu0 0.0
        %3777 = vmatprep.subr.mxu0 0.0
        %3778 = vmatpush1.msra.mxu0 0.0
        %3779 = vmatprep.subr.mxu0 0.0
        %3780 = vmatpush1.msra.mxu0 0.0
        %3781 = vmatprep.subr.mxu0 0.0
        %3782 = vmatpush1.msra.mxu0 0.0
        %3783 = vmatprep.subr.mxu0 0.0
        %3784 = vmatpush1.msra.mxu0 0.0
        %3785 = vmatprep.subr.mxu0 0.0
        %3786 = vmatpush1.msra.mxu0 0.0
        %3787 = vmatprep.subr.mxu0 0.0
        %3788 = vmatpush1.msra.mxu0 0.0
        %3789 = vmatprep.subr.mxu0 0.0
        %3790 = vmatpush1.msra.mxu0 0.0
        %3791 = vmatprep.subr.mxu0 0.0
        %3792 = vmatpush1.msra.mxu0 0.0
        %3793 = vmatprep.subr.mxu0 0.0
        %3794 = vmatpush1.msra.mxu0 0.0
        %3795 = vmatprep.subr.mxu0 0.0
        %v3796 = vand.u32 %v3379, 4294901760
        %3797 = vmatpush1.msra.mxu0 %v3796
        %3798 = vmatprep.subr.mxu0 0.0
        %v3799 = vand.u32 %v1930, 4294901760
        %3800 = vmatpush1.msra.mxu0 %v3799
        %3801 = vmatprep.subr.mxu0 0.0
        %3802 = vmatpush2.msra.mxu0 0.0
        %3803 = vmatprep.subr.mxu0 0.0
        %3804 = vmatpush2.msra.mxu0 0.0
        %3805 = vmatprep.subr.mxu0 0.0
        %3806 = vmatpush2.msra.mxu0 0.0
        %3807 = vmatprep.subr.mxu0 0.0
        %3808 = vmatpush2.msra.mxu0 0.0
        %3809 = vmatprep.subr.mxu0 0.0
        %3810 = vmatpush2.msra.mxu0 0.0
        %3811 = vmatprep.subr.mxu0 0.0
        %3812 = vmatpush2.msra.mxu0 0.0
        %3813 = vmatprep.subr.mxu0 0.0
        %3814 = vmatpush2.msra.mxu0 0.0
        %3815 = vmatprep.subr.mxu0 0.0
        %3816 = vmatpush2.msra.mxu0 0.0
        %3817 = vmatprep.subr.mxu0 0.0
        %3818 = vmatpush2.msra.mxu0 0.0
        %3819 = vmatprep.subr.mxu0 0.0
        %3820 = vmatpush2.msra.mxu0 0.0
        %3821 = vmatprep.subr.mxu0 0.0
        %3822 = vmatpush2.msra.mxu0 0.0
        %3823 = vmatprep.subr.mxu0 0.0
        %3824 = vmatpush2.msra.mxu0 0.0
        %3825 = vmatprep.subr.mxu0 0.0
        %3826 = vmatpush2.msra.mxu0 0.0
        %3827 = vmatprep.subr.mxu0 0.0
        %3828 = vmatpush2.msra.mxu0 0.0
        %3829 = vmatprep.subr.mxu0 0.0
        %3830 = vmatpush2.msra.mxu0 0.0
        %3831 = vmatprep.subr.mxu0 0.0
        %3832 = vmatpush2.msra.mxu0 0.0
        %3833 = vmatprep.mubr.f32.mxu0 0.0
        %v3834 = vand.u32 %v2452, 4294901760
        %3835 = vmatmul.mubr.f32.gmra.mxu0 %v3834
        %v3836 = vpop.f32.mrf.mxu0
        %v3837 = vadd.f32 %v3764, %v3836
        %v3838 = vpop.f32.mrf.mxu0
        %3839 = vdwg.mxu0
        %v3841 = vsel %vm329, %v2444, 0
        %3843 = vmatprep.subr.mxu0 0.0
        %3844 = vmatpush1.msra.mxu0 0.0
        %3845 = vmatprep.subr.mxu0 0.0
        %3846 = vmatpush1.msra.mxu0 0.0
        %3847 = vmatprep.subr.mxu0 0.0
        %3848 = vmatpush1.msra.mxu0 0.0
        %3849 = vmatprep.subr.mxu0 0.0
        %3850 = vmatpush1.msra.mxu0 0.0
        %3851 = vmatprep.subr.mxu0 0.0
        %3852 = vmatpush1.msra.mxu0 0.0
        %3853 = vmatprep.subr.mxu0 0.0
        %3854 = vmatpush1.msra.mxu0 0.0
        %3855 = vmatprep.subr.mxu0 0.0
        %3856 = vmatpush1.msra.mxu0 0.0
        %3857 = vmatprep.subr.mxu0 0.0
        %3858 = vmatpush1.msra.mxu0 0.0
        %3859 = vmatprep.subr.mxu0 0.0
        %3860 = vmatpush1.msra.mxu0 0.0
        %3861 = vmatprep.subr.mxu0 0.0
        %3862 = vmatpush1.msra.mxu0 0.0
        %3863 = vmatprep.subr.mxu0 0.0
        %3864 = vmatpush1.msra.mxu0 0.0
        %3865 = vmatprep.subr.mxu0 0.0
        %3866 = vmatpush1.msra.mxu0 0.0
        %3867 = vmatprep.subr.mxu0 0.0
        %3868 = vmatpush1.msra.mxu0 0.0
        %3869 = vmatprep.subr.mxu0 0.0
        %3870 = vmatpush1.msra.mxu0 0.0
        %3871 = vmatprep.subr.mxu0 0.0
        %v3872 = vand.u32 %v3841, 4294901760
        %3873 = vmatpush1.msra.mxu0 %v3872
        %3874 = vmatprep.subr.mxu0 0.0
        %v3875 = vand.u32 %v2438, 4294901760
        %3876 = vmatpush1.msra.mxu0 %v3875
        %3877 = vmatprep.subr.mxu0 0.0
        %3878 = vmatpush2.msra.mxu0 0.0
        %3879 = vmatprep.subr.mxu0 0.0
        %3880 = vmatpush2.msra.mxu0 0.0
        %3881 = vmatprep.subr.mxu0 0.0
        %3882 = vmatpush2.msra.mxu0 0.0
        %3883 = vmatprep.subr.mxu0 0.0
        %3884 = vmatpush2.msra.mxu0 0.0
        %3885 = vmatprep.subr.mxu0 0.0
        %3886 = vmatpush2.msra.mxu0 0.0
        %3887 = vmatprep.subr.mxu0 0.0
        %3888 = vmatpush2.msra.mxu0 0.0
        %3889 = vmatprep.subr.mxu0 0.0
        %3890 = vmatpush2.msra.mxu0 0.0
        %3891 = vmatprep.subr.mxu0 0.0
        %3892 = vmatpush2.msra.mxu0 0.0
        %3893 = vmatprep.subr.mxu0 0.0
        %3894 = vmatpush2.msra.mxu0 0.0
        %3895 = vmatprep.subr.mxu0 0.0
        %3896 = vmatpush2.msra.mxu0 0.0
        %3897 = vmatprep.subr.mxu0 0.0
        %3898 = vmatpush2.msra.mxu0 0.0
        %3899 = vmatprep.subr.mxu0 0.0
        %3900 = vmatpush2.msra.mxu0 0.0
        %3901 = vmatprep.subr.mxu0 0.0
        %3902 = vmatpush2.msra.mxu0 0.0
        %3903 = vmatprep.subr.mxu0 0.0
        %3904 = vmatpush2.msra.mxu0 0.0
        %3905 = vmatprep.subr.mxu0 0.0
        %3906 = vmatpush2.msra.mxu0 0.0
        %3907 = vmatprep.subr.mxu0 0.0
        %3908 = vmatpush2.msra.mxu0 0.0
        %3909 = vmatprep.mubr.f32.mxu0 0.0
        %v3910 = vand.u32 %v2452, 4294901760
        %v3911 = vsub.f32 %v2452, %v3910
        %v3912 = vand.u32 %v3911, 4294901760
        %v3913 = vsub.f32 %v3911, %v3912
        %v3914 = vand.u32 %v3913, 4294901760
        %3915 = vmatmul.mubr.f32.gmra.mxu0 %v3914
        %v3916 = vpop.f32.mrf.mxu0
        %v3917 = vadd.f32 0.0, %v3916
        %v3918 = vpop.f32.mrf.mxu0
        %3919 = vdwg.mxu0
        %3920 = vmatprep.subr.mxu0 0.0
        %3921 = vmatpush1.msra.mxu0 0.0
        %3922 = vmatprep.subr.mxu0 0.0
        %3923 = vmatpush1.msra.mxu0 0.0
        %3924 = vmatprep.subr.mxu0 0.0
        %3925 = vmatpush1.msra.mxu0 0.0
        %3926 = vmatprep.subr.mxu0 0.0
        %3927 = vmatpush1.msra.mxu0 0.0
        %3928 = vmatprep.subr.mxu0 0.0
        %3929 = vmatpush1.msra.mxu0 0.0
        %3930 = vmatprep.subr.mxu0 0.0
        %3931 = vmatpush1.msra.mxu0 0.0
        %3932 = vmatprep.subr.mxu0 0.0
        %3933 = vmatpush1.msra.mxu0 0.0
        %3934 = vmatprep.subr.mxu0 0.0
        %3935 = vmatpush1.msra.mxu0 0.0
        %3936 = vmatprep.subr.mxu0 0.0
        %3937 = vmatpush1.msra.mxu0 0.0
        %3938 = vmatprep.subr.mxu0 0.0
        %3939 = vmatpush1.msra.mxu0 0.0
        %3940 = vmatprep.subr.mxu0 0.0
        %3941 = vmatpush1.msra.mxu0 0.0
        %3942 = vmatprep.subr.mxu0 0.0
        %3943 = vmatpush1.msra.mxu0 0.0
        %3944 = vmatprep.subr.mxu0 0.0
        %3945 = vmatpush1.msra.mxu0 0.0
        %3946 = vmatprep.subr.mxu0 0.0
        %3947 = vmatpush1.msra.mxu0 0.0
        %3948 = vmatprep.subr.mxu0 0.0
        %v3949 = vand.u32 %v3841, 4294901760
        %v3950 = vsub.f32 %v3841, %v3949
        %v3951 = vand.u32 %v3950, 4294901760
        %v3952 = vsub.f32 %v3950, %v3951
        %v3953 = vand.u32 %v3952, 4294901760
        %3954 = vmatpush1.msra.mxu0 %v3953
        %3955 = vmatprep.subr.mxu0 0.0
        %v3956 = vand.u32 %v2438, 4294901760
        %v3957 = vsub.f32 %v2438, %v3956
        %v3958 = vand.u32 %v3957, 4294901760
        %v3959 = vsub.f32 %v3957, %v3958
        %v3960 = vand.u32 %v3959, 4294901760
        %3961 = vmatpush1.msra.mxu0 %v3960
        %3962 = vmatprep.subr.mxu0 0.0
        %3963 = vmatpush2.msra.mxu0 0.0
        %3964 = vmatprep.subr.mxu0 0.0
        %3965 = vmatpush2.msra.mxu0 0.0
        %3966 = vmatprep.subr.mxu0 0.0
        %3967 = vmatpush2.msra.mxu0 0.0
        %3968 = vmatprep.subr.mxu0 0.0
        %3969 = vmatpush2.msra.mxu0 0.0
        %3970 = vmatprep.subr.mxu0 0.0
        %3971 = vmatpush2.msra.mxu0 0.0
        %3972 = vmatprep.subr.mxu0 0.0
        %3973 = vmatpush2.msra.mxu0 0.0
        %3974 = vmatprep.subr.mxu0 0.0
        %3975 = vmatpush2.msra.mxu0 0.0
        %3976 = vmatprep.subr.mxu0 0.0
        %3977 = vmatpush2.msra.mxu0 0.0
        %3978 = vmatprep.subr.mxu0 0.0
        %3979 = vmatpush2.msra.mxu0 0.0
        %3980 = vmatprep.subr.mxu0 0.0
        %3981 = vmatpush2.msra.mxu0 0.0
        %3982 = vmatprep.subr.mxu0 0.0
        %3983 = vmatpush2.msra.mxu0 0.0
        %3984 = vmatprep.subr.mxu0 0.0
        %3985 = vmatpush2.msra.mxu0 0.0
        %3986 = vmatprep.subr.mxu0 0.0
        %3987 = vmatpush2.msra.mxu0 0.0
        %3988 = vmatprep.subr.mxu0 0.0
        %3989 = vmatpush2.msra.mxu0 0.0
        %3990 = vmatprep.subr.mxu0 0.0
        %3991 = vmatpush2.msra.mxu0 0.0
        %3992 = vmatprep.subr.mxu0 0.0
        %3993 = vmatpush2.msra.mxu0 0.0
        %3994 = vmatprep.mubr.f32.mxu0 0.0
        %v3995 = vand.u32 %v2452, 4294901760
        %3996 = vmatmul.mubr.f32.gmra.mxu0 %v3995
        %v3997 = vpop.f32.mrf.mxu0
        %v3998 = vadd.f32 %v3917, %v3997
        %v3999 = vpop.f32.mrf.mxu0
        %4000 = vdwg.mxu0
        %4001 = vmatprep.subr.mxu0 0.0
        %4002 = vmatpush1.msra.mxu0 0.0
        %4003 = vmatprep.subr.mxu0 0.0
        %4004 = vmatpush1.msra.mxu0 0.0
        %4005 = vmatprep.subr.mxu0 0.0
        %4006 = vmatpush1.msra.mxu0 0.0
        %4007 = vmatprep.subr.mxu0 0.0
        %4008 = vmatpush1.msra.mxu0 0.0
        %4009 = vmatprep.subr.mxu0 0.0
        %4010 = vmatpush1.msra.mxu0 0.0
        %4011 = vmatprep.subr.mxu0 0.0
        %4012 = vmatpush1.msra.mxu0 0.0
        %4013 = vmatprep.subr.mxu0 0.0
        %4014 = vmatpush1.msra.mxu0 0.0
        %4015 = vmatprep.subr.mxu0 0.0
        %4016 = vmatpush1.msra.mxu0 0.0
        %4017 = vmatprep.subr.mxu0 0.0
        %4018 = vmatpush1.msra.mxu0 0.0
        %4019 = vmatprep.subr.mxu0 0.0
        %4020 = vmatpush1.msra.mxu0 0.0
        %4021 = vmatprep.subr.mxu0 0.0
        %4022 = vmatpush1.msra.mxu0 0.0
        %4023 = vmatprep.subr.mxu0 0.0
        %4024 = vmatpush1.msra.mxu0 0.0
        %4025 = vmatprep.subr.mxu0 0.0
        %4026 = vmatpush1.msra.mxu0 0.0
        %4027 = vmatprep.subr.mxu0 0.0
        %4028 = vmatpush1.msra.mxu0 0.0
        %4029 = vmatprep.subr.mxu0 0.0
        %v4030 = vand.u32 %v3841, 4294901760
        %v4031 = vsub.f32 %v3841, %v4030
        %4032 = vmatpush1.msra.mxu0 %v4031
        %4033 = vmatprep.subr.mxu0 0.0
        %v4034 = vand.u32 %v2438, 4294901760
        %v4035 = vsub.f32 %v2438, %v4034
        %4036 = vmatpush1.msra.mxu0 %v4035
        %4037 = vmatprep.subr.mxu0 0.0
        %4038 = vmatpush2.msra.mxu0 0.0
        %4039 = vmatprep.subr.mxu0 0.0
        %4040 = vmatpush2.msra.mxu0 0.0
        %4041 = vmatprep.subr.mxu0 0.0
        %4042 = vmatpush2.msra.mxu0 0.0
        %4043 = vmatprep.subr.mxu0 0.0
        %4044 = vmatpush2.msra.mxu0 0.0
        %4045 = vmatprep.subr.mxu0 0.0
        %4046 = vmatpush2.msra.mxu0 0.0
        %4047 = vmatprep.subr.mxu0 0.0
        %4048 = vmatpush2.msra.mxu0 0.0
        %4049 = vmatprep.subr.mxu0 0.0
        %4050 = vmatpush2.msra.mxu0 0.0
        %4051 = vmatprep.subr.mxu0 0.0
        %4052 = vmatpush2.msra.mxu0 0.0
        %4053 = vmatprep.subr.mxu0 0.0
        %4054 = vmatpush2.msra.mxu0 0.0
        %4055 = vmatprep.subr.mxu0 0.0
        %4056 = vmatpush2.msra.mxu0 0.0
        %4057 = vmatprep.subr.mxu0 0.0
        %4058 = vmatpush2.msra.mxu0 0.0
        %4059 = vmatprep.subr.mxu0 0.0
        %4060 = vmatpush2.msra.mxu0 0.0
        %4061 = vmatprep.subr.mxu0 0.0
        %4062 = vmatpush2.msra.mxu0 0.0
        %4063 = vmatprep.subr.mxu0 0.0
        %4064 = vmatpush2.msra.mxu0 0.0
        %4065 = vmatprep.subr.mxu0 0.0
        %4066 = vmatpush2.msra.mxu0 0.0
        %4067 = vmatprep.subr.mxu0 0.0
        %4068 = vmatpush2.msra.mxu0 0.0
        %4069 = vmatprep.mubr.f32.mxu0 0.0
        %v4070 = vand.u32 %v2452, 4294901760
        %v4071 = vsub.f32 %v2452, %v4070
        %4072 = vmatmul.mubr.f32.gmra.mxu0 %v4071
        %v4073 = vpop.f32.mrf.mxu0
        %v4074 = vadd.f32 %v3998, %v4073
        %v4075 = vpop.f32.mrf.mxu0
        %4076 = vdwg.mxu0
        %4077 = vmatprep.subr.mxu0 0.0
        %4078 = vmatpush1.msra.mxu0 0.0
        %4079 = vmatprep.subr.mxu0 0.0
        %4080 = vmatpush1.msra.mxu0 0.0
        %4081 = vmatprep.subr.mxu0 0.0
        %4082 = vmatpush1.msra.mxu0 0.0
        %4083 = vmatprep.subr.mxu0 0.0
        %4084 = vmatpush1.msra.mxu0 0.0
        %4085 = vmatprep.subr.mxu0 0.0
        %4086 = vmatpush1.msra.mxu0 0.0
        %4087 = vmatprep.subr.mxu0 0.0
        %4088 = vmatpush1.msra.mxu0 0.0
        %4089 = vmatprep.subr.mxu0 0.0
        %4090 = vmatpush1.msra.mxu0 0.0
        %4091 = vmatprep.subr.mxu0 0.0
        %4092 = vmatpush1.msra.mxu0 0.0
        %4093 = vmatprep.subr.mxu0 0.0
        %4094 = vmatpush1.msra.mxu0 0.0
        %4095 = vmatprep.subr.mxu0 0.0
        %4096 = vmatpush1.msra.mxu0 0.0
        %4097 = vmatprep.subr.mxu0 0.0
        %4098 = vmatpush1.msra.mxu0 0.0
        %4099 = vmatprep.subr.mxu0 0.0
        %4100 = vmatpush1.msra.mxu0 0.0
        %4101 = vmatprep.subr.mxu0 0.0
        %4102 = vmatpush1.msra.mxu0 0.0
        %4103 = vmatprep.subr.mxu0 0.0
        %4104 = vmatpush1.msra.mxu0 0.0
        %4105 = vmatprep.subr.mxu0 0.0
        %v4106 = vand.u32 %v3841, 4294901760
        %4107 = vmatpush1.msra.mxu0 %v4106
        %4108 = vmatprep.subr.mxu0 0.0
        %v4109 = vand.u32 %v2438, 4294901760
        %4110 = vmatpush1.msra.mxu0 %v4109
        %4111 = vmatprep.subr.mxu0 0.0
        %4112 = vmatpush2.msra.mxu0 0.0
        %4113 = vmatprep.subr.mxu0 0.0
        %4114 = vmatpush2.msra.mxu0 0.0
        %4115 = vmatprep.subr.mxu0 0.0
        %4116 = vmatpush2.msra.mxu0 0.0
        %4117 = vmatprep.subr.mxu0 0.0
        %4118 = vmatpush2.msra.mxu0 0.0
        %4119 = vmatprep.subr.mxu0 0.0
        %4120 = vmatpush2.msra.mxu0 0.0
        %4121 = vmatprep.subr.mxu0 0.0
        %4122 = vmatpush2.msra.mxu0 0.0
        %4123 = vmatprep.subr.mxu0 0.0
        %4124 = vmatpush2.msra.mxu0 0.0
        %4125 = vmatprep.subr.mxu0 0.0
        %4126 = vmatpush2.msra.mxu0 0.0
        %4127 = vmatprep.subr.mxu0 0.0
        %4128 = vmatpush2.msra.mxu0 0.0
        %4129 = vmatprep.subr.mxu0 0.0
        %4130 = vmatpush2.msra.mxu0 0.0
        %4131 = vmatprep.subr.mxu0 0.0
        %4132 = vmatpush2.msra.mxu0 0.0
        %4133 = vmatprep.subr.mxu0 0.0
        %4134 = vmatpush2.msra.mxu0 0.0
        %4135 = vmatprep.subr.mxu0 0.0
        %4136 = vmatpush2.msra.mxu0 0.0
        %4137 = vmatprep.subr.mxu0 0.0
        %4138 = vmatpush2.msra.mxu0 0.0
        %4139 = vmatprep.subr.mxu0 0.0
        %4140 = vmatpush2.msra.mxu0 0.0
        %4141 = vmatprep.subr.mxu0 0.0
        %4142 = vmatpush2.msra.mxu0 0.0
        %4143 = vmatprep.mubr.f32.mxu0 0.0
        %v4144 = vand.u32 %v2452, 4294901760
        %v4145 = vsub.f32 %v2452, %v4144
        %v4146 = vand.u32 %v4145, 4294901760
        %4147 = vmatmul.mubr.f32.gmra.mxu0 %v4146
        %v4148 = vpop.f32.mrf.mxu0
        %v4149 = vadd.f32 %v4074, %v4148
        %v4150 = vpop.f32.mrf.mxu0
        %4151 = vdwg.mxu0
        %4152 = vmatprep.subr.mxu0 0.0
        %4153 = vmatpush1.msra.mxu0 0.0
        %4154 = vmatprep.subr.mxu0 0.0
        %4155 = vmatpush1.msra.mxu0 0.0
        %4156 = vmatprep.subr.mxu0 0.0
        %4157 = vmatpush1.msra.mxu0 0.0
        %4158 = vmatprep.subr.mxu0 0.0
        %4159 = vmatpush1.msra.mxu0 0.0
        %4160 = vmatprep.subr.mxu0 0.0
        %4161 = vmatpush1.msra.mxu0 0.0
        %4162 = vmatprep.subr.mxu0 0.0
        %4163 = vmatpush1.msra.mxu0 0.0
        %4164 = vmatprep.subr.mxu0 0.0
        %4165 = vmatpush1.msra.mxu0 0.0
        %4166 = vmatprep.subr.mxu0 0.0
        %4167 = vmatpush1.msra.mxu0 0.0
        %4168 = vmatprep.subr.mxu0 0.0
        %4169 = vmatpush1.msra.mxu0 0.0
        %4170 = vmatprep.subr.mxu0 0.0
        %4171 = vmatpush1.msra.mxu0 0.0
        %4172 = vmatprep.subr.mxu0 0.0
        %4173 = vmatpush1.msra.mxu0 0.0
        %4174 = vmatprep.subr.mxu0 0.0
        %4175 = vmatpush1.msra.mxu0 0.0
        %4176 = vmatprep.subr.mxu0 0.0
        %4177 = vmatpush1.msra.mxu0 0.0
        %4178 = vmatprep.subr.mxu0 0.0
        %4179 = vmatpush1.msra.mxu0 0.0
        %4180 = vmatprep.subr.mxu0 0.0
        %v4181 = vand.u32 %v3841, 4294901760
        %v4182 = vsub.f32 %v3841, %v4181
        %v4183 = vand.u32 %v4182, 4294901760
        %4184 = vmatpush1.msra.mxu0 %v4183
        %4185 = vmatprep.subr.mxu0 0.0
        %v4186 = vand.u32 %v2438, 4294901760
        %v4187 = vsub.f32 %v2438, %v4186
        %v4188 = vand.u32 %v4187, 4294901760
        %4189 = vmatpush1.msra.mxu0 %v4188
        %4190 = vmatprep.subr.mxu0 0.0
        %4191 = vmatpush2.msra.mxu0 0.0
        %4192 = vmatprep.subr.mxu0 0.0
        %4193 = vmatpush2.msra.mxu0 0.0
        %4194 = vmatprep.subr.mxu0 0.0
        %4195 = vmatpush2.msra.mxu0 0.0
        %4196 = vmatprep.subr.mxu0 0.0
        %4197 = vmatpush2.msra.mxu0 0.0
        %4198 = vmatprep.subr.mxu0 0.0
        %4199 = vmatpush2.msra.mxu0 0.0
        %4200 = vmatprep.subr.mxu0 0.0
        %4201 = vmatpush2.msra.mxu0 0.0
        %4202 = vmatprep.subr.mxu0 0.0
        %4203 = vmatpush2.msra.mxu0 0.0
        %4204 = vmatprep.subr.mxu0 0.0
        %4205 = vmatpush2.msra.mxu0 0.0
        %4206 = vmatprep.subr.mxu0 0.0
        %4207 = vmatpush2.msra.mxu0 0.0
        %4208 = vmatprep.subr.mxu0 0.0
        %4209 = vmatpush2.msra.mxu0 0.0
        %4210 = vmatprep.subr.mxu0 0.0
        %4211 = vmatpush2.msra.mxu0 0.0
        %4212 = vmatprep.subr.mxu0 0.0
        %4213 = vmatpush2.msra.mxu0 0.0
        %4214 = vmatprep.subr.mxu0 0.0
        %4215 = vmatpush2.msra.mxu0 0.0
        %4216 = vmatprep.subr.mxu0 0.0
        %4217 = vmatpush2.msra.mxu0 0.0
        %4218 = vmatprep.subr.mxu0 0.0
        %4219 = vmatpush2.msra.mxu0 0.0
        %4220 = vmatprep.subr.mxu0 0.0
        %4221 = vmatpush2.msra.mxu0 0.0
        %4222 = vmatprep.mubr.f32.mxu0 0.0
        %v4223 = vand.u32 %v2452, 4294901760
        %4224 = vmatmul.mubr.f32.gmra.mxu0 %v4223
        %v4225 = vpop.f32.mrf.mxu0
        %v4226 = vadd.f32 %v4149, %v4225
        %v4227 = vpop.f32.mrf.mxu0
        %4228 = vdwg.mxu0
        %4229 = vmatprep.subr.mxu0 0.0
        %4230 = vmatpush1.msra.mxu0 0.0
        %4231 = vmatprep.subr.mxu0 0.0
        %4232 = vmatpush1.msra.mxu0 0.0
        %4233 = vmatprep.subr.mxu0 0.0
        %4234 = vmatpush1.msra.mxu0 0.0
        %4235 = vmatprep.subr.mxu0 0.0
        %4236 = vmatpush1.msra.mxu0 0.0
        %4237 = vmatprep.subr.mxu0 0.0
        %4238 = vmatpush1.msra.mxu0 0.0
        %4239 = vmatprep.subr.mxu0 0.0
        %4240 = vmatpush1.msra.mxu0 0.0
        %4241 = vmatprep.subr.mxu0 0.0
        %4242 = vmatpush1.msra.mxu0 0.0
        %4243 = vmatprep.subr.mxu0 0.0
        %4244 = vmatpush1.msra.mxu0 0.0
        %4245 = vmatprep.subr.mxu0 0.0
        %4246 = vmatpush1.msra.mxu0 0.0
        %4247 = vmatprep.subr.mxu0 0.0
        %4248 = vmatpush1.msra.mxu0 0.0
        %4249 = vmatprep.subr.mxu0 0.0
        %4250 = vmatpush1.msra.mxu0 0.0
        %4251 = vmatprep.subr.mxu0 0.0
        %4252 = vmatpush1.msra.mxu0 0.0
        %4253 = vmatprep.subr.mxu0 0.0
        %4254 = vmatpush1.msra.mxu0 0.0
        %4255 = vmatprep.subr.mxu0 0.0
        %4256 = vmatpush1.msra.mxu0 0.0
        %4257 = vmatprep.subr.mxu0 0.0
        %v4258 = vand.u32 %v3841, 4294901760
        %4259 = vmatpush1.msra.mxu0 %v4258
        %4260 = vmatprep.subr.mxu0 0.0
        %v4261 = vand.u32 %v2438, 4294901760
        %4262 = vmatpush1.msra.mxu0 %v4261
        %4263 = vmatprep.subr.mxu0 0.0
        %4264 = vmatpush2.msra.mxu0 0.0
        %4265 = vmatprep.subr.mxu0 0.0
        %4266 = vmatpush2.msra.mxu0 0.0
        %4267 = vmatprep.subr.mxu0 0.0
        %4268 = vmatpush2.msra.mxu0 0.0
        %4269 = vmatprep.subr.mxu0 0.0
        %4270 = vmatpush2.msra.mxu0 0.0
        %4271 = vmatprep.subr.mxu0 0.0
        %4272 = vmatpush2.msra.mxu0 0.0
        %4273 = vmatprep.subr.mxu0 0.0
        %4274 = vmatpush2.msra.mxu0 0.0
        %4275 = vmatprep.subr.mxu0 0.0
        %4276 = vmatpush2.msra.mxu0 0.0
        %4277 = vmatprep.subr.mxu0 0.0
        %4278 = vmatpush2.msra.mxu0 0.0
        %4279 = vmatprep.subr.mxu0 0.0
        %4280 = vmatpush2.msra.mxu0 0.0
        %4281 = vmatprep.subr.mxu0 0.0
        %4282 = vmatpush2.msra.mxu0 0.0
        %4283 = vmatprep.subr.mxu0 0.0
        %4284 = vmatpush2.msra.mxu0 0.0
        %4285 = vmatprep.subr.mxu0 0.0
        %4286 = vmatpush2.msra.mxu0 0.0
        %4287 = vmatprep.subr.mxu0 0.0
        %4288 = vmatpush2.msra.mxu0 0.0
        %4289 = vmatprep.subr.mxu0 0.0
        %4290 = vmatpush2.msra.mxu0 0.0
        %4291 = vmatprep.subr.mxu0 0.0
        %4292 = vmatpush2.msra.mxu0 0.0
        %4293 = vmatprep.subr.mxu0 0.0
        %4294 = vmatpush2.msra.mxu0 0.0
        %4295 = vmatprep.mubr.f32.mxu0 0.0
        %v4296 = vand.u32 %v2452, 4294901760
        %4297 = vmatmul.mubr.f32.gmra.mxu0 %v4296
        %v4298 = vpop.f32.mrf.mxu0
        %v4299 = vadd.f32 %v4226, %v4298
        %v4300 = vpop.f32.mrf.mxu0
        %4301 = vdwg.mxu0
        %vm4302 = vcmask 64512
        %4303 = vst.msk [vmem:[%s135] sm:$0xff] %vm4302, %v2913
        %4304 = vst.msk [vmem:[%s135 + $0x8] sm:$0xff] %vm4302, %v3375
        %4305 = vst.msk [vmem:[%s135 + $0x10] sm:$0xff] %vm4302, %v3837
        %4306 = vst.msk [vmem:[%s135 + $0x18] sm:$0xff] %vm4302, %v4299
        %s4307 = sand.u32 %s52, 1
        %s4308 = scalar_lea.sflag [#allocation5], %s4307
        %s4309 = sand.u32 %s52, 1
        %s4310 = smul.addr %s4309, 32
        %s4311 = scalar_lea.vmem [#allocation6], %s4310
        // Predicated region
        $region29: #{_max_pool2d.1} parent=23 // pred_check
          %p4312 = pneg %p62
        $region30: #{_max_pool2d.1} parent=23 // pred_check_branch
          %4314 = sbr.rel (%p4312) target = $region32
        $region31: #{_max_pool2d.1} parent=23 // pred_region
          %s4315 = smul.u32 4, %s18
          %s4317 = ssub.s32 512, 512
          %4318 = vsyncadd %s4308, %s4317
          %s4319 = smul.addr %s4315, 128
          %s4320 = scalar_lea.hbm %s1, %s4319
          %s4321 = sshll.u32 %s4311, 4
          %s4322 = int_to_ptr.vmem [resolvable:$true] %s4321
          %4327 = dma.vmem_to_hbm [thread:$0]  %s4322, 512, %s4320, %s4308, 128, 128, 8
        $region32: #{_max_pool2d.1} parent=23 // pred_fallthru
          _
      $region24: #{_max_pool2d.1} parent=5 // pred_fallthru
        _
      %p4328 = scmp.le.s32.totalorder 2, %s13
      // Predicated region
      $region33: #{_max_pool2d.1} parent=5 // pred_check
        %p4329 = pneg %p4328
      $region34: #{_max_pool2d.1} parent=5 // pred_check_branch
        %4331 = sbr.rel (%p4329) target = $region36
      $region35: #{_max_pool2d.1} parent=5 // pred_region
        %s4332 = ssub.s32 %s13, 2
        // Predicated region
        $region37: #{_max_pool2d.1} parent=35 // pred_check
          %p4333 = pneg %p68
        $region38: #{_max_pool2d.1} parent=35 // pred_check_branch
          %4335 = sbr.rel (%p4333) target = $region40
        $region39: #{_max_pool2d.1} parent=35 // pred_region
          %s4336 = sand.u32 %s53, 1
          %s4337 = scalar_lea.sflag [#allocation5], %s4336
          %s4338 = sand.u32 %s53, 1
          %s4339 = smul.addr %s4338, 32
          %s4340 = scalar_lea.vmem [#allocation6], %s4339
          %4341 = dma.done %s4337, 512
        $region40: #{_max_pool2d.1} parent=35 // pred_fallthru
          _
      $region36: #{_max_pool2d.1} parent=5 // pred_fallthru
        _
    $region6: #{_max_pool2d.1} parent=1 // loop_footer
      %s17 = sadd.s32 1, %s13
    $region7: #{_max_pool2d.1} parent=1 // loop_footer_branch
      %12 = sbr.rel target = $region3
    $region8: #{_max_pool2d.1} parent=1 // loop_exit
      _
    %4342 = vsyncpa [#allocation4], 1
    %s4343 = scalar_lea.sflag [#allocation4], 1
    %4344 = vsyncpa %s4343, 1
    %4345 = vsyncpa [#allocation5], 1
    %s4346 = scalar_lea.sflag [#allocation5], 1
    %4347 = vsyncpa %s4346, 1

</llo_original>
